<compile_context>
chip_gen: v5e
topology: v5e:2x2
jax: 0.10.0
libtpu: 0.0.40
codegen_flags: <defaults>
</compile_context>

<pallas_src>
import math
import jax
import jax.numpy as jnp
from jax import lax
from jax.experimental import pallas as pl
from jax.experimental.pallas import tpu as pltpu  # noqa: F401  (kept for scaling variants)

# ---- synthetic model config (small, TPU-tile friendly) ----
VOCAB = 100        # vocab size
VOCAB_PAD = 128    # embedding table padded to a full lane tile for the MXU gather
B = 2              # batch
S = 16             # sequence length
H = 128            # hidden size ("question_hdim")
NH = 2             # attention heads
HD = H // NH       # head dim
FF = 256           # FFN intermediate size
LAYERS = 2         # encoder layers
EPS = 1e-12        # BERT LayerNorm eps


def _layer_norm(x, gamma, beta):
    mu = jnp.mean(x, axis=-1, keepdims=True)
    var = jnp.mean((x - mu) ** 2, axis=-1, keepdims=True)
    return (x - mu) * lax.rsqrt(var + EPS) * gamma + beta


# ---------------- fused Pallas kernel ----------------

def fused_encoder_kernel(ids_ref, mask_ref, wemb_ref, pt_ref,
                         emb_g_ref, emb_b_ref,
                         wqkv_ref, bqkv_ref, wo_ref, bo_ref,
                         ln1g_ref, ln1b_ref, w1_ref, b1_ref,
                         w2_ref, b2_ref, ln2g_ref, ln2b_ref,
                         o_ref):
    f32 = jnp.float32
    bf16 = jnp.bfloat16
    inv_sqrt_d = f32(1.0 / math.sqrt(HD))

    # ---- embedding lookup, fused in-kernel ----
    # Gather via one-hot x table matmul on the MXU (exact: one-hot entries are
    # 0/1).  Avoids an XLA gather op and the (B, S, H) HBM round trip.
    ids = ids_ref[...]                                             # (B*S, 1) int32
    vocab_iota = lax.broadcasted_iota(jnp.int32, (B * S, VOCAB_PAD), 1)
    onehot = (vocab_iota == ids).astype(bf16)                      # (B*S, VOCAB_PAD)
    emb = jnp.dot(onehot, wemb_ref[...], preferred_element_type=f32)  # (B*S, H)
    emb = emb + pt_ref[...]                                        # + positional/type embeddings

    # Embedding LayerNorm (hidden state lives in registers/VMEM from here on).
    hidden = _layer_norm(emb, emb_g_ref[...], emb_b_ref[...])      # (B*S, H) f32

    # Additive attention bias from the padding mask: computed and broadcast to
    # (S, S) ONCE per batch, reused across all layers and heads.
    bias_rows = (1.0 - mask_ref[...]) * f32(-1e9)                  # (B, S)
    bias_mats = [jnp.broadcast_to(bias_rows[b:b + 1, :], (S, S)) for b in range(B)]

    for l in range(LAYERS):                     # fully unrolled (LAYERS=2)
        h_bf = hidden.astype(bf16)

        # Fused QKV projection: one (B*S, H) x (H, 3H) MXU push; bf16 cast once.
        qkv = jnp.dot(h_bf, wqkv_ref[l],
                      preferred_element_type=f32) + bqkv_ref[l]    # (B*S, 3H) f32
        qkv_bf = qkv.astype(bf16)

        # Multi-head self-attention, batch/heads statically unrolled.
        # Per-head contexts stay in registers; lane-wise concat keeps the
        # output path lane-dense (no masked partial stores, no scratch).
        ctx_rows = []
        for b in range(B):
            row = b * S
            bias_b = bias_mats[b]                                  # (S, S), hoisted
            head_ctx = []
            for n in range(NH):
                q_bn = qkv_bf[row:row + S,          n * HD:(n + 1) * HD]
                k_bn = qkv_bf[row:row + S, H      + n * HD:H + (n + 1) * HD]
                v_bn = qkv_bf[row:row + S, 2 * H  + n * HD:2 * H + (n + 1) * HD]

                # scores: contract the head dim of both operands (no K^T
                # materialized; MXU handles the transposed form).
                s = lax.dot_general(q_bn, k_bn, (((1,), (1,)), ((), ())),
                                    preferred_element_type=f32)    # (S, S)
                s = s * inv_sqrt_d + bias_b
                s = s - jnp.max(s, axis=-1, keepdims=True)
                p = jnp.exp(s)
                p = p * pl.reciprocal(jnp.sum(p, axis=-1, keepdims=True),
                                      approx=True)
                head_ctx.append(jnp.dot(p.astype(bf16), v_bn,
                                        preferred_element_type=f32))   # (S, HD)
            ctx_rows.append(jnp.concatenate(head_ctx, axis=1))     # (S, H) lane concat
        ctx_bf = jnp.concatenate(ctx_rows, axis=0).astype(bf16)    # (B*S, H), one cast

        attn = jnp.dot(ctx_bf, wo_ref[l],
                       preferred_element_type=f32) + bo_ref[l]     # (B*S, H)
        h1 = _layer_norm(hidden + attn, ln1g_ref[l], ln1b_ref[l])

        ffn = jnp.dot(h1.astype(bf16), w1_ref[l],
                      preferred_element_type=f32) + b1_ref[l]      # (B*S, FF)
        ffn = jax.nn.gelu(ffn, approximate=True)
        ffn = jnp.dot(ffn.astype(bf16), w2_ref[l],
                      preferred_element_type=f32) + b2_ref[l]      # (B*S, H)
        hidden = _layer_norm(h1 + ffn, ln2g_ref[l], ln2b_ref[l])

    # CLS rows (token 0 of each sequence): single lane-dense (B, H) store.
    o_ref[...] = jnp.concatenate([hidden[b * S:b * S + 1, :] for b in range(B)],
                                 axis=0)


# ---------------- parameter init (deterministic, synthetic) ----------------

def init_params(key):
    std = 0.02
    keys = iter(jax.random.split(key, 3 + LAYERS * 4))

    def dense(k, shape):  # MXU weights stored in bf16 (f32 accumulation in-kernel)
        return (jax.random.normal(k, shape, jnp.float32) * std).astype(jnp.bfloat16)

    word = jax.random.normal(next(keys), (VOCAB, H), jnp.float32) * std
    word_pad = jnp.zeros((VOCAB_PAD, H), jnp.float32).at[:VOCAB].set(word)
    pos = jax.random.normal(next(keys), (S, H), jnp.float32) * std
    typ = jax.random.normal(next(keys), (2, H), jnp.float32) * std
    pos_type = jnp.tile(pos + typ[0][None, :], (B, 1))             # (B*S, H) f32

    params = {
        "word_emb": word_pad.astype(jnp.bfloat16),                 # (VOCAB_PAD, H) bf16
        "pos_type_emb": pos_type,                                  # (B*S, H) f32
        "emb_ln_g": jnp.ones((1, H), jnp.float32),
        "emb_ln_b": jnp.zeros((1, H), jnp.float32),
    }
    wqkv, wo, w1, w2 = [], [], [], []
    for _ in range(LAYERS):
        wqkv.append(dense(next(keys), (H, 3 * H)))
        wo.append(dense(next(keys), (H, H)))
        w1.append(dense(next(keys), (H, FF)))
        w2.append(dense(next(keys), (FF, H)))
    params.update({
        "wqkv": jnp.stack(wqkv),                                   # (L, H, 3H) bf16
        "bqkv": jnp.zeros((LAYERS, 1, 3 * H), jnp.float32),
        "wo":   jnp.stack(wo),                                     # (L, H, H)  bf16
        "bo":   jnp.zeros((LAYERS, 1, H), jnp.float32),
        "ln1_g": jnp.ones((LAYERS, 1, H), jnp.float32),
        "ln1_b": jnp.zeros((LAYERS, 1, H), jnp.float32),
        "w1":   jnp.stack(w1),                                     # (L, H, FF) bf16
        "b1":   jnp.zeros((LAYERS, 1, FF), jnp.float32),
        "w2":   jnp.stack(w2),                                     # (L, FF, H) bf16
        "b2":   jnp.zeros((LAYERS, 1, H), jnp.float32),
        "ln2_g": jnp.ones((LAYERS, 1, H), jnp.float32),
        "ln2_b": jnp.zeros((LAYERS, 1, H), jnp.float32),
    })
    return params


# ---------------- QuestionEncoder.forward ----------------

def question_encoder_forward(params, input_ids, attn_mask):
    """Returns last_hidden_state[:, 0, :] of the synthetic BERT-like encoder."""
    # Everything — embedding lookup, embed LN, all encoder layers, CLS
    # extraction — is one fused Pallas kernel. Total operand footprint is
    # well under 1 MiB, so no grid / pipelining is needed at this size.
    ids = input_ids.reshape(B * S, 1).astype(jnp.int32)
    mask = attn_mask.astype(jnp.float32)                           # (B, S)

    return pl.pallas_call(
        fused_encoder_kernel,
        out_shape=jax.ShapeDtypeStruct((B, H), jnp.float32),
        # No grid: single invocation, all operands resident in VMEM.
    )(ids, mask,
      params["word_emb"], params["pos_type_emb"],
      params["emb_ln_g"], params["emb_ln_b"],
      params["wqkv"], params["bqkv"], params["wo"], params["bo"],
      params["ln1_g"], params["ln1_b"], params["w1"], params["b1"],
      params["w2"], params["b2"], params["ln2_g"], params["ln2_b"])


if __name__ == "__main__":
    key = jax.random.PRNGKey(0)
    k_param, k_ids = jax.random.split(key)

    params = init_params(k_param)
    input_ids = jax.random.randint(k_ids, (B, S), 0, VOCAB, dtype=jnp.int32)
    # second example padded at the tail
    attn_mask = jnp.concatenate(
        [jnp.ones((1, S), jnp.int32),
         jnp.concatenate([jnp.ones((1, S - 4), jnp.int32),
                          jnp.zeros((1, 4), jnp.int32)], axis=1)], axis=0)

    fwd = jax.jit(question_encoder_forward)
    out = fwd(params, input_ids, attn_mask)
    out = jax.block_until_ready(out)
    assert out.shape == (B, H) and out.dtype == jnp.float32
    assert bool(jnp.all(jnp.isfinite(out)))
    print("KERNEL_OK")
</pallas_src>

<mosaic_0001>
module attributes {stable_mosaic.version = 11 : i64} {
  func.func @fused_encoder_kernel(%arg0: memref<32x1xi32, #tpu.memory_space<vmem>>, %arg1: memref<2x16xf32, #tpu.memory_space<vmem>>, %arg2: memref<128x128xbf16, #tpu.memory_space<vmem>>, %arg3: memref<32x128xf32, #tpu.memory_space<vmem>>, %arg4: memref<1x128xf32, #tpu.memory_space<vmem>>, %arg5: memref<1x128xf32, #tpu.memory_space<vmem>>, %arg6: memref<2x128x384xbf16, #tpu.memory_space<vmem>>, %arg7: memref<2x1x384xf32, #tpu.memory_space<vmem>>, %arg8: memref<2x128x128xbf16, #tpu.memory_space<vmem>>, %arg9: memref<2x1x128xf32, #tpu.memory_space<vmem>>, %arg10: memref<2x1x128xf32, #tpu.memory_space<vmem>>, %arg11: memref<2x1x128xf32, #tpu.memory_space<vmem>>, %arg12: memref<2x128x256xbf16, #tpu.memory_space<vmem>>, %arg13: memref<2x1x256xf32, #tpu.memory_space<vmem>>, %arg14: memref<2x256x128xbf16, #tpu.memory_space<vmem>>, %arg15: memref<2x1x128xf32, #tpu.memory_space<vmem>>, %arg16: memref<2x1x128xf32, #tpu.memory_space<vmem>>, %arg17: memref<2x1x128xf32, #tpu.memory_space<vmem>>, %arg18: memref<2x128xf32, #tpu.memory_space<vmem>>) attributes {dimension_semantics = [], scalar_prefetch = 0 : i64, scratch_operands = 0 : i64, tpu.core_type = #tpu.core_type<tc>} {
    %c0 = arith.constant 0 : index
    %c0_0 = arith.constant 0 : index
    %0 = vector.load %arg0[%c0, %c0_0] : memref<32x1xi32, #tpu.memory_space<vmem>>, vector<32x1xi32>
    %1 = tpu.iota {dimensions = array<i32: 1>} : vector<32x128xi32>
    %2 = vector.broadcast %0 : vector<32x1xi32> to vector<32x128xi32>
    %3 = arith.cmpi eq, %1, %2 : vector<32x128xi32>
    %4 = arith.extui %3 : vector<32x128xi1> to vector<32x128xi32>
    %5 = arith.sitofp %4 : vector<32x128xi32> to vector<32x128xf32>
    %6 = arith.truncf %5 : vector<32x128xf32> to vector<32x128xbf16>
    %c0_1 = arith.constant 0 : index
    %c0_2 = arith.constant 0 : index
    %7 = vector.load %arg2[%c0_1, %c0_2] : memref<128x128xbf16, #tpu.memory_space<vmem>>, vector<128x128xbf16>
    %cst = arith.constant dense<0.000000e+00> : vector<32x128xf32>
    %8 = tpu.matmul %6, %7, %cst {dimension_numbers = #tpu.dot_dimension_numbers<[1], [0], [0], [1], [0, 0, 1, 1], [], []>} : vector<32x128xbf16>, vector<128x128xbf16>, vector<32x128xf32> -> vector<32x128xf32>
    %c0_3 = arith.constant 0 : index
    %c0_4 = arith.constant 0 : index
    %9 = vector.load %arg3[%c0_3, %c0_4] : memref<32x128xf32, #tpu.memory_space<vmem>>, vector<32x128xf32>
    %10 = arith.addf %8, %9 : vector<32x128xf32>
    %c0_5 = arith.constant 0 : index
    %c0_6 = arith.constant 0 : index
    %11 = vector.load %arg4[%c0_5, %c0_6] : memref<1x128xf32, #tpu.memory_space<vmem>>, vector<1x128xf32>
    %c0_7 = arith.constant 0 : index
    %c0_8 = arith.constant 0 : index
    %12 = vector.load %arg5[%c0_7, %c0_8] : memref<1x128xf32, #tpu.memory_space<vmem>>, vector<1x128xf32>
    %cst_9 = arith.constant dense<0.000000e+00> : vector<32xf32>
    %13 = vector.multi_reduction <add>, %10, %cst_9 [1] : vector<32x128xf32> to vector<32xf32>
    %14 = vector.shape_cast %13 : vector<32xf32> to vector<32x1xf32>
    %cst_10 = arith.constant 1.280000e+02 : f32
    %15 = vector.broadcast %cst_10 : f32 to vector<32x1xf32>
    %16 = arith.divf %14, %15 : vector<32x1xf32>
    %17 = vector.broadcast %16 : vector<32x1xf32> to vector<32x128xf32>
    %18 = arith.subf %10, %17 : vector<32x128xf32>
    %19 = arith.mulf %18, %18 : vector<32x128xf32>
    %cst_11 = arith.constant dense<0.000000e+00> : vector<32xf32>
    %20 = vector.multi_reduction <add>, %19, %cst_11 [1] : vector<32x128xf32> to vector<32xf32>
    %21 = vector.shape_cast %20 : vector<32xf32> to vector<32x1xf32>
    %cst_12 = arith.constant 1.280000e+02 : f32
    %22 = vector.broadcast %cst_12 : f32 to vector<32x1xf32>
    %23 = arith.divf %21, %22 : vector<32x1xf32>
    %24 = vector.broadcast %16 : vector<32x1xf32> to vector<32x128xf32>
    %25 = arith.subf %10, %24 : vector<32x128xf32>
    %cst_13 = arith.constant 9.99999996E-13 : f32
    %26 = vector.broadcast %cst_13 : f32 to vector<32x1xf32>
    %27 = arith.addf %23, %26 : vector<32x1xf32>
    %28 = math.rsqrt %27 : vector<32x1xf32>
    %29 = vector.broadcast %28 : vector<32x1xf32> to vector<32x128xf32>
    %30 = arith.mulf %25, %29 : vector<32x128xf32>
    %31 = vector.broadcast %11 : vector<1x128xf32> to vector<32x128xf32>
    %32 = arith.mulf %30, %31 : vector<32x128xf32>
    %33 = vector.broadcast %12 : vector<1x128xf32> to vector<32x128xf32>
    %34 = arith.addf %32, %33 : vector<32x128xf32>
    %c0_14 = arith.constant 0 : index
    %c0_15 = arith.constant 0 : index
    %35 = vector.load %arg1[%c0_14, %c0_15] : memref<2x16xf32, #tpu.memory_space<vmem>>, vector<2x16xf32>
    %cst_16 = arith.constant 1.000000e+00 : f32
    %36 = vector.broadcast %cst_16 : f32 to vector<2x16xf32>
    %37 = arith.subf %36, %35 : vector<2x16xf32>
    %cst_17 = arith.constant -1.000000e+09 : f32
    %38 = vector.broadcast %cst_17 : f32 to vector<2x16xf32>
    %39 = arith.mulf %37, %38 : vector<2x16xf32>
    %40 = vector.extract_strided_slice %39 {offsets = [0, 0], sizes = [1, 16], strides = [1, 1]} : vector<2x16xf32> to vector<1x16xf32>
    %41 = vector.shape_cast %40 : vector<1x16xf32> to vector<1x16xf32>
    %42 = vector.broadcast %41 : vector<1x16xf32> to vector<16x16xf32>
    %43 = vector.extract_strided_slice %39 {offsets = [1, 0], sizes = [1, 16], strides = [1, 1]} : vector<2x16xf32> to vector<1x16xf32>
    %44 = vector.shape_cast %43 : vector<1x16xf32> to vector<1x16xf32>
    %45 = vector.broadcast %44 : vector<1x16xf32> to vector<16x16xf32>
    %46 = arith.truncf %34 : vector<32x128xf32> to vector<32x128xbf16>
    %c0_18 = arith.constant 0 : index
    %c0_19 = arith.constant 0 : index
    %c0_20 = arith.constant 0 : index
    %47 = vector.load %arg6[%c0_18, %c0_19, %c0_20] : memref<2x128x384xbf16, #tpu.memory_space<vmem>>, vector<1x128x384xbf16>
    %48 = vector.shape_cast %47 : vector<1x128x384xbf16> to vector<128x384xbf16>
    %cst_21 = arith.constant dense<0.000000e+00> : vector<32x384xf32>
    %49 = tpu.matmul %46, %48, %cst_21 {dimension_numbers = #tpu.dot_dimension_numbers<[1], [0], [0], [1], [0, 0, 1, 1], [], []>} : vector<32x128xbf16>, vector<128x384xbf16>, vector<32x384xf32> -> vector<32x384xf32>
    %c0_22 = arith.constant 0 : index
    %c0_23 = arith.constant 0 : index
    %c0_24 = arith.constant 0 : index
    %50 = vector.load %arg7[%c0_22, %c0_23, %c0_24] : memref<2x1x384xf32, #tpu.memory_space<vmem>>, vector<1x1x384xf32>
    %51 = vector.shape_cast %50 : vector<1x1x384xf32> to vector<1x384xf32>
    %52 = vector.broadcast %51 : vector<1x384xf32> to vector<32x384xf32>
    %53 = arith.addf %49, %52 : vector<32x384xf32>
    %54 = arith.truncf %53 : vector<32x384xf32> to vector<32x384xbf16>
    %55 = vector.extract_strided_slice %54 {offsets = [0, 0], sizes = [16, 64], strides = [1, 1]} : vector<32x384xbf16> to vector<16x64xbf16>
    %56 = vector.extract_strided_slice %54 {offsets = [0, 128], sizes = [16, 64], strides = [1, 1]} : vector<32x384xbf16> to vector<16x64xbf16>
    %57 = vector.extract_strided_slice %54 {offsets = [0, 256], sizes = [16, 64], strides = [1, 1]} : vector<32x384xbf16> to vector<16x64xbf16>
    %cst_25 = arith.constant dense<0.000000e+00> : vector<16x16xf32>
    %58 = tpu.matmul %55, %56, %cst_25 {dimension_numbers = #tpu.dot_dimension_numbers<[1], [1], [0], [0], [0, 0, 1, 0], [], []>} : vector<16x64xbf16>, vector<16x64xbf16>, vector<16x16xf32> -> vector<16x16xf32>
    %cst_26 = arith.constant 1.250000e-01 : f32
    %59 = vector.broadcast %cst_26 : f32 to vector<16x16xf32>
    %60 = arith.mulf %58, %59 : vector<16x16xf32>
    %61 = arith.addf %60, %42 : vector<16x16xf32>
    %cst_27 = arith.constant dense<0xFF800000> : vector<16xf32>
    %62 = vector.multi_reduction <maximumf>, %61, %cst_27 [1] : vector<16x16xf32> to vector<16xf32>
    %63 = vector.shape_cast %62 : vector<16xf32> to vector<16x1xf32>
    %64 = vector.broadcast %63 : vector<16x1xf32> to vector<16x16xf32>
    %65 = arith.subf %61, %64 : vector<16x16xf32>
    %66 = math.exp %65 : vector<16x16xf32>
    %cst_28 = arith.constant dense<0.000000e+00> : vector<16xf32>
    %67 = vector.multi_reduction <add>, %66, %cst_28 [1] : vector<16x16xf32> to vector<16xf32>
    %68 = vector.shape_cast %67 : vector<16xf32> to vector<16x1xf32>
    %69 = tpu.reciprocal %68 {approx = true} : vector<16x1xf32> -> vector<16x1xf32>
    %70 = vector.broadcast %69 : vector<16x1xf32> to vector<16x16xf32>
    %71 = arith.mulf %66, %70 : vector<16x16xf32>
    %72 = arith.truncf %71 : vector<16x16xf32> to vector<16x16xbf16>
    %cst_29 = arith.constant dense<0.000000e+00> : vector<16x64xf32>
    %73 = tpu.matmul %72, %57, %cst_29 {dimension_numbers = #tpu.dot_dimension_numbers<[1], [0], [0], [1], [0, 0, 1, 1], [], []>} : vector<16x16xbf16>, vector<16x64xbf16>, vector<16x64xf32> -> vector<16x64xf32>
    %74 = vector.extract_strided_slice %54 {offsets = [0, 64], sizes = [16, 64], strides = [1, 1]} : vector<32x384xbf16> to vector<16x64xbf16>
    %75 = vector.extract_strided_slice %54 {offsets = [0, 192], sizes = [16, 64], strides = [1, 1]} : vector<32x384xbf16> to vector<16x64xbf16>
    %76 = vector.extract_strided_slice %54 {offsets = [0, 320], sizes = [16, 64], strides = [1, 1]} : vector<32x384xbf16> to vector<16x64xbf16>
    %cst_30 = arith.constant dense<0.000000e+00> : vector<16x16xf32>
    %77 = tpu.matmul %74, %75, %cst_30 {dimension_numbers = #tpu.dot_dimension_numbers<[1], [1], [0], [0], [0, 0, 1, 0], [], []>} : vector<16x64xbf16>, vector<16x64xbf16>, vector<16x16xf32> -> vector<16x16xf32>
    %cst_31 = arith.constant 1.250000e-01 : f32
    %78 = vector.broadcast %cst_31 : f32 to vector<16x16xf32>
    %79 = arith.mulf %77, %78 : vector<16x16xf32>
    %80 = arith.addf %79, %42 : vector<16x16xf32>
    %cst_32 = arith.constant dense<0xFF800000> : vector<16xf32>
    %81 = vector.multi_reduction <maximumf>, %80, %cst_32 [1] : vector<16x16xf32> to vector<16xf32>
    %82 = vector.shape_cast %81 : vector<16xf32> to vector<16x1xf32>
    %83 = vector.broadcast %82 : vector<16x1xf32> to vector<16x16xf32>
    %84 = arith.subf %80, %83 : vector<16x16xf32>
    %85 = math.exp %84 : vector<16x16xf32>
    %cst_33 = arith.constant dense<0.000000e+00> : vector<16xf32>
    %86 = vector.multi_reduction <add>, %85, %cst_33 [1] : vector<16x16xf32> to vector<16xf32>
    %87 = vector.shape_cast %86 : vector<16xf32> to vector<16x1xf32>
    %88 = tpu.reciprocal %87 {approx = true} : vector<16x1xf32> -> vector<16x1xf32>
    %89 = vector.broadcast %88 : vector<16x1xf32> to vector<16x16xf32>
    %90 = arith.mulf %85, %89 : vector<16x16xf32>
    %91 = arith.truncf %90 : vector<16x16xf32> to vector<16x16xbf16>
    %cst_34 = arith.constant dense<0.000000e+00> : vector<16x64xf32>
    %92 = tpu.matmul %91, %76, %cst_34 {dimension_numbers = #tpu.dot_dimension_numbers<[1], [0], [0], [1], [0, 0, 1, 1], [], []>} : vector<16x16xbf16>, vector<16x64xbf16>, vector<16x64xf32> -> vector<16x64xf32>
    %93 = tpu.concatenate %73, %92 in 1 : vector<16x64xf32>, vector<16x64xf32> -> vector<16x128xf32>
    %94 = vector.extract_strided_slice %54 {offsets = [16, 0], sizes = [16, 64], strides = [1, 1]} : vector<32x384xbf16> to vector<16x64xbf16>
    %95 = vector.extract_strided_slice %54 {offsets = [16, 128], sizes = [16, 64], strides = [1, 1]} : vector<32x384xbf16> to vector<16x64xbf16>
    %96 = vector.extract_strided_slice %54 {offsets = [16, 256], sizes = [16, 64], strides = [1, 1]} : vector<32x384xbf16> to vector<16x64xbf16>
    %cst_35 = arith.constant dense<0.000000e+00> : vector<16x16xf32>
    %97 = tpu.matmul %94, %95, %cst_35 {dimension_numbers = #tpu.dot_dimension_numbers<[1], [1], [0], [0], [0, 0, 1, 0], [], []>} : vector<16x64xbf16>, vector<16x64xbf16>, vector<16x16xf32> -> vector<16x16xf32>
    %cst_36 = arith.constant 1.250000e-01 : f32
    %98 = vector.broadcast %cst_36 : f32 to vector<16x16xf32>
    %99 = arith.mulf %97, %98 : vector<16x16xf32>
    %100 = arith.addf %99, %45 : vector<16x16xf32>
    %cst_37 = arith.constant dense<0xFF800000> : vector<16xf32>
    %101 = vector.multi_reduction <maximumf>, %100, %cst_37 [1] : vector<16x16xf32> to vector<16xf32>
    %102 = vector.shape_cast %101 : vector<16xf32> to vector<16x1xf32>
    %103 = vector.broadcast %102 : vector<16x1xf32> to vector<16x16xf32>
    %104 = arith.subf %100, %103 : vector<16x16xf32>
    %105 = math.exp %104 : vector<16x16xf32>
    %cst_38 = arith.constant dense<0.000000e+00> : vector<16xf32>
    %106 = vector.multi_reduction <add>, %105, %cst_38 [1] : vector<16x16xf32> to vector<16xf32>
    %107 = vector.shape_cast %106 : vector<16xf32> to vector<16x1xf32>
    %108 = tpu.reciprocal %107 {approx = true} : vector<16x1xf32> -> vector<16x1xf32>
    %109 = vector.broadcast %108 : vector<16x1xf32> to vector<16x16xf32>
    %110 = arith.mulf %105, %109 : vector<16x16xf32>
    %111 = arith.truncf %110 : vector<16x16xf32> to vector<16x16xbf16>
    %cst_39 = arith.constant dense<0.000000e+00> : vector<16x64xf32>
    %112 = tpu.matmul %111, %96, %cst_39 {dimension_numbers = #tpu.dot_dimension_numbers<[1], [0], [0], [1], [0, 0, 1, 1], [], []>} : vector<16x16xbf16>, vector<16x64xbf16>, vector<16x64xf32> -> vector<16x64xf32>
    %113 = vector.extract_strided_slice %54 {offsets = [16, 64], sizes = [16, 64], strides = [1, 1]} : vector<32x384xbf16> to vector<16x64xbf16>
    %114 = vector.extract_strided_slice %54 {offsets = [16, 192], sizes = [16, 64], strides = [1, 1]} : vector<32x384xbf16> to vector<16x64xbf16>
    %115 = vector.extract_strided_slice %54 {offsets = [16, 320], sizes = [16, 64], strides = [1, 1]} : vector<32x384xbf16> to vector<16x64xbf16>
    %cst_40 = arith.constant dense<0.000000e+00> : vector<16x16xf32>
    %116 = tpu.matmul %113, %114, %cst_40 {dimension_numbers = #tpu.dot_dimension_numbers<[1], [1], [0], [0], [0, 0, 1, 0], [], []>} : vector<16x64xbf16>, vector<16x64xbf16>, vector<16x16xf32> -> vector<16x16xf32>
    %cst_41 = arith.constant 1.250000e-01 : f32
    %117 = vector.broadcast %cst_41 : f32 to vector<16x16xf32>
    %118 = arith.mulf %116, %117 : vector<16x16xf32>
    %119 = arith.addf %118, %45 : vector<16x16xf32>
    %cst_42 = arith.constant dense<0xFF800000> : vector<16xf32>
    %120 = vector.multi_reduction <maximumf>, %119, %cst_42 [1] : vector<16x16xf32> to vector<16xf32>
    %121 = vector.shape_cast %120 : vector<16xf32> to vector<16x1xf32>
    %122 = vector.broadcast %121 : vector<16x1xf32> to vector<16x16xf32>
    %123 = arith.subf %119, %122 : vector<16x16xf32>
    %124 = math.exp %123 : vector<16x16xf32>
    %cst_43 = arith.constant dense<0.000000e+00> : vector<16xf32>
    %125 = vector.multi_reduction <add>, %124, %cst_43 [1] : vector<16x16xf32> to vector<16xf32>
    %126 = vector.shape_cast %125 : vector<16xf32> to vector<16x1xf32>
    %127 = tpu.reciprocal %126 {approx = true} : vector<16x1xf32> -> vector<16x1xf32>
    %128 = vector.broadcast %127 : vector<16x1xf32> to vector<16x16xf32>
    %129 = arith.mulf %124, %128 : vector<16x16xf32>
    %130 = arith.truncf %129 : vector<16x16xf32> to vector<16x16xbf16>
    %cst_44 = arith.constant dense<0.000000e+00> : vector<16x64xf32>
    %131 = tpu.matmul %130, %115, %cst_44 {dimension_numbers = #tpu.dot_dimension_numbers<[1], [0], [0], [1], [0, 0, 1, 1], [], []>} : vector<16x16xbf16>, vector<16x64xbf16>, vector<16x64xf32> -> vector<16x64xf32>
    %132 = tpu.concatenate %112, %131 in 1 : vector<16x64xf32>, vector<16x64xf32> -> vector<16x128xf32>
    %133 = tpu.concatenate %93, %132 in 0 : vector<16x128xf32>, vector<16x128xf32> -> vector<32x128xf32>
    %134 = arith.truncf %133 : vector<32x128xf32> to vector<32x128xbf16>
    %c0_45 = arith.constant 0 : index
    %c0_46 = arith.constant 0 : index
    %c0_47 = arith.constant 0 : index
    %135 = vector.load %arg8[%c0_45, %c0_46, %c0_47] : memref<2x128x128xbf16, #tpu.memory_space<vmem>>, vector<1x128x128xbf16>
    %136 = vector.shape_cast %135 : vector<1x128x128xbf16> to vector<128x128xbf16>
    %cst_48 = arith.constant dense<0.000000e+00> : vector<32x128xf32>
    %137 = tpu.matmul %134, %136, %cst_48 {dimension_numbers = #tpu.dot_dimension_numbers<[1], [0], [0], [1], [0, 0, 1, 1], [], []>} : vector<32x128xbf16>, vector<128x128xbf16>, vector<32x128xf32> -> vector<32x128xf32>
    %c0_49 = arith.constant 0 : index
    %c0_50 = arith.constant 0 : index
    %c0_51 = arith.constant 0 : index
    %138 = vector.load %arg9[%c0_49, %c0_50, %c0_51] : memref<2x1x128xf32, #tpu.memory_space<vmem>>, vector<1x1x128xf32>
    %139 = vector.shape_cast %138 : vector<1x1x128xf32> to vector<1x128xf32>
    %140 = vector.broadcast %139 : vector<1x128xf32> to vector<32x128xf32>
    %141 = arith.addf %137, %140 : vector<32x128xf32>
    %142 = arith.addf %34, %141 : vector<32x128xf32>
    %c0_52 = arith.constant 0 : index
    %c0_53 = arith.constant 0 : index
    %c0_54 = arith.constant 0 : index
    %143 = vector.load %arg10[%c0_52, %c0_53, %c0_54] : memref<2x1x128xf32, #tpu.memory_space<vmem>>, vector<1x1x128xf32>
    %144 = vector.shape_cast %143 : vector<1x1x128xf32> to vector<1x128xf32>
    %c0_55 = arith.constant 0 : index
    %c0_56 = arith.constant 0 : index
    %c0_57 = arith.constant 0 : index
    %145 = vector.load %arg11[%c0_55, %c0_56, %c0_57] : memref<2x1x128xf32, #tpu.memory_space<vmem>>, vector<1x1x128xf32>
    %146 = vector.shape_cast %145 : vector<1x1x128xf32> to vector<1x128xf32>
    %cst_58 = arith.constant dense<0.000000e+00> : vector<32xf32>
    %147 = vector.multi_reduction <add>, %142, %cst_58 [1] : vector<32x128xf32> to vector<32xf32>
    %148 = vector.shape_cast %147 : vector<32xf32> to vector<32x1xf32>
    %cst_59 = arith.constant 1.280000e+02 : f32
    %149 = vector.broadcast %cst_59 : f32 to vector<32x1xf32>
    %150 = arith.divf %148, %149 : vector<32x1xf32>
    %151 = vector.broadcast %150 : vector<32x1xf32> to vector<32x128xf32>
    %152 = arith.subf %142, %151 : vector<32x128xf32>
    %153 = arith.mulf %152, %152 : vector<32x128xf32>
    %cst_60 = arith.constant dense<0.000000e+00> : vector<32xf32>
    %154 = vector.multi_reduction <add>, %153, %cst_60 [1] : vector<32x128xf32> to vector<32xf32>
    %155 = vector.shape_cast %154 : vector<32xf32> to vector<32x1xf32>
    %cst_61 = arith.constant 1.280000e+02 : f32
    %156 = vector.broadcast %cst_61 : f32 to vector<32x1xf32>
    %157 = arith.divf %155, %156 : vector<32x1xf32>
    %158 = vector.broadcast %150 : vector<32x1xf32> to vector<32x128xf32>
    %159 = arith.subf %142, %158 : vector<32x128xf32>
    %cst_62 = arith.constant 9.99999996E-13 : f32
    %160 = vector.broadcast %cst_62 : f32 to vector<32x1xf32>
    %161 = arith.addf %157, %160 : vector<32x1xf32>
    %162 = math.rsqrt %161 : vector<32x1xf32>
    %163 = vector.broadcast %162 : vector<32x1xf32> to vector<32x128xf32>
    %164 = arith.mulf %159, %163 : vector<32x128xf32>
    %165 = vector.broadcast %144 : vector<1x128xf32> to vector<32x128xf32>
    %166 = arith.mulf %164, %165 : vector<32x128xf32>
    %167 = vector.broadcast %146 : vector<1x128xf32> to vector<32x128xf32>
    %168 = arith.addf %166, %167 : vector<32x128xf32>
    %169 = arith.truncf %168 : vector<32x128xf32> to vector<32x128xbf16>
    %c0_63 = arith.constant 0 : index
    %c0_64 = arith.constant 0 : index
    %c0_65 = arith.constant 0 : index
    %170 = vector.load %arg12[%c0_63, %c0_64, %c0_65] : memref<2x128x256xbf16, #tpu.memory_space<vmem>>, vector<1x128x256xbf16>
    %171 = vector.shape_cast %170 : vector<1x128x256xbf16> to vector<128x256xbf16>
    %cst_66 = arith.constant dense<0.000000e+00> : vector<32x256xf32>
    %172 = tpu.matmul %169, %171, %cst_66 {dimension_numbers = #tpu.dot_dimension_numbers<[1], [0], [0], [1], [0, 0, 1, 1], [], []>} : vector<32x128xbf16>, vector<128x256xbf16>, vector<32x256xf32> -> vector<32x256xf32>
    %c0_67 = arith.constant 0 : index
    %c0_68 = arith.constant 0 : index
    %c0_69 = arith.constant 0 : index
    %173 = vector.load %arg13[%c0_67, %c0_68, %c0_69] : memref<2x1x256xf32, #tpu.memory_space<vmem>>, vector<1x1x256xf32>
    %174 = vector.shape_cast %173 : vector<1x1x256xf32> to vector<1x256xf32>
    %175 = vector.broadcast %174 : vector<1x256xf32> to vector<32x256xf32>
    %176 = arith.addf %172, %175 : vector<32x256xf32>
    %177 = arith.mulf %176, %176 : vector<32x256xf32>
    %178 = arith.mulf %176, %177 : vector<32x256xf32>
    %cst_70 = arith.constant 4.471500e-02 : f32
    %179 = vector.broadcast %cst_70 : f32 to vector<32x256xf32>
    %180 = arith.mulf %179, %178 : vector<32x256xf32>
    %181 = arith.addf %176, %180 : vector<32x256xf32>
    %cst_71 = arith.constant 0.797884583 : f32
    %182 = vector.broadcast %cst_71 : f32 to vector<32x256xf32>
    %183 = arith.mulf %182, %181 : vector<32x256xf32>
    %184 = math.tanh %183 : vector<32x256xf32>
    %cst_72 = arith.constant 1.000000e+00 : f32
    %185 = vector.broadcast %cst_72 : f32 to vector<32x256xf32>
    %186 = arith.addf %185, %184 : vector<32x256xf32>
    %cst_73 = arith.constant 5.000000e-01 : f32
    %187 = vector.broadcast %cst_73 : f32 to vector<32x256xf32>
    %188 = arith.mulf %187, %186 : vector<32x256xf32>
    %189 = arith.mulf %176, %188 : vector<32x256xf32>
    %190 = arith.truncf %189 : vector<32x256xf32> to vector<32x256xbf16>
    %c0_74 = arith.constant 0 : index
    %c0_75 = arith.constant 0 : index
    %c0_76 = arith.constant 0 : index
    %191 = vector.load %arg14[%c0_74, %c0_75, %c0_76] : memref<2x256x128xbf16, #tpu.memory_space<vmem>>, vector<1x256x128xbf16>
    %192 = vector.shape_cast %191 : vector<1x256x128xbf16> to vector<256x128xbf16>
    %cst_77 = arith.constant dense<0.000000e+00> : vector<32x128xf32>
    %193 = tpu.matmul %190, %192, %cst_77 {dimension_numbers = #tpu.dot_dimension_numbers<[1], [0], [0], [1], [0, 0, 1, 1], [], []>} : vector<32x256xbf16>, vector<256x128xbf16>, vector<32x128xf32> -> vector<32x128xf32>
    %c0_78 = arith.constant 0 : index
    %c0_79 = arith.constant 0 : index
    %c0_80 = arith.constant 0 : index
    %194 = vector.load %arg15[%c0_78, %c0_79, %c0_80] : memref<2x1x128xf32, #tpu.memory_space<vmem>>, vector<1x1x128xf32>
    %195 = vector.shape_cast %194 : vector<1x1x128xf32> to vector<1x128xf32>
    %196 = vector.broadcast %195 : vector<1x128xf32> to vector<32x128xf32>
    %197 = arith.addf %193, %196 : vector<32x128xf32>
    %198 = arith.addf %168, %197 : vector<32x128xf32>
    %c0_81 = arith.constant 0 : index
    %c0_82 = arith.constant 0 : index
    %c0_83 = arith.constant 0 : index
    %199 = vector.load %arg16[%c0_81, %c0_82, %c0_83] : memref<2x1x128xf32, #tpu.memory_space<vmem>>, vector<1x1x128xf32>
    %200 = vector.shape_cast %199 : vector<1x1x128xf32> to vector<1x128xf32>
    %c0_84 = arith.constant 0 : index
    %c0_85 = arith.constant 0 : index
    %c0_86 = arith.constant 0 : index
    %201 = vector.load %arg17[%c0_84, %c0_85, %c0_86] : memref<2x1x128xf32, #tpu.memory_space<vmem>>, vector<1x1x128xf32>
    %202 = vector.shape_cast %201 : vector<1x1x128xf32> to vector<1x128xf32>
    %cst_87 = arith.constant dense<0.000000e+00> : vector<32xf32>
    %203 = vector.multi_reduction <add>, %198, %cst_87 [1] : vector<32x128xf32> to vector<32xf32>
    %204 = vector.shape_cast %203 : vector<32xf32> to vector<32x1xf32>
    %cst_88 = arith.constant 1.280000e+02 : f32
    %205 = vector.broadcast %cst_88 : f32 to vector<32x1xf32>
    %206 = arith.divf %204, %205 : vector<32x1xf32>
    %207 = vector.broadcast %206 : vector<32x1xf32> to vector<32x128xf32>
    %208 = arith.subf %198, %207 : vector<32x128xf32>
    %209 = arith.mulf %208, %208 : vector<32x128xf32>
    %cst_89 = arith.constant dense<0.000000e+00> : vector<32xf32>
    %210 = vector.multi_reduction <add>, %209, %cst_89 [1] : vector<32x128xf32> to vector<32xf32>
    %211 = vector.shape_cast %210 : vector<32xf32> to vector<32x1xf32>
    %cst_90 = arith.constant 1.280000e+02 : f32
    %212 = vector.broadcast %cst_90 : f32 to vector<32x1xf32>
    %213 = arith.divf %211, %212 : vector<32x1xf32>
    %214 = vector.broadcast %206 : vector<32x1xf32> to vector<32x128xf32>
    %215 = arith.subf %198, %214 : vector<32x128xf32>
    %cst_91 = arith.constant 9.99999996E-13 : f32
    %216 = vector.broadcast %cst_91 : f32 to vector<32x1xf32>
    %217 = arith.addf %213, %216 : vector<32x1xf32>
    %218 = math.rsqrt %217 : vector<32x1xf32>
    %219 = vector.broadcast %218 : vector<32x1xf32> to vector<32x128xf32>
    %220 = arith.mulf %215, %219 : vector<32x128xf32>
    %221 = vector.broadcast %200 : vector<1x128xf32> to vector<32x128xf32>
    %222 = arith.mulf %220, %221 : vector<32x128xf32>
    %223 = vector.broadcast %202 : vector<1x128xf32> to vector<32x128xf32>
    %224 = arith.addf %222, %223 : vector<32x128xf32>
    %225 = arith.truncf %224 : vector<32x128xf32> to vector<32x128xbf16>
    %c1 = arith.constant 1 : index
    %c0_92 = arith.constant 0 : index
    %c0_93 = arith.constant 0 : index
    %226 = vector.load %arg6[%c1, %c0_92, %c0_93] : memref<2x128x384xbf16, #tpu.memory_space<vmem>>, vector<1x128x384xbf16>
    %227 = vector.shape_cast %226 : vector<1x128x384xbf16> to vector<128x384xbf16>
    %cst_94 = arith.constant dense<0.000000e+00> : vector<32x384xf32>
    %228 = tpu.matmul %225, %227, %cst_94 {dimension_numbers = #tpu.dot_dimension_numbers<[1], [0], [0], [1], [0, 0, 1, 1], [], []>} : vector<32x128xbf16>, vector<128x384xbf16>, vector<32x384xf32> -> vector<32x384xf32>
    %c1_95 = arith.constant 1 : index
    %c0_96 = arith.constant 0 : index
    %c0_97 = arith.constant 0 : index
    %229 = vector.load %arg7[%c1_95, %c0_96, %c0_97] : memref<2x1x384xf32, #tpu.memory_space<vmem>>, vector<1x1x384xf32>
    %230 = vector.shape_cast %229 : vector<1x1x384xf32> to vector<1x384xf32>
    %231 = vector.broadcast %230 : vector<1x384xf32> to vector<32x384xf32>
    %232 = arith.addf %228, %231 : vector<32x384xf32>
    %233 = arith.truncf %232 : vector<32x384xf32> to vector<32x384xbf16>
    %234 = vector.extract_strided_slice %233 {offsets = [0, 0], sizes = [16, 64], strides = [1, 1]} : vector<32x384xbf16> to vector<16x64xbf16>
    %235 = vector.extract_strided_slice %233 {offsets = [0, 128], sizes = [16, 64], strides = [1, 1]} : vector<32x384xbf16> to vector<16x64xbf16>
    %236 = vector.extract_strided_slice %233 {offsets = [0, 256], sizes = [16, 64], strides = [1, 1]} : vector<32x384xbf16> to vector<16x64xbf16>
    %cst_98 = arith.constant dense<0.000000e+00> : vector<16x16xf32>
    %237 = tpu.matmul %234, %235, %cst_98 {dimension_numbers = #tpu.dot_dimension_numbers<[1], [1], [0], [0], [0, 0, 1, 0], [], []>} : vector<16x64xbf16>, vector<16x64xbf16>, vector<16x16xf32> -> vector<16x16xf32>
    %cst_99 = arith.constant 1.250000e-01 : f32
    %238 = vector.broadcast %cst_99 : f32 to vector<16x16xf32>
    %239 = arith.mulf %237, %238 : vector<16x16xf32>
    %240 = arith.addf %239, %42 : vector<16x16xf32>
    %cst_100 = arith.constant dense<0xFF800000> : vector<16xf32>
    %241 = vector.multi_reduction <maximumf>, %240, %cst_100 [1] : vector<16x16xf32> to vector<16xf32>
    %242 = vector.shape_cast %241 : vector<16xf32> to vector<16x1xf32>
    %243 = vector.broadcast %242 : vector<16x1xf32> to vector<16x16xf32>
    %244 = arith.subf %240, %243 : vector<16x16xf32>
    %245 = math.exp %244 : vector<16x16xf32>
    %cst_101 = arith.constant dense<0.000000e+00> : vector<16xf32>
    %246 = vector.multi_reduction <add>, %245, %cst_101 [1] : vector<16x16xf32> to vector<16xf32>
    %247 = vector.shape_cast %246 : vector<16xf32> to vector<16x1xf32>
    %248 = tpu.reciprocal %247 {approx = true} : vector<16x1xf32> -> vector<16x1xf32>
    %249 = vector.broadcast %248 : vector<16x1xf32> to vector<16x16xf32>
    %250 = arith.mulf %245, %249 : vector<16x16xf32>
    %251 = arith.truncf %250 : vector<16x16xf32> to vector<16x16xbf16>
    %cst_102 = arith.constant dense<0.000000e+00> : vector<16x64xf32>
    %252 = tpu.matmul %251, %236, %cst_102 {dimension_numbers = #tpu.dot_dimension_numbers<[1], [0], [0], [1], [0, 0, 1, 1], [], []>} : vector<16x16xbf16>, vector<16x64xbf16>, vector<16x64xf32> -> vector<16x64xf32>
    %253 = vector.extract_strided_slice %233 {offsets = [0, 64], sizes = [16, 64], strides = [1, 1]} : vector<32x384xbf16> to vector<16x64xbf16>
    %254 = vector.extract_strided_slice %233 {offsets = [0, 192], sizes = [16, 64], strides = [1, 1]} : vector<32x384xbf16> to vector<16x64xbf16>
    %255 = vector.extract_strided_slice %233 {offsets = [0, 320], sizes = [16, 64], strides = [1, 1]} : vector<32x384xbf16> to vector<16x64xbf16>
    %cst_103 = arith.constant dense<0.000000e+00> : vector<16x16xf32>
    %256 = tpu.matmul %253, %254, %cst_103 {dimension_numbers = #tpu.dot_dimension_numbers<[1], [1], [0], [0], [0, 0, 1, 0], [], []>} : vector<16x64xbf16>, vector<16x64xbf16>, vector<16x16xf32> -> vector<16x16xf32>
    %cst_104 = arith.constant 1.250000e-01 : f32
    %257 = vector.broadcast %cst_104 : f32 to vector<16x16xf32>
    %258 = arith.mulf %256, %257 : vector<16x16xf32>
    %259 = arith.addf %258, %42 : vector<16x16xf32>
    %cst_105 = arith.constant dense<0xFF800000> : vector<16xf32>
    %260 = vector.multi_reduction <maximumf>, %259, %cst_105 [1] : vector<16x16xf32> to vector<16xf32>
    %261 = vector.shape_cast %260 : vector<16xf32> to vector<16x1xf32>
    %262 = vector.broadcast %261 : vector<16x1xf32> to vector<16x16xf32>
    %263 = arith.subf %259, %262 : vector<16x16xf32>
    %264 = math.exp %263 : vector<16x16xf32>
    %cst_106 = arith.constant dense<0.000000e+00> : vector<16xf32>
    %265 = vector.multi_reduction <add>, %264, %cst_106 [1] : vector<16x16xf32> to vector<16xf32>
    %266 = vector.shape_cast %265 : vector<16xf32> to vector<16x1xf32>
    %267 = tpu.reciprocal %266 {approx = true} : vector<16x1xf32> -> vector<16x1xf32>
    %268 = vector.broadcast %267 : vector<16x1xf32> to vector<16x16xf32>
    %269 = arith.mulf %264, %268 : vector<16x16xf32>
    %270 = arith.truncf %269 : vector<16x16xf32> to vector<16x16xbf16>
    %cst_107 = arith.constant dense<0.000000e+00> : vector<16x64xf32>
    %271 = tpu.matmul %270, %255, %cst_107 {dimension_numbers = #tpu.dot_dimension_numbers<[1], [0], [0], [1], [0, 0, 1, 1], [], []>} : vector<16x16xbf16>, vector<16x64xbf16>, vector<16x64xf32> -> vector<16x64xf32>
    %272 = tpu.concatenate %252, %271 in 1 : vector<16x64xf32>, vector<16x64xf32> -> vector<16x128xf32>
    %273 = vector.extract_strided_slice %233 {offsets = [16, 0], sizes = [16, 64], strides = [1, 1]} : vector<32x384xbf16> to vector<16x64xbf16>
    %274 = vector.extract_strided_slice %233 {offsets = [16, 128], sizes = [16, 64], strides = [1, 1]} : vector<32x384xbf16> to vector<16x64xbf16>
    %275 = vector.extract_strided_slice %233 {offsets = [16, 256], sizes = [16, 64], strides = [1, 1]} : vector<32x384xbf16> to vector<16x64xbf16>
    %cst_108 = arith.constant dense<0.000000e+00> : vector<16x16xf32>
    %276 = tpu.matmul %273, %274, %cst_108 {dimension_numbers = #tpu.dot_dimension_numbers<[1], [1], [0], [0], [0, 0, 1, 0], [], []>} : vector<16x64xbf16>, vector<16x64xbf16>, vector<16x16xf32> -> vector<16x16xf32>
    %cst_109 = arith.constant 1.250000e-01 : f32
    %277 = vector.broadcast %cst_109 : f32 to vector<16x16xf32>
    %278 = arith.mulf %276, %277 : vector<16x16xf32>
    %279 = arith.addf %278, %45 : vector<16x16xf32>
    %cst_110 = arith.constant dense<0xFF800000> : vector<16xf32>
    %280 = vector.multi_reduction <maximumf>, %279, %cst_110 [1] : vector<16x16xf32> to vector<16xf32>
    %281 = vector.shape_cast %280 : vector<16xf32> to vector<16x1xf32>
    %282 = vector.broadcast %281 : vector<16x1xf32> to vector<16x16xf32>
    %283 = arith.subf %279, %282 : vector<16x16xf32>
    %284 = math.exp %283 : vector<16x16xf32>
    %cst_111 = arith.constant dense<0.000000e+00> : vector<16xf32>
    %285 = vector.multi_reduction <add>, %284, %cst_111 [1] : vector<16x16xf32> to vector<16xf32>
    %286 = vector.shape_cast %285 : vector<16xf32> to vector<16x1xf32>
    %287 = tpu.reciprocal %286 {approx = true} : vector<16x1xf32> -> vector<16x1xf32>
    %288 = vector.broadcast %287 : vector<16x1xf32> to vector<16x16xf32>
    %289 = arith.mulf %284, %288 : vector<16x16xf32>
    %290 = arith.truncf %289 : vector<16x16xf32> to vector<16x16xbf16>
    %cst_112 = arith.constant dense<0.000000e+00> : vector<16x64xf32>
    %291 = tpu.matmul %290, %275, %cst_112 {dimension_numbers = #tpu.dot_dimension_numbers<[1], [0], [0], [1], [0, 0, 1, 1], [], []>} : vector<16x16xbf16>, vector<16x64xbf16>, vector<16x64xf32> -> vector<16x64xf32>
    %292 = vector.extract_strided_slice %233 {offsets = [16, 64], sizes = [16, 64], strides = [1, 1]} : vector<32x384xbf16> to vector<16x64xbf16>
    %293 = vector.extract_strided_slice %233 {offsets = [16, 192], sizes = [16, 64], strides = [1, 1]} : vector<32x384xbf16> to vector<16x64xbf16>
    %294 = vector.extract_strided_slice %233 {offsets = [16, 320], sizes = [16, 64], strides = [1, 1]} : vector<32x384xbf16> to vector<16x64xbf16>
    %cst_113 = arith.constant dense<0.000000e+00> : vector<16x16xf32>
    %295 = tpu.matmul %292, %293, %cst_113 {dimension_numbers = #tpu.dot_dimension_numbers<[1], [1], [0], [0], [0, 0, 1, 0], [], []>} : vector<16x64xbf16>, vector<16x64xbf16>, vector<16x16xf32> -> vector<16x16xf32>
    %cst_114 = arith.constant 1.250000e-01 : f32
    %296 = vector.broadcast %cst_114 : f32 to vector<16x16xf32>
    %297 = arith.mulf %295, %296 : vector<16x16xf32>
    %298 = arith.addf %297, %45 : vector<16x16xf32>
    %cst_115 = arith.constant dense<0xFF800000> : vector<16xf32>
    %299 = vector.multi_reduction <maximumf>, %298, %cst_115 [1] : vector<16x16xf32> to vector<16xf32>
    %300 = vector.shape_cast %299 : vector<16xf32> to vector<16x1xf32>
    %301 = vector.broadcast %300 : vector<16x1xf32> to vector<16x16xf32>
    %302 = arith.subf %298, %301 : vector<16x16xf32>
    %303 = math.exp %302 : vector<16x16xf32>
    %cst_116 = arith.constant dense<0.000000e+00> : vector<16xf32>
    %304 = vector.multi_reduction <add>, %303, %cst_116 [1] : vector<16x16xf32> to vector<16xf32>
    %305 = vector.shape_cast %304 : vector<16xf32> to vector<16x1xf32>
    %306 = tpu.reciprocal %305 {approx = true} : vector<16x1xf32> -> vector<16x1xf32>
    %307 = vector.broadcast %306 : vector<16x1xf32> to vector<16x16xf32>
    %308 = arith.mulf %303, %307 : vector<16x16xf32>
    %309 = arith.truncf %308 : vector<16x16xf32> to vector<16x16xbf16>
    %cst_117 = arith.constant dense<0.000000e+00> : vector<16x64xf32>
    %310 = tpu.matmul %309, %294, %cst_117 {dimension_numbers = #tpu.dot_dimension_numbers<[1], [0], [0], [1], [0, 0, 1, 1], [], []>} : vector<16x16xbf16>, vector<16x64xbf16>, vector<16x64xf32> -> vector<16x64xf32>
    %311 = tpu.concatenate %291, %310 in 1 : vector<16x64xf32>, vector<16x64xf32> -> vector<16x128xf32>
    %312 = tpu.concatenate %272, %311 in 0 : vector<16x128xf32>, vector<16x128xf32> -> vector<32x128xf32>
    %313 = arith.truncf %312 : vector<32x128xf32> to vector<32x128xbf16>
    %c1_118 = arith.constant 1 : index
    %c0_119 = arith.constant 0 : index
    %c0_120 = arith.constant 0 : index
    %314 = vector.load %arg8[%c1_118, %c0_119, %c0_120] : memref<2x128x128xbf16, #tpu.memory_space<vmem>>, vector<1x128x128xbf16>
    %315 = vector.shape_cast %314 : vector<1x128x128xbf16> to vector<128x128xbf16>
    %cst_121 = arith.constant dense<0.000000e+00> : vector<32x128xf32>
    %316 = tpu.matmul %313, %315, %cst_121 {dimension_numbers = #tpu.dot_dimension_numbers<[1], [0], [0], [1], [0, 0, 1, 1], [], []>} : vector<32x128xbf16>, vector<128x128xbf16>, vector<32x128xf32> -> vector<32x128xf32>
    %c1_122 = arith.constant 1 : index
    %c0_123 = arith.constant 0 : index
    %c0_124 = arith.constant 0 : index
    %317 = vector.load %arg9[%c1_122, %c0_123, %c0_124] : memref<2x1x128xf32, #tpu.memory_space<vmem>>, vector<1x1x128xf32>
    %318 = vector.shape_cast %317 : vector<1x1x128xf32> to vector<1x128xf32>
    %319 = vector.broadcast %318 : vector<1x128xf32> to vector<32x128xf32>
    %320 = arith.addf %316, %319 : vector<32x128xf32>
    %321 = arith.addf %224, %320 : vector<32x128xf32>
    %c1_125 = arith.constant 1 : index
    %c0_126 = arith.constant 0 : index
    %c0_127 = arith.constant 0 : index
    %322 = vector.load %arg10[%c1_125, %c0_126, %c0_127] : memref<2x1x128xf32, #tpu.memory_space<vmem>>, vector<1x1x128xf32>
    %323 = vector.shape_cast %322 : vector<1x1x128xf32> to vector<1x128xf32>
    %c1_128 = arith.constant 1 : index
    %c0_129 = arith.constant 0 : index
    %c0_130 = arith.constant 0 : index
    %324 = vector.load %arg11[%c1_128, %c0_129, %c0_130] : memref<2x1x128xf32, #tpu.memory_space<vmem>>, vector<1x1x128xf32>
    %325 = vector.shape_cast %324 : vector<1x1x128xf32> to vector<1x128xf32>
    %cst_131 = arith.constant dense<0.000000e+00> : vector<32xf32>
    %326 = vector.multi_reduction <add>, %321, %cst_131 [1] : vector<32x128xf32> to vector<32xf32>
    %327 = vector.shape_cast %326 : vector<32xf32> to vector<32x1xf32>
    %cst_132 = arith.constant 1.280000e+02 : f32
    %328 = vector.broadcast %cst_132 : f32 to vector<32x1xf32>
    %329 = arith.divf %327, %328 : vector<32x1xf32>
    %330 = vector.broadcast %329 : vector<32x1xf32> to vector<32x128xf32>
    %331 = arith.subf %321, %330 : vector<32x128xf32>
    %332 = arith.mulf %331, %331 : vector<32x128xf32>
    %cst_133 = arith.constant dense<0.000000e+00> : vector<32xf32>
    %333 = vector.multi_reduction <add>, %332, %cst_133 [1] : vector<32x128xf32> to vector<32xf32>
    %334 = vector.shape_cast %333 : vector<32xf32> to vector<32x1xf32>
    %cst_134 = arith.constant 1.280000e+02 : f32
    %335 = vector.broadcast %cst_134 : f32 to vector<32x1xf32>
    %336 = arith.divf %334, %335 : vector<32x1xf32>
    %337 = vector.broadcast %329 : vector<32x1xf32> to vector<32x128xf32>
    %338 = arith.subf %321, %337 : vector<32x128xf32>
    %cst_135 = arith.constant 9.99999996E-13 : f32
    %339 = vector.broadcast %cst_135 : f32 to vector<32x1xf32>
    %340 = arith.addf %336, %339 : vector<32x1xf32>
    %341 = math.rsqrt %340 : vector<32x1xf32>
    %342 = vector.broadcast %341 : vector<32x1xf32> to vector<32x128xf32>
    %343 = arith.mulf %338, %342 : vector<32x128xf32>
    %344 = vector.broadcast %323 : vector<1x128xf32> to vector<32x128xf32>
    %345 = arith.mulf %343, %344 : vector<32x128xf32>
    %346 = vector.broadcast %325 : vector<1x128xf32> to vector<32x128xf32>
    %347 = arith.addf %345, %346 : vector<32x128xf32>
    %348 = arith.truncf %347 : vector<32x128xf32> to vector<32x128xbf16>
    %c1_136 = arith.constant 1 : index
    %c0_137 = arith.constant 0 : index
    %c0_138 = arith.constant 0 : index
    %349 = vector.load %arg12[%c1_136, %c0_137, %c0_138] : memref<2x128x256xbf16, #tpu.memory_space<vmem>>, vector<1x128x256xbf16>
    %350 = vector.shape_cast %349 : vector<1x128x256xbf16> to vector<128x256xbf16>
    %cst_139 = arith.constant dense<0.000000e+00> : vector<32x256xf32>
    %351 = tpu.matmul %348, %350, %cst_139 {dimension_numbers = #tpu.dot_dimension_numbers<[1], [0], [0], [1], [0, 0, 1, 1], [], []>} : vector<32x128xbf16>, vector<128x256xbf16>, vector<32x256xf32> -> vector<32x256xf32>
    %c1_140 = arith.constant 1 : index
    %c0_141 = arith.constant 0 : index
    %c0_142 = arith.constant 0 : index
    %352 = vector.load %arg13[%c1_140, %c0_141, %c0_142] : memref<2x1x256xf32, #tpu.memory_space<vmem>>, vector<1x1x256xf32>
    %353 = vector.shape_cast %352 : vector<1x1x256xf32> to vector<1x256xf32>
    %354 = vector.broadcast %353 : vector<1x256xf32> to vector<32x256xf32>
    %355 = arith.addf %351, %354 : vector<32x256xf32>
    %356 = arith.mulf %355, %355 : vector<32x256xf32>
    %357 = arith.mulf %355, %356 : vector<32x256xf32>
    %cst_143 = arith.constant 4.471500e-02 : f32
    %358 = vector.broadcast %cst_143 : f32 to vector<32x256xf32>
    %359 = arith.mulf %358, %357 : vector<32x256xf32>
    %360 = arith.addf %355, %359 : vector<32x256xf32>
    %cst_144 = arith.constant 0.797884583 : f32
    %361 = vector.broadcast %cst_144 : f32 to vector<32x256xf32>
    %362 = arith.mulf %361, %360 : vector<32x256xf32>
    %363 = math.tanh %362 : vector<32x256xf32>
    %cst_145 = arith.constant 1.000000e+00 : f32
    %364 = vector.broadcast %cst_145 : f32 to vector<32x256xf32>
    %365 = arith.addf %364, %363 : vector<32x256xf32>
    %cst_146 = arith.constant 5.000000e-01 : f32
    %366 = vector.broadcast %cst_146 : f32 to vector<32x256xf32>
    %367 = arith.mulf %366, %365 : vector<32x256xf32>
    %368 = arith.mulf %355, %367 : vector<32x256xf32>
    %369 = arith.truncf %368 : vector<32x256xf32> to vector<32x256xbf16>
    %c1_147 = arith.constant 1 : index
    %c0_148 = arith.constant 0 : index
    %c0_149 = arith.constant 0 : index
    %370 = vector.load %arg14[%c1_147, %c0_148, %c0_149] : memref<2x256x128xbf16, #tpu.memory_space<vmem>>, vector<1x256x128xbf16>
    %371 = vector.shape_cast %370 : vector<1x256x128xbf16> to vector<256x128xbf16>
    %cst_150 = arith.constant dense<0.000000e+00> : vector<32x128xf32>
    %372 = tpu.matmul %369, %371, %cst_150 {dimension_numbers = #tpu.dot_dimension_numbers<[1], [0], [0], [1], [0, 0, 1, 1], [], []>} : vector<32x256xbf16>, vector<256x128xbf16>, vector<32x128xf32> -> vector<32x128xf32>
    %c1_151 = arith.constant 1 : index
    %c0_152 = arith.constant 0 : index
    %c0_153 = arith.constant 0 : index
    %373 = vector.load %arg15[%c1_151, %c0_152, %c0_153] : memref<2x1x128xf32, #tpu.memory_space<vmem>>, vector<1x1x128xf32>
    %374 = vector.shape_cast %373 : vector<1x1x128xf32> to vector<1x128xf32>
    %375 = vector.broadcast %374 : vector<1x128xf32> to vector<32x128xf32>
    %376 = arith.addf %372, %375 : vector<32x128xf32>
    %377 = arith.addf %347, %376 : vector<32x128xf32>
    %c1_154 = arith.constant 1 : index
    %c0_155 = arith.constant 0 : index
    %c0_156 = arith.constant 0 : index
    %378 = vector.load %arg16[%c1_154, %c0_155, %c0_156] : memref<2x1x128xf32, #tpu.memory_space<vmem>>, vector<1x1x128xf32>
    %379 = vector.shape_cast %378 : vector<1x1x128xf32> to vector<1x128xf32>
    %c1_157 = arith.constant 1 : index
    %c0_158 = arith.constant 0 : index
    %c0_159 = arith.constant 0 : index
    %380 = vector.load %arg17[%c1_157, %c0_158, %c0_159] : memref<2x1x128xf32, #tpu.memory_space<vmem>>, vector<1x1x128xf32>
    %381 = vector.shape_cast %380 : vector<1x1x128xf32> to vector<1x128xf32>
    %cst_160 = arith.constant dense<0.000000e+00> : vector<32xf32>
    %382 = vector.multi_reduction <add>, %377, %cst_160 [1] : vector<32x128xf32> to vector<32xf32>
    %383 = vector.shape_cast %382 : vector<32xf32> to vector<32x1xf32>
    %cst_161 = arith.constant 1.280000e+02 : f32
    %384 = vector.broadcast %cst_161 : f32 to vector<32x1xf32>
    %385 = arith.divf %383, %384 : vector<32x1xf32>
    %386 = vector.broadcast %385 : vector<32x1xf32> to vector<32x128xf32>
    %387 = arith.subf %377, %386 : vector<32x128xf32>
    %388 = arith.mulf %387, %387 : vector<32x128xf32>
    %cst_162 = arith.constant dense<0.000000e+00> : vector<32xf32>
    %389 = vector.multi_reduction <add>, %388, %cst_162 [1] : vector<32x128xf32> to vector<32xf32>
    %390 = vector.shape_cast %389 : vector<32xf32> to vector<32x1xf32>
    %cst_163 = arith.constant 1.280000e+02 : f32
    %391 = vector.broadcast %cst_163 : f32 to vector<32x1xf32>
    %392 = arith.divf %390, %391 : vector<32x1xf32>
    %393 = vector.broadcast %385 : vector<32x1xf32> to vector<32x128xf32>
    %394 = arith.subf %377, %393 : vector<32x128xf32>
    %cst_164 = arith.constant 9.99999996E-13 : f32
    %395 = vector.broadcast %cst_164 : f32 to vector<32x1xf32>
    %396 = arith.addf %392, %395 : vector<32x1xf32>
    %397 = math.rsqrt %396 : vector<32x1xf32>
    %398 = vector.broadcast %397 : vector<32x1xf32> to vector<32x128xf32>
    %399 = arith.mulf %394, %398 : vector<32x128xf32>
    %400 = vector.broadcast %379 : vector<1x128xf32> to vector<32x128xf32>
    %401 = arith.mulf %399, %400 : vector<32x128xf32>
    %402 = vector.broadcast %381 : vector<1x128xf32> to vector<32x128xf32>
    %403 = arith.addf %401, %402 : vector<32x128xf32>
    %404 = vector.extract_strided_slice %403 {offsets = [0, 0], sizes = [1, 128], strides = [1, 1]} : vector<32x128xf32> to vector<1x128xf32>
    %405 = vector.extract_strided_slice %403 {offsets = [16, 0], sizes = [1, 128], strides = [1, 1]} : vector<32x128xf32> to vector<1x128xf32>
    %406 = tpu.concatenate %404, %405 in 0 : vector<1x128xf32>, vector<1x128xf32> -> vector<2x128xf32>
    %c0_165 = arith.constant 0 : index
    %c0_166 = arith.constant 0 : index
    %407 = vector.load %arg18[%c0_165, %c0_166] : memref<2x128xf32, #tpu.memory_space<vmem>>, vector<2x128xf32>
    tpu.vector_store %arg18[%c0_165, %c0_166], %406 {strides = array<i32>} : memref<2x128xf32, #tpu.memory_space<vmem>>, vector<2x128xf32>,
    return
  }
}

</mosaic_0001>

<llo_original>
// kernel: question_encoder_forward.1
$region0: #{question_encoder_forward.1}
  #allocation0 [shape = 'u32[]', space=smem, size = 0x4, offset = 0x4, fixed_abs, tag = 'smem constant byte address 0x4 - core index']
  #allocation1 [shape = 'u32[72,128]{1,0:T(1,128)}', space=vmem, size = 0x9000, scoped, tag = 'internal scratch']
  %s0 = inlined_call_operand.vmem [shape: s32[32,1], index: 0, kind: input, shape index: {}]
  %s1 = inlined_call_operand.vmem [shape: f32[2,16], index: 1, kind: input, shape index: {}]
  %s2 = inlined_call_operand.hbm [shape: bf16[128,128], index: 2, kind: input, shape index: {}]
  %s3 = inlined_call_operand.vmem [shape: f32[32,128], index: 3, kind: input, shape index: {}]
  %s4 = inlined_call_operand.hbm [shape: f32[1,128], index: 4, kind: input, shape index: {}]
  %s5 = inlined_call_operand.hbm [shape: f32[1,128], index: 5, kind: input, shape index: {}]
  %s6 = inlined_call_operand.hbm [shape: bf16[2,128,384], index: 6, kind: input, shape index: {}]
  %s7 = inlined_call_operand.hbm [shape: f32[2,1,384], index: 7, kind: input, shape index: {}]
  %s8 = inlined_call_operand.hbm [shape: bf16[2,128,128], index: 8, kind: input, shape index: {}]
  %s9 = inlined_call_operand.hbm [shape: f32[2,1,128], index: 9, kind: input, shape index: {}]
  %s10 = inlined_call_operand.vmem [shape: f32[2,1,128], index: 10, kind: input, shape index: {}]
  %s11 = inlined_call_operand.hbm [shape: f32[2,1,128], index: 11, kind: input, shape index: {}]
  %s12 = inlined_call_operand.hbm [shape: bf16[2,128,256], index: 12, kind: input, shape index: {}]
  %s13 = inlined_call_operand.vmem [shape: f32[2,1,256], index: 13, kind: input, shape index: {}]
  %s14 = inlined_call_operand.hbm [shape: bf16[2,256,128], index: 14, kind: input, shape index: {}]
  %s15 = inlined_call_operand.hbm [shape: f32[2,1,128], index: 15, kind: input, shape index: {}]
  %s16 = inlined_call_operand.vmem [shape: f32[2,1,128], index: 16, kind: input, shape index: {}]
  %s17 = inlined_call_operand.hbm [shape: f32[2,1,128], index: 17, kind: input, shape index: {}]
  %s18 = inlined_call_operand.hbm [shape: f32[2,128], index: 18, kind: output, shape index: {}]
  %s19 = sld [smem:[#allocation0]]
  $region130: #{question_encoder_forward.1} parent=0
    _
  %s21 = ssub.s32 1, %s19
  %s22 = scalar_select 0, %s21, %s19
  $region1: #{question_encoder_forward.1} parent=0
    #allocation2 [shape = 'u8[32768]{0}', space=vmem, size = 0x8000, scoped, tag = 'input window, operand 2, single buffered']
    #allocation3 [shape = 's32[1]{0}', space=sflag, size = 0x4, scoped, tag = 'scoped memory for question_encoder_forward.1']
    #allocation4 [shape = 's32[1]{0}', space=sflag, size = 0x4, scoped, tag = 'scoped memory for question_encoder_forward.1']
    #allocation5 [shape = 'u8[512]{0}', space=vmem, size = 0x400, scoped, tag = 'input window, operand 4, single buffered']
    #allocation6 [shape = 's32[1]{0}', space=sflag, size = 0x4, scoped, tag = 'scoped memory for question_encoder_forward.1']
    #allocation7 [shape = 'u8[512]{0}', space=vmem, size = 0x400, scoped, tag = 'input window, operand 5, single buffered']
    #allocation8 [shape = 'u8[196608]{0}', space=vmem, size = 0x30000, scoped, tag = 'input window, operand 6, single buffered']
    #allocation9 [shape = 's32[1]{0}', space=sflag, size = 0x4, scoped, tag = 'scoped memory for question_encoder_forward.1']
    #allocation10 [shape = 'u8[3072]{0}', space=vmem, size = 0xc00, scoped, tag = 'input window, operand 7, single buffered']
    #allocation11 [shape = 'u8[65536]{0}', space=vmem, size = 0x10000, scoped, tag = 'input window, operand 8, single buffered']
    #allocation12 [shape = 's32[1]{0}', space=sflag, size = 0x4, scoped, tag = 'scoped memory for question_encoder_forward.1']
    #allocation13 [shape = 'u8[1024]{0}', space=vmem, size = 0x400, scoped, tag = 'input window, operand 9, single buffered']
    #allocation14 [shape = 'u8[1024]{0}', space=vmem, size = 0x400, scoped, tag = 'input window, operand 11, single buffered']
    #allocation15 [shape = 's32[1]{0}', space=sflag, size = 0x4, scoped, tag = 'scoped memory for question_encoder_forward.1']
    #allocation16 [shape = 'u8[131072]{0}', space=vmem, size = 0x20000, scoped, tag = 'input window, operand 12, single buffered']
    #allocation17 [shape = 'u8[131072]{0}', space=vmem, size = 0x20000, scoped, tag = 'input window, operand 14, single buffered']
    #allocation18 [shape = 's32[1]{0}', space=sflag, size = 0x4, scoped, tag = 'scoped memory for question_encoder_forward.1']
    #allocation19 [shape = 'u8[1024]{0}', space=vmem, size = 0x400, scoped, tag = 'input window, operand 15, single buffered']
    #allocation20 [shape = 'u8[1024]{0}', space=vmem, size = 0x400, scoped, tag = 'input window, operand 17, single buffered']
    #allocation21 [shape = 's32[1]{0}', space=sflag, size = 0x4, scoped, tag = 'scoped memory for question_encoder_forward.1']
    #allocation22 [shape = 'u8[1024]{0}', space=vmem, size = 0x400, scoped, tag = 'output window, operand 0, single buffered']
    %23 = vsyncpa [#allocation3], 0
    %24 = vsyncpa [#allocation6], 0
    %25 = vsyncpa [#allocation9], 0
    %26 = vsyncpa [#allocation12], 0
    %27 = vsyncpa [#allocation15], 0
    %28 = vsyncpa [#allocation18], 0
    %29 = vsyncpa [#allocation21], 0
    %30 = vsyncpa [#allocation4], 0
    // Predicated region
    $region2: #{question_encoder_forward.1} parent=1 // pred_check
      _
    $region3: #{question_encoder_forward.1} parent=1 // pred_check_branch
      %32 = sbr.rel (0) target = $region5
    $region4: #{question_encoder_forward.1} parent=1 // pred_region
      _
    $region5: #{question_encoder_forward.1} parent=1 // pred_fallthru
      _
    // Predicated region
    $region6: #{question_encoder_forward.1} parent=1 // pred_check
      _
    $region7: #{question_encoder_forward.1} parent=1 // pred_check_branch
      %34 = sbr.rel (0) target = $region9
    $region8: #{question_encoder_forward.1} parent=1 // pred_region
      _
    $region9: #{question_encoder_forward.1} parent=1 // pred_fallthru
      _
    // Predicated region
    $region10: #{question_encoder_forward.1} parent=1 // pred_check
      _
    $region11: #{question_encoder_forward.1} parent=1 // pred_check_branch
      %36 = sbr.rel (0) target = $region13
    $region12: #{question_encoder_forward.1} parent=1 // pred_region
      %38 = vsyncadd [#allocation3], 0
      %s39 = sshll.u32 %s2, 4
      %s40 = int_to_ptr.hbm [resolvable:$true] %s39
      %s41 = sshll.u32 [#allocation2], 4
      %s42 = int_to_ptr.vmem [resolvable:$true] %s41
      %47 = dma.hbm_to_vmem [thread:$0]  %s40, 1024, %s42, [#allocation3], 64, 64, 4
    $region13: #{question_encoder_forward.1} parent=1 // pred_fallthru
      _
    // Predicated region
    $region14: #{question_encoder_forward.1} parent=1 // pred_check
      _
    $region15: #{question_encoder_forward.1} parent=1 // pred_check_branch
      %49 = sbr.rel (0) target = $region17
    $region16: #{question_encoder_forward.1} parent=1 // pred_region
      _
    $region17: #{question_encoder_forward.1} parent=1 // pred_fallthru
      _
    // Predicated region
    $region18: #{question_encoder_forward.1} parent=1 // pred_check
      _
    $region19: #{question_encoder_forward.1} parent=1 // pred_check_branch
      %51 = sbr.rel (0) target = $region21
    $region20: #{question_encoder_forward.1} parent=1 // pred_region
      %53 = vsyncadd [#allocation6], 0
      %s55 = sshll.u32 %s4, 4
      %s56 = int_to_ptr.hbm [resolvable:$true] %s55
      %s57 = sshll.u32 [#allocation5], 4
      %s58 = int_to_ptr.vmem [resolvable:$true] %s57
      %60 = dma.hbm_to_vmem [thread:$0]  %s56, 16, %s58, [#allocation6]
    $region21: #{question_encoder_forward.1} parent=1 // pred_fallthru
      _
    // Predicated region
    $region22: #{question_encoder_forward.1} parent=1 // pred_check
      _
    $region23: #{question_encoder_forward.1} parent=1 // pred_check_branch
      %62 = sbr.rel (0) target = $region25
    $region24: #{question_encoder_forward.1} parent=1 // pred_region
      %64 = vsyncadd [#allocation6], 0
      %s66 = sshll.u32 %s5, 4
      %s67 = int_to_ptr.hbm [resolvable:$true] %s66
      %s68 = sshll.u32 [#allocation7], 4
      %s69 = int_to_ptr.vmem [resolvable:$true] %s68
      %71 = dma.hbm_to_vmem [thread:$0]  %s67, 16, %s69, [#allocation6]
    $region25: #{question_encoder_forward.1} parent=1 // pred_fallthru
      _
    // Predicated region
    $region26: #{question_encoder_forward.1} parent=1 // pred_check
      _
    $region27: #{question_encoder_forward.1} parent=1 // pred_check_branch
      %73 = sbr.rel (0) target = $region29
    $region28: #{question_encoder_forward.1} parent=1 // pred_region
      %75 = vsyncadd [#allocation9], 0
      %s76 = sshll.u32 %s6, 4
      %s77 = int_to_ptr.hbm [resolvable:$true] %s76
      %s78 = sshll.u32 [#allocation8], 4
      %s79 = int_to_ptr.vmem [resolvable:$true] %s78
      %84 = dma.hbm_to_vmem [thread:$0]  %s77, 6144, %s79, [#allocation9], 192, 192, 12
    $region29: #{question_encoder_forward.1} parent=1 // pred_fallthru
      _
    // Predicated region
    $region30: #{question_encoder_forward.1} parent=1 // pred_check
      _
    $region31: #{question_encoder_forward.1} parent=1 // pred_check_branch
      %86 = sbr.rel (0) target = $region33
    $region32: #{question_encoder_forward.1} parent=1 // pred_region
      %88 = vsyncadd [#allocation9], 0
      %s89 = sshll.u32 %s7, 4
      %s90 = int_to_ptr.hbm [resolvable:$true] %s89
      %s91 = sshll.u32 [#allocation10], 4
      %s92 = int_to_ptr.vmem [resolvable:$true] %s91
      %97 = dma.hbm_to_vmem [thread:$0]  %s90, 96, %s92, [#allocation9], 48, 48, 3
    $region33: #{question_encoder_forward.1} parent=1 // pred_fallthru
      _
    // Predicated region
    $region34: #{question_encoder_forward.1} parent=1 // pred_check
      _
    $region35: #{question_encoder_forward.1} parent=1 // pred_check_branch
      %99 = sbr.rel (0) target = $region37
    $region36: #{question_encoder_forward.1} parent=1 // pred_region
      %101 = vsyncadd [#allocation12], 0
      %s102 = sshll.u32 %s8, 4
      %s103 = int_to_ptr.hbm [resolvable:$true] %s102
      %s104 = sshll.u32 [#allocation11], 4
      %s105 = int_to_ptr.vmem [resolvable:$true] %s104
      %110 = dma.hbm_to_vmem [thread:$0]  %s103, 2048, %s105, [#allocation12], 64, 64, 4
    $region37: #{question_encoder_forward.1} parent=1 // pred_fallthru
      _
    // Predicated region
    $region38: #{question_encoder_forward.1} parent=1 // pred_check
      _
    $region39: #{question_encoder_forward.1} parent=1 // pred_check_branch
      %112 = sbr.rel (0) target = $region41
    $region40: #{question_encoder_forward.1} parent=1 // pred_region
      %114 = vsyncadd [#allocation12], 0
      %s115 = sshll.u32 %s9, 4
      %s116 = int_to_ptr.hbm [resolvable:$true] %s115
      %s117 = sshll.u32 [#allocation13], 4
      %s118 = int_to_ptr.vmem [resolvable:$true] %s117
      %123 = dma.hbm_to_vmem [thread:$0]  %s116, 32, %s118, [#allocation12], 16, 16, 1
    $region41: #{question_encoder_forward.1} parent=1 // pred_fallthru
      _
    // Predicated region
    $region42: #{question_encoder_forward.1} parent=1 // pred_check
      _
    $region43: #{question_encoder_forward.1} parent=1 // pred_check_branch
      %125 = sbr.rel (0) target = $region45
    $region44: #{question_encoder_forward.1} parent=1 // pred_region
      _
    $region45: #{question_encoder_forward.1} parent=1 // pred_fallthru
      _
    // Predicated region
    $region46: #{question_encoder_forward.1} parent=1 // pred_check
      _
    $region47: #{question_encoder_forward.1} parent=1 // pred_check_branch
      %127 = sbr.rel (0) target = $region49
    $region48: #{question_encoder_forward.1} parent=1 // pred_region
      %129 = vsyncadd [#allocation15], 0
      %s130 = sshll.u32 %s11, 4
      %s131 = int_to_ptr.hbm [resolvable:$true] %s130
      %s132 = sshll.u32 [#allocation14], 4
      %s133 = int_to_ptr.vmem [resolvable:$true] %s132
      %138 = dma.hbm_to_vmem [thread:$0]  %s131, 32, %s133, [#allocation15], 16, 16, 1
    $region49: #{question_encoder_forward.1} parent=1 // pred_fallthru
      _
    // Predicated region
    $region50: #{question_encoder_forward.1} parent=1 // pred_check
      _
    $region51: #{question_encoder_forward.1} parent=1 // pred_check_branch
      %140 = sbr.rel (0) target = $region53
    $region52: #{question_encoder_forward.1} parent=1 // pred_region
      %142 = vsyncadd [#allocation15], 0
      %s143 = sshll.u32 %s12, 4
      %s144 = int_to_ptr.hbm [resolvable:$true] %s143
      %s145 = sshll.u32 [#allocation16], 4
      %s146 = int_to_ptr.vmem [resolvable:$true] %s145
      %151 = dma.hbm_to_vmem [thread:$0]  %s144, 4096, %s146, [#allocation15], 128, 128, 8
    $region53: #{question_encoder_forward.1} parent=1 // pred_fallthru
      _
    // Predicated region
    $region54: #{question_encoder_forward.1} parent=1 // pred_check
      _
    $region55: #{question_encoder_forward.1} parent=1 // pred_check_branch
      %153 = sbr.rel (0) target = $region57
    $region56: #{question_encoder_forward.1} parent=1 // pred_region
      _
    $region57: #{question_encoder_forward.1} parent=1 // pred_fallthru
      _
    // Predicated region
    $region58: #{question_encoder_forward.1} parent=1 // pred_check
      _
    $region59: #{question_encoder_forward.1} parent=1 // pred_check_branch
      %155 = sbr.rel (0) target = $region61
    $region60: #{question_encoder_forward.1} parent=1 // pred_region
      %157 = vsyncadd [#allocation18], 0
      %s158 = sshll.u32 %s14, 4
      %s159 = int_to_ptr.hbm [resolvable:$true] %s158
      %s160 = sshll.u32 [#allocation17], 4
      %s161 = int_to_ptr.vmem [resolvable:$true] %s160
      %166 = dma.hbm_to_vmem [thread:$0]  %s159, 4096, %s161, [#allocation18], 64, 64, 4
    $region61: #{question_encoder_forward.1} parent=1 // pred_fallthru
      _
    // Predicated region
    $region62: #{question_encoder_forward.1} parent=1 // pred_check
      _
    $region63: #{question_encoder_forward.1} parent=1 // pred_check_branch
      %168 = sbr.rel (0) target = $region65
    $region64: #{question_encoder_forward.1} parent=1 // pred_region
      %170 = vsyncadd [#allocation18], 0
      %s171 = sshll.u32 %s15, 4
      %s172 = int_to_ptr.hbm [resolvable:$true] %s171
      %s173 = sshll.u32 [#allocation19], 4
      %s174 = int_to_ptr.vmem [resolvable:$true] %s173
      %179 = dma.hbm_to_vmem [thread:$0]  %s172, 32, %s174, [#allocation18], 16, 16, 1
    $region65: #{question_encoder_forward.1} parent=1 // pred_fallthru
      _
    // Predicated region
    $region66: #{question_encoder_forward.1} parent=1 // pred_check
      _
    $region67: #{question_encoder_forward.1} parent=1 // pred_check_branch
      %181 = sbr.rel (0) target = $region69
    $region68: #{question_encoder_forward.1} parent=1 // pred_region
      _
    $region69: #{question_encoder_forward.1} parent=1 // pred_fallthru
      _
    // Predicated region
    $region70: #{question_encoder_forward.1} parent=1 // pred_check
      _
    $region71: #{question_encoder_forward.1} parent=1 // pred_check_branch
      %183 = sbr.rel (0) target = $region73
    $region72: #{question_encoder_forward.1} parent=1 // pred_region
      %185 = vsyncadd [#allocation21], 0
      %s186 = sshll.u32 %s17, 4
      %s187 = int_to_ptr.hbm [resolvable:$true] %s186
      %s188 = sshll.u32 [#allocation20], 4
      %s189 = int_to_ptr.vmem [resolvable:$true] %s188
      %194 = dma.hbm_to_vmem [thread:$0]  %s187, 32, %s189, [#allocation21], 16, 16, 1
    $region73: #{question_encoder_forward.1} parent=1 // pred_fallthru
      _
    // Predicated region
    $region74: #{question_encoder_forward.1} parent=1 // pred_check
      _
    $region75: #{question_encoder_forward.1} parent=1 // pred_check_branch
      %196 = sbr.rel (0) target = $region77
    $region76: #{question_encoder_forward.1} parent=1 // pred_region
      %198 = dma.done [#allocation3], 1024
    $region77: #{question_encoder_forward.1} parent=1 // pred_fallthru
      _
    // Predicated region
    $region78: #{question_encoder_forward.1} parent=1 // pred_check
      _
    $region79: #{question_encoder_forward.1} parent=1 // pred_check_branch
      %200 = sbr.rel (0) target = $region81
    $region80: #{question_encoder_forward.1} parent=1 // pred_region
      %202 = dma.done [#allocation6], 16
    $region81: #{question_encoder_forward.1} parent=1 // pred_fallthru
      _
    // Predicated region
    $region82: #{question_encoder_forward.1} parent=1 // pred_check
      _
    $region83: #{question_encoder_forward.1} parent=1 // pred_check_branch
      %204 = sbr.rel (0) target = $region85
    $region84: #{question_encoder_forward.1} parent=1 // pred_region
      %206 = dma.done [#allocation6], 16
    $region85: #{question_encoder_forward.1} parent=1 // pred_fallthru
      _
    // Predicated region
    $region86: #{question_encoder_forward.1} parent=1 // pred_check
      _
    $region87: #{question_encoder_forward.1} parent=1 // pred_check_branch
      %208 = sbr.rel (0) target = $region89
    $region88: #{question_encoder_forward.1} parent=1 // pred_region
      %210 = dma.done [#allocation9], 6144
    $region89: #{question_encoder_forward.1} parent=1 // pred_fallthru
      _
    // Predicated region
    $region90: #{question_encoder_forward.1} parent=1 // pred_check
      _
    $region91: #{question_encoder_forward.1} parent=1 // pred_check_branch
      %212 = sbr.rel (0) target = $region93
    $region92: #{question_encoder_forward.1} parent=1 // pred_region
      %214 = dma.done [#allocation9], 96
    $region93: #{question_encoder_forward.1} parent=1 // pred_fallthru
      _
    // Predicated region
    $region94: #{question_encoder_forward.1} parent=1 // pred_check
      _
    $region95: #{question_encoder_forward.1} parent=1 // pred_check_branch
      %216 = sbr.rel (0) target = $region97
    $region96: #{question_encoder_forward.1} parent=1 // pred_region
      %218 = dma.done [#allocation12], 2048
    $region97: #{question_encoder_forward.1} parent=1 // pred_fallthru
      _
    // Predicated region
    $region98: #{question_encoder_forward.1} parent=1 // pred_check
      _
    $region99: #{question_encoder_forward.1} parent=1 // pred_check_branch
      %220 = sbr.rel (0) target = $region101
    $region100: #{question_encoder_forward.1} parent=1 // pred_region
      %222 = dma.done [#allocation12], 32
    $region101: #{question_encoder_forward.1} parent=1 // pred_fallthru
      _
    // Predicated region
    $region102: #{question_encoder_forward.1} parent=1 // pred_check
      _
    $region103: #{question_encoder_forward.1} parent=1 // pred_check_branch
      %224 = sbr.rel (0) target = $region105
    $region104: #{question_encoder_forward.1} parent=1 // pred_region
      %226 = dma.done [#allocation15], 32
    $region105: #{question_encoder_forward.1} parent=1 // pred_fallthru
      _
    // Predicated region
    $region106: #{question_encoder_forward.1} parent=1 // pred_check
      _
    $region107: #{question_encoder_forward.1} parent=1 // pred_check_branch
      %228 = sbr.rel (0) target = $region109
    $region108: #{question_encoder_forward.1} parent=1 // pred_region
      %230 = dma.done [#allocation15], 4096
    $region109: #{question_encoder_forward.1} parent=1 // pred_fallthru
      _
    // Predicated region
    $region110: #{question_encoder_forward.1} parent=1 // pred_check
      _
    $region111: #{question_encoder_forward.1} parent=1 // pred_check_branch
      %232 = sbr.rel (0) target = $region113
    $region112: #{question_encoder_forward.1} parent=1 // pred_region
      %234 = dma.done [#allocation18], 4096
    $region113: #{question_encoder_forward.1} parent=1 // pred_fallthru
      _
    // Predicated region
    $region114: #{question_encoder_forward.1} parent=1 // pred_check
      _
    $region115: #{question_encoder_forward.1} parent=1 // pred_check_branch
      %236 = sbr.rel (0) target = $region117
    $region116: #{question_encoder_forward.1} parent=1 // pred_region
      %238 = dma.done [#allocation18], 32
    $region117: #{question_encoder_forward.1} parent=1 // pred_fallthru
      _
    // Predicated region
    $region118: #{question_encoder_forward.1} parent=1 // pred_check
      _
    $region119: #{question_encoder_forward.1} parent=1 // pred_check_branch
      %240 = sbr.rel (0) target = $region121
    $region120: #{question_encoder_forward.1} parent=1 // pred_region
      %242 = dma.done [#allocation21], 32
    $region121: #{question_encoder_forward.1} parent=1 // pred_fallthru
      _
    %v244 = vld [vmem:[%s0] sm:$0xff]
    %v245 = vld [vmem:[%s0 + $0x8] sm:$0xff]
    %v246 = vld [vmem:[%s0 + $0x10] sm:$0xff]
    %v247 = vld [vmem:[%s0 + $0x18] sm:$0xff]
    %v248 = vlaneseq
    %v249 = vand.u32 %v248, 127
    %250 = vset.pattern.permute.xlu0 0
    %251 = vperm.xlu0 %250, %v244
    %v252 = vpop.permute.xlu0 %251
    %253 = vset.pattern.permute.xlu0 0
    %254 = vperm.xlu0 %253, %v245
    %v255 = vpop.permute.xlu0 %254
    %256 = vset.pattern.permute.xlu0 0
    %257 = vperm.xlu0 %256, %v246
    %v258 = vpop.permute.xlu0 %257
    %259 = vset.pattern.permute.xlu0 0
    %260 = vperm.xlu0 %259, %v247
    %v261 = vpop.permute.xlu0 %260
    %vm262 = vcmp.eq.s32.totalorder %v249, %v252
    %vm263 = vcmp.eq.s32.totalorder %v249, %v255
    %vm264 = vcmp.eq.s32.totalorder %v249, %v258
    %vm265 = vcmp.eq.s32.totalorder %v249, %v261
    %v266 = vsel %vm262, 1, 0
    %v267 = vsel %vm263, 1, 0
    %v268 = vsel %vm264, 1, 0
    %v269 = vsel %vm265, 1, 0
    %v270 = vcvt.s32.f32 %v266
    %v271 = vcvt.s32.f32 %v267
    %v272 = vcvt.s32.f32 %v268
    %v273 = vcvt.s32.f32 %v269
    %v274 = vpack.c.bf16 %v271, %v270
    %v275 = vpack.c.bf16 %v273, %v272
    %v276 = vld [vmem:[#allocation2] sm:$0xf]
    %v277 = vld [vmem:[#allocation2 + $0x4] sm:$0xf]
    %v278 = vld [vmem:[#allocation2 + $0x8] sm:$0xf]
    %v279 = vld [vmem:[#allocation2 + $0xc] sm:$0xf]
    %v280 = vld [vmem:[#allocation2 + $0x10] sm:$0xf]
    %v281 = vld [vmem:[#allocation2 + $0x14] sm:$0xf]
    %v282 = vld [vmem:[#allocation2 + $0x18] sm:$0xf]
    %v283 = vld [vmem:[#allocation2 + $0x1c] sm:$0xf]
    %v284 = vld [vmem:[#allocation2 + $0x20] sm:$0xf]
    %v285 = vld [vmem:[#allocation2 + $0x24] sm:$0xf]
    %v286 = vld [vmem:[#allocation2 + $0x28] sm:$0xf]
    %v287 = vld [vmem:[#allocation2 + $0x2c] sm:$0xf]
    %v288 = vld [vmem:[#allocation2 + $0x30] sm:$0xf]
    %v289 = vld [vmem:[#allocation2 + $0x34] sm:$0xf]
    %v290 = vld [vmem:[#allocation2 + $0x38] sm:$0xf]
    %v291 = vld [vmem:[#allocation2 + $0x3c] sm:$0xf]
    %v292 = vld [vmem:[%s3] sm:$0xff]
    %v293 = vld [vmem:[%s3 + $0x8] sm:$0xff]
    %v294 = vld [vmem:[%s3 + $0x10] sm:$0xff]
    %v295 = vld [vmem:[%s3 + $0x18] sm:$0xff]
    %v312 = vunpack.c.l.b16 %v276
    %v313 = vunpack.c.l.b16 %v277
    %v314 = vunpack.c.l.b16 %v278
    %v315 = vunpack.c.l.b16 %v279
    %v316 = vunpack.c.l.b16 %v280
    %v317 = vunpack.c.l.b16 %v281
    %v318 = vunpack.c.l.b16 %v282
    %v319 = vunpack.c.l.b16 %v283
    %v320 = vunpack.c.l.b16 %v284
    %v321 = vunpack.c.l.b16 %v285
    %v322 = vunpack.c.l.b16 %v286
    %v323 = vunpack.c.l.b16 %v287
    %v324 = vunpack.c.l.b16 %v288
    %v325 = vunpack.c.l.b16 %v289
    %v326 = vunpack.c.l.b16 %v290
    %v327 = vunpack.c.l.b16 %v291
    %v328 = vpack.c.b16 %v313, %v312
    %v329 = vpack.c.b16 %v315, %v314
    %v330 = vpack.c.b16 %v317, %v316
    %v331 = vpack.c.b16 %v319, %v318
    %v332 = vpack.c.b16 %v321, %v320
    %v333 = vpack.c.b16 %v323, %v322
    %v334 = vpack.c.b16 %v325, %v324
    %v335 = vpack.c.b16 %v327, %v326
    %344 = vmatpush.bf16.msra.mxu0 %v335
    %345 = vmatpush.bf16.msra.mxu0 %v334
    %346 = vmatpush.bf16.msra.mxu0 %v333
    %347 = vmatpush.bf16.msra.mxu0 %v332
    %348 = vmatpush.bf16.msra.mxu0 %v331
    %349 = vmatpush.bf16.msra.mxu0 %v330
    %350 = vmatpush.bf16.msra.mxu0 %v329
    %351 = vmatpush.bf16.msra.mxu0 %v328
    %352 = vmatmul.bf16.gmra.mxu0 %v274
    %v353 = vpop.f32.mrf.mxu0
    %v354 = vadd.f32 %v292, %v353
    %v355 = vpop.f32.mrf.mxu0
    %v356 = vadd.f32 %v293, %v355
    %357 = vmatmul.bf16.gmra.mxu0 %v275
    %v358 = vpop.f32.mrf.mxu0
    %v359 = vadd.f32 %v294, %v358
    %v360 = vpop.f32.mrf.mxu0
    %v361 = vadd.f32 %v295, %v360
    %362 = vdwg.mxu0
    %v363 = vld [vmem:[#allocation5] sm:$0x1]
    %v364 = vld [vmem:[#allocation7] sm:$0x1]
    %365 = vadd.xlane.f32.xlu0 %v354
    %v366 = vpop.xlane.xlu0 %365
    %367 = vadd.xlane.f32.xlu0 %v356
    %v368 = vpop.xlane.xlu0 %367
    %369 = vadd.xlane.f32.xlu0 %v359
    %v370 = vpop.xlane.xlu0 %369
    %371 = vadd.xlane.f32.xlu0 %v361
    %v372 = vpop.xlane.xlu0 %371
    %v373 = vrcp.pop 128.0
    %v374 = vmul.f32 128.0, %v373
    %v375 = vsub.f32 1.0, %v374
    %v376 = vmul.f32 %v373, %v375
    %v377 = vadd.f32 %v373, %v376
    %vm378 = vweird.f32 %v373
    %v379 = vsel %vm378, %v373, %v377
    %v380 = vmul.f32 %v366, %v379
    %v381 = vmul.f32 %v368, %v379
    %v382 = vmul.f32 %v370, %v379
    %v383 = vmul.f32 %v372, %v379
    %v384 = vsub.f32 %v354, %v380
    %v385 = vsub.f32 %v356, %v381
    %v386 = vsub.f32 %v359, %v382
    %v387 = vsub.f32 %v361, %v383
    %v388 = vmul.f32 %v384, %v384
    %v389 = vmul.f32 %v385, %v385
    %v390 = vmul.f32 %v386, %v386
    %v391 = vmul.f32 %v387, %v387
    %392 = vadd.xlane.f32.xlu0 %v388
    %v393 = vpop.xlane.xlu0 %392
    %394 = vadd.xlane.f32.xlu0 %v389
    %v395 = vpop.xlane.xlu0 %394
    %396 = vadd.xlane.f32.xlu0 %v390
    %v397 = vpop.xlane.xlu0 %396
    %398 = vadd.xlane.f32.xlu0 %v391
    %v399 = vpop.xlane.xlu0 %398
    %v400 = vmul.f32 %v393, %v379
    %v401 = vmul.f32 %v395, %v379
    %v402 = vmul.f32 %v397, %v379
    %v403 = vmul.f32 %v399, %v379
    %v404 = vadd.f32 %v400, 1e-12
    %v405 = vadd.f32 %v401, 1e-12
    %v406 = vadd.f32 %v402, 1e-12
    %v407 = vadd.f32 %v403, 1e-12
    %v408 = vrsqrt.pop %v404
    %v409 = vmul.f32 %v408, %v404
    %v410 = vmul.f32 %v409, %v408
    %v411 = vmul.f32 0.5, %v410
    %v412 = vsub.f32 1.5, %v411
    %v413 = vmul.f32 %v408, %v412
    %vm414 = vweird.f32 %v404
    %vm415 = vweird.f32 %v408
    %vm416 = vmor %vm414, %vm415
    %v417 = vsel %vm416, %v408, %v413
    %v418 = vrsqrt.pop %v405
    %v419 = vmul.f32 %v418, %v405
    %v420 = vmul.f32 %v419, %v418
    %v421 = vmul.f32 0.5, %v420
    %v422 = vsub.f32 1.5, %v421
    %v423 = vmul.f32 %v418, %v422
    %vm424 = vweird.f32 %v405
    %vm425 = vweird.f32 %v418
    %vm426 = vmor %vm424, %vm425
    %v427 = vsel %vm426, %v418, %v423
    %v428 = vrsqrt.pop %v406
    %v429 = vmul.f32 %v428, %v406
    %v430 = vmul.f32 %v429, %v428
    %v431 = vmul.f32 0.5, %v430
    %v432 = vsub.f32 1.5, %v431
    %v433 = vmul.f32 %v428, %v432
    %vm434 = vweird.f32 %v406
    %vm435 = vweird.f32 %v428
    %vm436 = vmor %vm434, %vm435
    %v437 = vsel %vm436, %v428, %v433
    %v438 = vrsqrt.pop %v407
    %v439 = vmul.f32 %v438, %v407
    %v440 = vmul.f32 %v439, %v438
    %v441 = vmul.f32 0.5, %v440
    %v442 = vsub.f32 1.5, %v441
    %v443 = vmul.f32 %v438, %v442
    %vm444 = vweird.f32 %v407
    %vm445 = vweird.f32 %v438
    %vm446 = vmor %vm444, %vm445
    %v447 = vsel %vm446, %v438, %v443
    %v448 = vmul.f32 %v384, %v417
    %v449 = vmul.f32 %v385, %v427
    %v450 = vmul.f32 %v386, %v437
    %v451 = vmul.f32 %v387, %v447
    %v453 = vperm.slane %v363, 0
    %v455 = vmul.f32 %v448, %v453
    %v456 = vmul.f32 %v449, %v453
    %v457 = vmul.f32 %v450, %v453
    %v458 = vmul.f32 %v451, %v453
    %v460 = vperm.slane %v364, 0
    %v462 = vadd.f32 %v455, %v460
    %v463 = vadd.f32 %v456, %v460
    %v464 = vadd.f32 %v457, %v460
    %v465 = vadd.f32 %v458, %v460
    %v466 = vld [vmem:[%s1] sm:$0x3]
    %v467 = vsub.f32 1.0, %v466
    %v468 = vmul.f32 %v467, -1e+09
    %v469 = vperm.slane %v468, 0
    %v470 = vperm.slane %v468, 1
    %v471 = vpack.c.bf16 %v463, %v462
    %v472 = vpack.c.bf16 %v465, %v464
    %v473 = vld [vmem:[#allocation8] sm:$0xff]
    %v474 = vld [vmem:[#allocation8 + $0x8] sm:$0xf]
    %v475 = vld [vmem:[#allocation8 + $0xc] sm:$0xff]
    %v476 = vld [vmem:[#allocation8 + $0x14] sm:$0xf]
    %v477 = vld [vmem:[#allocation8 + $0x18] sm:$0xff]
    %v478 = vld [vmem:[#allocation8 + $0x20] sm:$0xf]
    %v479 = vld [vmem:[#allocation8 + $0x24] sm:$0xff]
    %v480 = vld [vmem:[#allocation8 + $0x2c] sm:$0xf]
    %v481 = vld [vmem:[#allocation8 + $0x30] sm:$0xff]
    %v482 = vld [vmem:[#allocation8 + $0x38] sm:$0xf]
    %v483 = vld [vmem:[#allocation8 + $0x3c] sm:$0xff]
    %v484 = vld [vmem:[#allocation8 + $0x44] sm:$0xf]
    %v485 = vld [vmem:[#allocation8 + $0x48] sm:$0xff]
    %v486 = vld [vmem:[#allocation8 + $0x50] sm:$0xf]
    %v487 = vld [vmem:[#allocation8 + $0x54] sm:$0xff]
    %v488 = vld [vmem:[#allocation8 + $0x5c] sm:$0xf]
    %v489 = vld [vmem:[#allocation8 + $0x60] sm:$0xff]
    %v490 = vld [vmem:[#allocation8 + $0x68] sm:$0xf]
    %v491 = vld [vmem:[#allocation8 + $0x6c] sm:$0xff]
    %v492 = vld [vmem:[#allocation8 + $0x74] sm:$0xf]
    %v493 = vld [vmem:[#allocation8 + $0x78] sm:$0xff]
    %v494 = vld [vmem:[#allocation8 + $0x80] sm:$0xf]
    %v495 = vld [vmem:[#allocation8 + $0x84] sm:$0xff]
    %v496 = vld [vmem:[#allocation8 + $0x8c] sm:$0xf]
    %v497 = vld [vmem:[#allocation8 + $0x90] sm:$0xff]
    %v498 = vld [vmem:[#allocation8 + $0x98] sm:$0xf]
    %v499 = vld [vmem:[#allocation8 + $0x9c] sm:$0xff]
    %v500 = vld [vmem:[#allocation8 + $0xa4] sm:$0xf]
    %v501 = vld [vmem:[#allocation8 + $0xa8] sm:$0xff]
    %v502 = vld [vmem:[#allocation8 + $0xb0] sm:$0xf]
    %v503 = vld [vmem:[#allocation8 + $0xb4] sm:$0xff]
    %v504 = vld [vmem:[#allocation8 + $0xbc] sm:$0xf]
    %v505 = vld [vmem:[#allocation10] sm:$0x7]
    %v507 = vperm.slane %v505, 0
    %v508 = vperm.slane %v505, 1
    %v509 = vperm.slane %v505, 2
    %v545 = vunpack.c.l.b16 %v473
    %v546 = vunpack.c.h.b16 %v473
    %v547 = vunpack.c.l.b16 %v474
    %v548 = vunpack.c.l.b16 %v475
    %v549 = vunpack.c.h.b16 %v475
    %v550 = vunpack.c.l.b16 %v476
    %v551 = vunpack.c.l.b16 %v477
    %v552 = vunpack.c.h.b16 %v477
    %v553 = vunpack.c.l.b16 %v478
    %v554 = vunpack.c.l.b16 %v479
    %v555 = vunpack.c.h.b16 %v479
    %v556 = vunpack.c.l.b16 %v480
    %v557 = vunpack.c.l.b16 %v481
    %v558 = vunpack.c.h.b16 %v481
    %v559 = vunpack.c.l.b16 %v482
    %v560 = vunpack.c.l.b16 %v483
    %v561 = vunpack.c.h.b16 %v483
    %v562 = vunpack.c.l.b16 %v484
    %v563 = vunpack.c.l.b16 %v485
    %v564 = vunpack.c.h.b16 %v485
    %v565 = vunpack.c.l.b16 %v486
    %v566 = vunpack.c.l.b16 %v487
    %v567 = vunpack.c.h.b16 %v487
    %v568 = vunpack.c.l.b16 %v488
    %v569 = vunpack.c.l.b16 %v489
    %v570 = vunpack.c.h.b16 %v489
    %v571 = vunpack.c.l.b16 %v490
    %v572 = vunpack.c.l.b16 %v491
    %v573 = vunpack.c.h.b16 %v491
    %v574 = vunpack.c.l.b16 %v492
    %v575 = vunpack.c.l.b16 %v493
    %v576 = vunpack.c.h.b16 %v493
    %v577 = vunpack.c.l.b16 %v494
    %v578 = vunpack.c.l.b16 %v495
    %v579 = vunpack.c.h.b16 %v495
    %v580 = vunpack.c.l.b16 %v496
    %v581 = vunpack.c.l.b16 %v497
    %v582 = vunpack.c.h.b16 %v497
    %v583 = vunpack.c.l.b16 %v498
    %v584 = vunpack.c.l.b16 %v499
    %v585 = vunpack.c.h.b16 %v499
    %v586 = vunpack.c.l.b16 %v500
    %v587 = vunpack.c.l.b16 %v501
    %v588 = vunpack.c.h.b16 %v501
    %v589 = vunpack.c.l.b16 %v502
    %v590 = vunpack.c.l.b16 %v503
    %v591 = vunpack.c.h.b16 %v503
    %v592 = vunpack.c.l.b16 %v504
    %v593 = vpack.c.b16 %v548, %v545
    %v594 = vpack.c.b16 %v549, %v546
    %v595 = vpack.c.b16 %v550, %v547
    %v596 = vpack.c.b16 %v554, %v551
    %v597 = vpack.c.b16 %v555, %v552
    %v598 = vpack.c.b16 %v556, %v553
    %v599 = vpack.c.b16 %v560, %v557
    %v600 = vpack.c.b16 %v561, %v558
    %v601 = vpack.c.b16 %v562, %v559
    %v602 = vpack.c.b16 %v566, %v563
    %v603 = vpack.c.b16 %v567, %v564
    %v604 = vpack.c.b16 %v568, %v565
    %v605 = vpack.c.b16 %v572, %v569
    %v606 = vpack.c.b16 %v573, %v570
    %v607 = vpack.c.b16 %v574, %v571
    %v608 = vpack.c.b16 %v578, %v575
    %v609 = vpack.c.b16 %v579, %v576
    %v610 = vpack.c.b16 %v580, %v577
    %v611 = vpack.c.b16 %v584, %v581
    %v612 = vpack.c.b16 %v585, %v582
    %v613 = vpack.c.b16 %v586, %v583
    %v614 = vpack.c.b16 %v590, %v587
    %v615 = vpack.c.b16 %v591, %v588
    %v616 = vpack.c.b16 %v592, %v589
    %641 = vmatpush.bf16.msra.mxu0 %v614
    %642 = vmatpush.bf16.msra.mxu0 %v611
    %643 = vmatpush.bf16.msra.mxu0 %v608
    %644 = vmatpush.bf16.msra.mxu0 %v605
    %645 = vmatpush.bf16.msra.mxu0 %v602
    %646 = vmatpush.bf16.msra.mxu0 %v599
    %647 = vmatpush.bf16.msra.mxu0 %v596
    %648 = vmatpush.bf16.msra.mxu0 %v593
    %649 = vmatmul.bf16.gmra.mxu0 %v471
    %v650 = vpop.f32.mrf.mxu0
    %v651 = vadd.f32 %v507, %v650
    %v652 = vpop.f32.mrf.mxu0
    %v653 = vadd.f32 %v507, %v652
    %654 = vmatmul.bf16.gmra.mxu0 %v472
    %v655 = vpop.f32.mrf.mxu0
    %v656 = vadd.f32 %v507, %v655
    %v657 = vpop.f32.mrf.mxu0
    %v658 = vadd.f32 %v507, %v657
    %659 = vdwg.mxu0
    %660 = vmatpush.bf16.msra.mxu0 %v615
    %661 = vmatpush.bf16.msra.mxu0 %v612
    %662 = vmatpush.bf16.msra.mxu0 %v609
    %663 = vmatpush.bf16.msra.mxu0 %v606
    %664 = vmatpush.bf16.msra.mxu0 %v603
    %665 = vmatpush.bf16.msra.mxu0 %v600
    %666 = vmatpush.bf16.msra.mxu0 %v597
    %667 = vmatpush.bf16.msra.mxu0 %v594
    %668 = vmatmul.bf16.gmra.mxu0 %v471
    %v669 = vpop.f32.mrf.mxu0
    %v670 = vadd.f32 %v508, %v669
    %v671 = vpop.f32.mrf.mxu0
    %v672 = vadd.f32 %v508, %v671
    %673 = vmatmul.bf16.gmra.mxu0 %v472
    %v674 = vpop.f32.mrf.mxu0
    %v675 = vadd.f32 %v508, %v674
    %v676 = vpop.f32.mrf.mxu0
    %v677 = vadd.f32 %v508, %v676
    %678 = vdwg.mxu0
    %679 = vmatpush.bf16.msra.mxu0 %v616
    %680 = vmatpush.bf16.msra.mxu0 %v613
    %681 = vmatpush.bf16.msra.mxu0 %v610
    %682 = vmatpush.bf16.msra.mxu0 %v607
    %683 = vmatpush.bf16.msra.mxu0 %v604
    %684 = vmatpush.bf16.msra.mxu0 %v601
    %685 = vmatpush.bf16.msra.mxu0 %v598
    %686 = vmatpush.bf16.msra.mxu0 %v595
    %687 = vmatmul.bf16.gmra.mxu0 %v471
    %v688 = vpop.f32.mrf.mxu0
    %v689 = vadd.f32 %v509, %v688
    %v690 = vpop.f32.mrf.mxu0
    %v691 = vadd.f32 %v509, %v690
    %692 = vmatmul.bf16.gmra.mxu0 %v472
    %v693 = vpop.f32.mrf.mxu0
    %v694 = vadd.f32 %v509, %v693
    %v695 = vpop.f32.mrf.mxu0
    %v696 = vadd.f32 %v509, %v695
    %697 = vdwg.mxu0
    %v698 = vpack.c.bf16 %v670, %v651
    %v699 = vpack.c.bf16 %v689, %v689
    %v700 = vpack.c.bf16 %v672, %v653
    %v701 = vpack.c.bf16 %v691, %v691
    %v702 = vpack.c.bf16 %v675, %v656
    %v703 = vpack.c.bf16 %v694, %v694
    %v704 = vpack.c.bf16 %v677, %v658
    %v705 = vpack.c.bf16 %v696, %v696
    %v708 = vunpack.c.l.b16 %v698
    %v709 = vunpack.c.l.b16 %v700
    %v710 = vpack.c.b16 %v709, %v708
    %v711 = vunpack.c.h.b16 %v698
    %v712 = vunpack.c.h.b16 %v700
    %v713 = vpack.c.b16 %v712, %v711
    %vm714 = vcmask 523264
    %v716 = vsel %vm714, %v710, 0
    %v719 = vsel %vm714, %v713, 0
    %721 = vmatpush.bf16.xpose.msra.mxu0 0
    %722 = vmatpush.bf16.xpose.msra.mxu0 0
    %723 = vmatpush.bf16.xpose.msra.mxu0 0
    %724 = vmatpush.bf16.xpose.msra.mxu0 0
    %725 = vmatpush.bf16.xpose.msra.mxu0 0
    %726 = vmatpush.bf16.xpose.msra.mxu0 0
    %727 = vmatpush.bf16.xpose.msra.mxu0 0
    %728 = vmatpush.bf16.xpose.msra.mxu0 %v719
    %729 = vmatmul.bf16.gmra.mxu0 %v716
    %v730 = vpop.f32.mrf.mxu0
    %v731 = vadd.f32 0.0, %v730
    %v732 = vpop.f32.mrf.mxu0
    %v733 = vadd.f32 0.0, %v732
    %734 = vdwg.mxu0
    %v735 = vmul.f32 %v731, 0.125
    %v736 = vmul.f32 %v733, 0.125
    %v737 = vadd.f32 %v735, %v469
    %v738 = vadd.f32 %v736, %v469
    %vm739 = vcmask 130048
    %v740 = vsel %vm739, %v737, -inf
    %741 = vmax.xlane.f32.xlu0 %v740
    %v742 = vpop.xlane.xlu0 %741
    %v743 = vsel %vm739, %v738, -inf
    %744 = vmax.xlane.f32.xlu0 %v743
    %v745 = vpop.xlane.xlu0 %744
    %v746 = vsub.f32 %v737, %v742
    %v747 = vsub.f32 %v738, %v745
    %v748 = vmul.f32 %v746, 1.442695
    %v749 = vpow.pop %v748
    %v750 = vmul.f32 %v747, 1.442695
    %v751 = vpow.pop %v750
    %v752 = vsel %vm739, %v749, 0.0
    %753 = vadd.xlane.f32.xlu0 %v752
    %v754 = vpop.xlane.xlu0 %753
    %v755 = vsel %vm739, %v751, 0.0
    %756 = vadd.xlane.f32.xlu0 %v755
    %v757 = vpop.xlane.xlu0 %756
    %v758 = vrcp.pop %v754
    %v759 = vrcp.pop %v757
    %v760 = vmul.f32 %v749, %v758
    %v761 = vmul.f32 %v751, %v759
    %v762 = vpack.c.bf16 %v761, %v760
    %v765 = vunpack.c.l.b16 %v699
    %v766 = vunpack.c.l.b16 %v701
    %v767 = vpack.c.b16 %v766, %v765
    %v770 = vsel %vm739, %v762, 0
    %772 = vmatpush.bf16.msra.mxu0 0
    %773 = vmatpush.bf16.msra.mxu0 0
    %774 = vmatpush.bf16.msra.mxu0 0
    %775 = vmatpush.bf16.msra.mxu0 0
    %776 = vmatpush.bf16.msra.mxu0 0
    %777 = vmatpush.bf16.msra.mxu0 0
    %778 = vmatpush.bf16.msra.mxu0 0
    %779 = vmatpush.bf16.msra.mxu0 %v767
    %780 = vmatmul.bf16.gmra.mxu0 %v770
    %v781 = vpop.f32.mrf.mxu0
    %v782 = vadd.f32 0.0, %v781
    %v783 = vpop.f32.mrf.mxu0
    %v784 = vadd.f32 0.0, %v783
    %785 = vdwg.mxu0
    %786 = vrot.lane.b32.xlu0 %v710, 64
    %v787 = vpop.permute.xlu0 %786
    %788 = vrot.lane.b32.xlu0 %v713, 64
    %v789 = vpop.permute.xlu0 %788
    %v791 = vsel %vm714, %v787, 0
    %v794 = vsel %vm714, %v789, 0
    %796 = vmatpush.bf16.xpose.msra.mxu0 0
    %797 = vmatpush.bf16.xpose.msra.mxu0 0
    %798 = vmatpush.bf16.xpose.msra.mxu0 0
    %799 = vmatpush.bf16.xpose.msra.mxu0 0
    %800 = vmatpush.bf16.xpose.msra.mxu0 0
    %801 = vmatpush.bf16.xpose.msra.mxu0 0
    %802 = vmatpush.bf16.xpose.msra.mxu0 0
    %803 = vmatpush.bf16.xpose.msra.mxu0 %v794
    %804 = vmatmul.bf16.gmra.mxu0 %v791
    %v805 = vpop.f32.mrf.mxu0
    %v806 = vadd.f32 0.0, %v805
    %v807 = vpop.f32.mrf.mxu0
    %v808 = vadd.f32 0.0, %v807
    %809 = vdwg.mxu0
    %v810 = vmul.f32 %v806, 0.125
    %v811 = vmul.f32 %v808, 0.125
    %v812 = vadd.f32 %v810, %v469
    %v813 = vadd.f32 %v811, %v469
    %v814 = vsel %vm739, %v812, -inf
    %815 = vmax.xlane.f32.xlu0 %v814
    %v816 = vpop.xlane.xlu0 %815
    %v817 = vsel %vm739, %v813, -inf
    %818 = vmax.xlane.f32.xlu0 %v817
    %v819 = vpop.xlane.xlu0 %818
    %v820 = vsub.f32 %v812, %v816
    %v821 = vsub.f32 %v813, %v819
    %v822 = vmul.f32 %v820, 1.442695
    %v823 = vpow.pop %v822
    %v824 = vmul.f32 %v821, 1.442695
    %v825 = vpow.pop %v824
    %v826 = vsel %vm739, %v823, 0.0
    %827 = vadd.xlane.f32.xlu0 %v826
    %v828 = vpop.xlane.xlu0 %827
    %v829 = vsel %vm739, %v825, 0.0
    %830 = vadd.xlane.f32.xlu0 %v829
    %v831 = vpop.xlane.xlu0 %830
    %v832 = vrcp.pop %v828
    %v833 = vrcp.pop %v831
    %v834 = vmul.f32 %v823, %v832
    %v835 = vmul.f32 %v825, %v833
    %v836 = vpack.c.bf16 %v835, %v834
    %837 = vrot.lane.b32.xlu0 %v767, 64
    %v838 = vpop.permute.xlu0 %837
    %v841 = vsel %vm739, %v836, 0
    %843 = vmatpush.bf16.msra.mxu0 0
    %844 = vmatpush.bf16.msra.mxu0 0
    %845 = vmatpush.bf16.msra.mxu0 0
    %846 = vmatpush.bf16.msra.mxu0 0
    %847 = vmatpush.bf16.msra.mxu0 0
    %848 = vmatpush.bf16.msra.mxu0 0
    %849 = vmatpush.bf16.msra.mxu0 0
    %850 = vmatpush.bf16.msra.mxu0 %v838
    %851 = vmatmul.bf16.gmra.mxu0 %v841
    %v852 = vpop.f32.mrf.mxu0
    %v853 = vadd.f32 0.0, %v852
    %v854 = vpop.f32.mrf.mxu0
    %v855 = vadd.f32 0.0, %v854
    %856 = vdwg.mxu0
    %859 = vrot.lane.b32.xlu0 %v853, 64
    %v860 = vpop.permute.xlu0 %859
    %861 = vrot.lane.b32.xlu0 %v855, 64
    %v862 = vpop.permute.xlu0 %861
    %v865 = vsel %vm714, %v782, %v860
    %v866 = vsel %vm714, %v784, %v862
    %v869 = vunpack.c.l.b16 %v702
    %v870 = vunpack.c.l.b16 %v704
    %v871 = vpack.c.b16 %v870, %v869
    %v872 = vunpack.c.h.b16 %v702
    %v873 = vunpack.c.h.b16 %v704
    %v874 = vpack.c.b16 %v873, %v872
    %v876 = vsel %vm714, %v871, 0
    %v879 = vsel %vm714, %v874, 0
    %881 = vmatpush.bf16.xpose.msra.mxu0 0
    %882 = vmatpush.bf16.xpose.msra.mxu0 0
    %883 = vmatpush.bf16.xpose.msra.mxu0 0
    %884 = vmatpush.bf16.xpose.msra.mxu0 0
    %885 = vmatpush.bf16.xpose.msra.mxu0 0
    %886 = vmatpush.bf16.xpose.msra.mxu0 0
    %887 = vmatpush.bf16.xpose.msra.mxu0 0
    %888 = vmatpush.bf16.xpose.msra.mxu0 %v879
    %889 = vmatmul.bf16.gmra.mxu0 %v876
    %v890 = vpop.f32.mrf.mxu0
    %v891 = vadd.f32 0.0, %v890
    %v892 = vpop.f32.mrf.mxu0
    %v893 = vadd.f32 0.0, %v892
    %894 = vdwg.mxu0
    %v895 = vmul.f32 %v891, 0.125
    %v896 = vmul.f32 %v893, 0.125
    %v897 = vadd.f32 %v895, %v470
    %v898 = vadd.f32 %v896, %v470
    %v899 = vsel %vm739, %v897, -inf
    %900 = vmax.xlane.f32.xlu0 %v899
    %v901 = vpop.xlane.xlu0 %900
    %v902 = vsel %vm739, %v898, -inf
    %903 = vmax.xlane.f32.xlu0 %v902
    %v904 = vpop.xlane.xlu0 %903
    %v905 = vsub.f32 %v897, %v901
    %v906 = vsub.f32 %v898, %v904
    %v907 = vmul.f32 %v905, 1.442695
    %v908 = vpow.pop %v907
    %v909 = vmul.f32 %v906, 1.442695
    %v910 = vpow.pop %v909
    %v911 = vsel %vm739, %v908, 0.0
    %912 = vadd.xlane.f32.xlu0 %v911
    %v913 = vpop.xlane.xlu0 %912
    %v914 = vsel %vm739, %v910, 0.0
    %915 = vadd.xlane.f32.xlu0 %v914
    %v916 = vpop.xlane.xlu0 %915
    %v917 = vrcp.pop %v913
    %v918 = vrcp.pop %v916
    %v919 = vmul.f32 %v908, %v917
    %v920 = vmul.f32 %v910, %v918
    %v921 = vpack.c.bf16 %v920, %v919
    %v924 = vunpack.c.l.b16 %v703
    %v925 = vunpack.c.l.b16 %v705
    %v926 = vpack.c.b16 %v925, %v924
    %v929 = vsel %vm739, %v921, 0
    %931 = vmatpush.bf16.msra.mxu0 0
    %932 = vmatpush.bf16.msra.mxu0 0
    %933 = vmatpush.bf16.msra.mxu0 0
    %934 = vmatpush.bf16.msra.mxu0 0
    %935 = vmatpush.bf16.msra.mxu0 0
    %936 = vmatpush.bf16.msra.mxu0 0
    %937 = vmatpush.bf16.msra.mxu0 0
    %938 = vmatpush.bf16.msra.mxu0 %v926
    %939 = vmatmul.bf16.gmra.mxu0 %v929
    %v940 = vpop.f32.mrf.mxu0
    %v941 = vadd.f32 0.0, %v940
    %v942 = vpop.f32.mrf.mxu0
    %v943 = vadd.f32 0.0, %v942
    %944 = vdwg.mxu0
    %945 = vrot.lane.b32.xlu0 %v871, 64
    %v946 = vpop.permute.xlu0 %945
    %947 = vrot.lane.b32.xlu0 %v874, 64
    %v948 = vpop.permute.xlu0 %947
    %v950 = vsel %vm714, %v946, 0
    %v953 = vsel %vm714, %v948, 0
    %955 = vmatpush.bf16.xpose.msra.mxu0 0
    %956 = vmatpush.bf16.xpose.msra.mxu0 0
    %957 = vmatpush.bf16.xpose.msra.mxu0 0
    %958 = vmatpush.bf16.xpose.msra.mxu0 0
    %959 = vmatpush.bf16.xpose.msra.mxu0 0
    %960 = vmatpush.bf16.xpose.msra.mxu0 0
    %961 = vmatpush.bf16.xpose.msra.mxu0 0
    %962 = vmatpush.bf16.xpose.msra.mxu0 %v953
    %963 = vmatmul.bf16.gmra.mxu0 %v950
    %v964 = vpop.f32.mrf.mxu0
    %v965 = vadd.f32 0.0, %v964
    %v966 = vpop.f32.mrf.mxu0
    %v967 = vadd.f32 0.0, %v966
    %968 = vdwg.mxu0
    %v969 = vmul.f32 %v965, 0.125
    %v970 = vmul.f32 %v967, 0.125
    %v971 = vadd.f32 %v969, %v470
    %v972 = vadd.f32 %v970, %v470
    %v973 = vsel %vm739, %v971, -inf
    %974 = vmax.xlane.f32.xlu0 %v973
    %v975 = vpop.xlane.xlu0 %974
    %v976 = vsel %vm739, %v972, -inf
    %977 = vmax.xlane.f32.xlu0 %v976
    %v978 = vpop.xlane.xlu0 %977
    %v979 = vsub.f32 %v971, %v975
    %v980 = vsub.f32 %v972, %v978
    %v981 = vmul.f32 %v979, 1.442695
    %v982 = vpow.pop %v981
    %v983 = vmul.f32 %v980, 1.442695
    %v984 = vpow.pop %v983
    %v985 = vsel %vm739, %v982, 0.0
    %986 = vadd.xlane.f32.xlu0 %v985
    %v987 = vpop.xlane.xlu0 %986
    %v988 = vsel %vm739, %v984, 0.0
    %989 = vadd.xlane.f32.xlu0 %v988
    %v990 = vpop.xlane.xlu0 %989
    %v991 = vrcp.pop %v987
    %v992 = vrcp.pop %v990
    %v993 = vmul.f32 %v982, %v991
    %v994 = vmul.f32 %v984, %v992
    %v995 = vpack.c.bf16 %v994, %v993
    %996 = vrot.lane.b32.xlu0 %v926, 64
    %v997 = vpop.permute.xlu0 %996
    %v1000 = vsel %vm739, %v995, 0
    %1002 = vmatpush.bf16.msra.mxu0 0
    %1003 = vmatpush.bf16.msra.mxu0 0
    %1004 = vmatpush.bf16.msra.mxu0 0
    %1005 = vmatpush.bf16.msra.mxu0 0
    %1006 = vmatpush.bf16.msra.mxu0 0
    %1007 = vmatpush.bf16.msra.mxu0 0
    %1008 = vmatpush.bf16.msra.mxu0 0
    %1009 = vmatpush.bf16.msra.mxu0 %v997
    %1010 = vmatmul.bf16.gmra.mxu0 %v1000
    %v1011 = vpop.f32.mrf.mxu0
    %v1012 = vadd.f32 0.0, %v1011
    %v1013 = vpop.f32.mrf.mxu0
    %v1014 = vadd.f32 0.0, %v1013
    %1015 = vdwg.mxu0
    %1018 = vrot.lane.b32.xlu0 %v1012, 64
    %v1019 = vpop.permute.xlu0 %1018
    %1020 = vrot.lane.b32.xlu0 %v1014, 64
    %v1021 = vpop.permute.xlu0 %1020
    %v1024 = vsel %vm714, %v941, %v1019
    %v1025 = vsel %vm714, %v943, %v1021
    %v1026 = vpack.c.bf16 %v866, %v865
    %v1027 = vpack.c.bf16 %v1025, %v1024
    %v1028 = vld [vmem:[#allocation11] sm:$0xf]
    %v1029 = vld [vmem:[#allocation11 + $0x4] sm:$0xf]
    %v1030 = vld [vmem:[#allocation11 + $0x8] sm:$0xf]
    %v1031 = vld [vmem:[#allocation11 + $0xc] sm:$0xf]
    %v1032 = vld [vmem:[#allocation11 + $0x10] sm:$0xf]
    %v1033 = vld [vmem:[#allocation11 + $0x14] sm:$0xf]
    %v1034 = vld [vmem:[#allocation11 + $0x18] sm:$0xf]
    %v1035 = vld [vmem:[#allocation11 + $0x1c] sm:$0xf]
    %v1036 = vld [vmem:[#allocation11 + $0x20] sm:$0xf]
    %v1037 = vld [vmem:[#allocation11 + $0x24] sm:$0xf]
    %v1038 = vld [vmem:[#allocation11 + $0x28] sm:$0xf]
    %v1039 = vld [vmem:[#allocation11 + $0x2c] sm:$0xf]
    %v1040 = vld [vmem:[#allocation11 + $0x30] sm:$0xf]
    %v1041 = vld [vmem:[#allocation11 + $0x34] sm:$0xf]
    %v1042 = vld [vmem:[#allocation11 + $0x38] sm:$0xf]
    %v1043 = vld [vmem:[#allocation11 + $0x3c] sm:$0xf]
    %v1044 = vld [vmem:[#allocation13] sm:$0x1]
    %v1046 = vperm.slane %v1044, 0
    %v1064 = vunpack.c.l.b16 %v1028
    %v1065 = vunpack.c.l.b16 %v1029
    %v1066 = vunpack.c.l.b16 %v1030
    %v1067 = vunpack.c.l.b16 %v1031
    %v1068 = vunpack.c.l.b16 %v1032
    %v1069 = vunpack.c.l.b16 %v1033
    %v1070 = vunpack.c.l.b16 %v1034
    %v1071 = vunpack.c.l.b16 %v1035
    %v1072 = vunpack.c.l.b16 %v1036
    %v1073 = vunpack.c.l.b16 %v1037
    %v1074 = vunpack.c.l.b16 %v1038
    %v1075 = vunpack.c.l.b16 %v1039
    %v1076 = vunpack.c.l.b16 %v1040
    %v1077 = vunpack.c.l.b16 %v1041
    %v1078 = vunpack.c.l.b16 %v1042
    %v1079 = vunpack.c.l.b16 %v1043
    %v1080 = vpack.c.b16 %v1065, %v1064
    %v1081 = vpack.c.b16 %v1067, %v1066
    %v1082 = vpack.c.b16 %v1069, %v1068
    %v1083 = vpack.c.b16 %v1071, %v1070
    %v1084 = vpack.c.b16 %v1073, %v1072
    %v1085 = vpack.c.b16 %v1075, %v1074
    %v1086 = vpack.c.b16 %v1077, %v1076
    %v1087 = vpack.c.b16 %v1079, %v1078
    %1096 = vmatpush.bf16.msra.mxu0 %v1087
    %1097 = vmatpush.bf16.msra.mxu0 %v1086
    %1098 = vmatpush.bf16.msra.mxu0 %v1085
    %1099 = vmatpush.bf16.msra.mxu0 %v1084
    %1100 = vmatpush.bf16.msra.mxu0 %v1083
    %1101 = vmatpush.bf16.msra.mxu0 %v1082
    %1102 = vmatpush.bf16.msra.mxu0 %v1081
    %1103 = vmatpush.bf16.msra.mxu0 %v1080
    %1104 = vmatmul.bf16.gmra.mxu0 %v1026
    %v1105 = vpop.f32.mrf.mxu0
    %v1106 = vadd.f32 %v1046, %v1105
    %v1107 = vpop.f32.mrf.mxu0
    %v1108 = vadd.f32 %v1046, %v1107
    %1109 = vmatmul.bf16.gmra.mxu0 %v1027
    %v1110 = vpop.f32.mrf.mxu0
    %v1111 = vadd.f32 %v1046, %v1110
    %v1112 = vpop.f32.mrf.mxu0
    %v1113 = vadd.f32 %v1046, %v1112
    %1114 = vdwg.mxu0
    %v1115 = vadd.f32 %v462, %v1106
    %v1116 = vadd.f32 %v463, %v1108
    %v1117 = vadd.f32 %v464, %v1111
    %v1118 = vadd.f32 %v465, %v1113
    %v1119 = vld [vmem:[%s10] sm:$0x1]
    %v1120 = vld [vmem:[#allocation14] sm:$0x1]
    %1121 = vadd.xlane.f32.xlu0 %v1115
    %v1122 = vpop.xlane.xlu0 %1121
    %1123 = vadd.xlane.f32.xlu0 %v1116
    %v1124 = vpop.xlane.xlu0 %1123
    %1125 = vadd.xlane.f32.xlu0 %v1117
    %v1126 = vpop.xlane.xlu0 %1125
    %1127 = vadd.xlane.f32.xlu0 %v1118
    %v1128 = vpop.xlane.xlu0 %1127
    %v1129 = vmul.f32 %v1122, %v379
    %v1130 = vmul.f32 %v1124, %v379
    %v1131 = vmul.f32 %v1126, %v379
    %v1132 = vmul.f32 %v1128, %v379
    %v1133 = vsub.f32 %v1115, %v1129
    %v1134 = vsub.f32 %v1116, %v1130
    %v1135 = vsub.f32 %v1117, %v1131
    %v1136 = vsub.f32 %v1118, %v1132
    %v1137 = vmul.f32 %v1133, %v1133
    %v1138 = vmul.f32 %v1134, %v1134
    %v1139 = vmul.f32 %v1135, %v1135
    %v1140 = vmul.f32 %v1136, %v1136
    %1141 = vadd.xlane.f32.xlu0 %v1137
    %v1142 = vpop.xlane.xlu0 %1141
    %1143 = vadd.xlane.f32.xlu0 %v1138
    %v1144 = vpop.xlane.xlu0 %1143
    %1145 = vadd.xlane.f32.xlu0 %v1139
    %v1146 = vpop.xlane.xlu0 %1145
    %1147 = vadd.xlane.f32.xlu0 %v1140
    %v1148 = vpop.xlane.xlu0 %1147
    %v1149 = vmul.f32 %v1142, %v379
    %v1150 = vmul.f32 %v1144, %v379
    %v1151 = vmul.f32 %v1146, %v379
    %v1152 = vmul.f32 %v1148, %v379
    %v1153 = vadd.f32 %v1149, 1e-12
    %v1154 = vadd.f32 %v1150, 1e-12
    %v1155 = vadd.f32 %v1151, 1e-12
    %v1156 = vadd.f32 %v1152, 1e-12
    %v1157 = vrsqrt.pop %v1153
    %v1158 = vmul.f32 %v1157, %v1153
    %v1159 = vmul.f32 %v1158, %v1157
    %v1160 = vmul.f32 0.5, %v1159
    %v1161 = vsub.f32 1.5, %v1160
    %v1162 = vmul.f32 %v1157, %v1161
    %vm1163 = vweird.f32 %v1153
    %vm1164 = vweird.f32 %v1157
    %vm1165 = vmor %vm1163, %vm1164
    %v1166 = vsel %vm1165, %v1157, %v1162
    %v1167 = vrsqrt.pop %v1154
    %v1168 = vmul.f32 %v1167, %v1154
    %v1169 = vmul.f32 %v1168, %v1167
    %v1170 = vmul.f32 0.5, %v1169
    %v1171 = vsub.f32 1.5, %v1170
    %v1172 = vmul.f32 %v1167, %v1171
    %vm1173 = vweird.f32 %v1154
    %vm1174 = vweird.f32 %v1167
    %vm1175 = vmor %vm1173, %vm1174
    %v1176 = vsel %vm1175, %v1167, %v1172
    %v1177 = vrsqrt.pop %v1155
    %v1178 = vmul.f32 %v1177, %v1155
    %v1179 = vmul.f32 %v1178, %v1177
    %v1180 = vmul.f32 0.5, %v1179
    %v1181 = vsub.f32 1.5, %v1180
    %v1182 = vmul.f32 %v1177, %v1181
    %vm1183 = vweird.f32 %v1155
    %vm1184 = vweird.f32 %v1177
    %vm1185 = vmor %vm1183, %vm1184
    %v1186 = vsel %vm1185, %v1177, %v1182
    %v1187 = vrsqrt.pop %v1156
    %v1188 = vmul.f32 %v1187, %v1156
    %v1189 = vmul.f32 %v1188, %v1187
    %v1190 = vmul.f32 0.5, %v1189
    %v1191 = vsub.f32 1.5, %v1190
    %v1192 = vmul.f32 %v1187, %v1191
    %vm1193 = vweird.f32 %v1156
    %vm1194 = vweird.f32 %v1187
    %vm1195 = vmor %vm1193, %vm1194
    %v1196 = vsel %vm1195, %v1187, %v1192
    %v1197 = vmul.f32 %v1133, %v1166
    %v1198 = vmul.f32 %v1134, %v1176
    %v1199 = vmul.f32 %v1135, %v1186
    %v1200 = vmul.f32 %v1136, %v1196
    %v1202 = vperm.slane %v1119, 0
    %v1204 = vmul.f32 %v1197, %v1202
    %v1205 = vmul.f32 %v1198, %v1202
    %v1206 = vmul.f32 %v1199, %v1202
    %v1207 = vmul.f32 %v1200, %v1202
    %v1209 = vperm.slane %v1120, 0
    %v1211 = vadd.f32 %v1204, %v1209
    %v1212 = vadd.f32 %v1205, %v1209
    %v1213 = vadd.f32 %v1206, %v1209
    %v1214 = vadd.f32 %v1207, %v1209
    %v1215 = vpack.c.bf16 %v1212, %v1211
    %v1216 = vpack.c.bf16 %v1214, %v1213
    %v1217 = vld [vmem:[#allocation16] sm:$0xff]
    %v1218 = vld [vmem:[#allocation16 + $0x8] sm:$0xff]
    %v1219 = vld [vmem:[#allocation16 + $0x10] sm:$0xff]
    %v1220 = vld [vmem:[#allocation16 + $0x18] sm:$0xff]
    %v1221 = vld [vmem:[#allocation16 + $0x20] sm:$0xff]
    %v1222 = vld [vmem:[#allocation16 + $0x28] sm:$0xff]
    %v1223 = vld [vmem:[#allocation16 + $0x30] sm:$0xff]
    %v1224 = vld [vmem:[#allocation16 + $0x38] sm:$0xff]
    %v1225 = vld [vmem:[#allocation16 + $0x40] sm:$0xff]
    %v1226 = vld [vmem:[#allocation16 + $0x48] sm:$0xff]
    %v1227 = vld [vmem:[#allocation16 + $0x50] sm:$0xff]
    %v1228 = vld [vmem:[#allocation16 + $0x58] sm:$0xff]
    %v1229 = vld [vmem:[#allocation16 + $0x60] sm:$0xff]
    %v1230 = vld [vmem:[#allocation16 + $0x68] sm:$0xff]
    %v1231 = vld [vmem:[#allocation16 + $0x70] sm:$0xff]
    %v1232 = vld [vmem:[#allocation16 + $0x78] sm:$0xff]
    %v1233 = vld [vmem:[%s13] sm:$0x3]
    %v1235 = vperm.slane %v1233, 0
    %v1236 = vperm.slane %v1233, 1
    %v1255 = vunpack.c.l.b16 %v1217
    %v1256 = vunpack.c.h.b16 %v1217
    %v1257 = vunpack.c.l.b16 %v1218
    %v1258 = vunpack.c.h.b16 %v1218
    %v1259 = vunpack.c.l.b16 %v1219
    %v1260 = vunpack.c.h.b16 %v1219
    %v1261 = vunpack.c.l.b16 %v1220
    %v1262 = vunpack.c.h.b16 %v1220
    %v1263 = vunpack.c.l.b16 %v1221
    %v1264 = vunpack.c.h.b16 %v1221
    %v1265 = vunpack.c.l.b16 %v1222
    %v1266 = vunpack.c.h.b16 %v1222
    %v1267 = vunpack.c.l.b16 %v1223
    %v1268 = vunpack.c.h.b16 %v1223
    %v1269 = vunpack.c.l.b16 %v1224
    %v1270 = vunpack.c.h.b16 %v1224
    %v1271 = vunpack.c.l.b16 %v1225
    %v1272 = vunpack.c.h.b16 %v1225
    %v1273 = vunpack.c.l.b16 %v1226
    %v1274 = vunpack.c.h.b16 %v1226
    %v1275 = vunpack.c.l.b16 %v1227
    %v1276 = vunpack.c.h.b16 %v1227
    %v1277 = vunpack.c.l.b16 %v1228
    %v1278 = vunpack.c.h.b16 %v1228
    %v1279 = vunpack.c.l.b16 %v1229
    %v1280 = vunpack.c.h.b16 %v1229
    %v1281 = vunpack.c.l.b16 %v1230
    %v1282 = vunpack.c.h.b16 %v1230
    %v1283 = vunpack.c.l.b16 %v1231
    %v1284 = vunpack.c.h.b16 %v1231
    %v1285 = vunpack.c.l.b16 %v1232
    %v1286 = vunpack.c.h.b16 %v1232
    %v1287 = vpack.c.b16 %v1257, %v1255
    %v1288 = vpack.c.b16 %v1258, %v1256
    %v1289 = vpack.c.b16 %v1261, %v1259
    %v1290 = vpack.c.b16 %v1262, %v1260
    %v1291 = vpack.c.b16 %v1265, %v1263
    %v1292 = vpack.c.b16 %v1266, %v1264
    %v1293 = vpack.c.b16 %v1269, %v1267
    %v1294 = vpack.c.b16 %v1270, %v1268
    %v1295 = vpack.c.b16 %v1273, %v1271
    %v1296 = vpack.c.b16 %v1274, %v1272
    %v1297 = vpack.c.b16 %v1277, %v1275
    %v1298 = vpack.c.b16 %v1278, %v1276
    %v1299 = vpack.c.b16 %v1281, %v1279
    %v1300 = vpack.c.b16 %v1282, %v1280
    %v1301 = vpack.c.b16 %v1285, %v1283
    %v1302 = vpack.c.b16 %v1286, %v1284
    %1319 = vmatpush.bf16.msra.mxu0 %v1301
    %1320 = vmatpush.bf16.msra.mxu0 %v1299
    %1321 = vmatpush.bf16.msra.mxu0 %v1297
    %1322 = vmatpush.bf16.msra.mxu0 %v1295
    %1323 = vmatpush.bf16.msra.mxu0 %v1293
    %1324 = vmatpush.bf16.msra.mxu0 %v1291
    %1325 = vmatpush.bf16.msra.mxu0 %v1289
    %1326 = vmatpush.bf16.msra.mxu0 %v1287
    %1327 = vmatmul.bf16.gmra.mxu0 %v1215
    %v1328 = vpop.f32.mrf.mxu0
    %v1329 = vadd.f32 %v1235, %v1328
    %v1330 = vpop.f32.mrf.mxu0
    %v1331 = vadd.f32 %v1235, %v1330
    %1332 = vmatmul.bf16.gmra.mxu0 %v1216
    %v1333 = vpop.f32.mrf.mxu0
    %v1334 = vadd.f32 %v1235, %v1333
    %v1335 = vpop.f32.mrf.mxu0
    %v1336 = vadd.f32 %v1235, %v1335
    %1337 = vdwg.mxu0
    %1338 = vmatpush.bf16.msra.mxu0 %v1302
    %1339 = vmatpush.bf16.msra.mxu0 %v1300
    %1340 = vmatpush.bf16.msra.mxu0 %v1298
    %1341 = vmatpush.bf16.msra.mxu0 %v1296
    %1342 = vmatpush.bf16.msra.mxu0 %v1294
    %1343 = vmatpush.bf16.msra.mxu0 %v1292
    %1344 = vmatpush.bf16.msra.mxu0 %v1290
    %1345 = vmatpush.bf16.msra.mxu0 %v1288
    %1346 = vmatmul.bf16.gmra.mxu0 %v1215
    %v1347 = vpop.f32.mrf.mxu0
    %v1348 = vadd.f32 %v1236, %v1347
    %v1349 = vpop.f32.mrf.mxu0
    %v1350 = vadd.f32 %v1236, %v1349
    %1351 = vmatmul.bf16.gmra.mxu0 %v1216
    %v1352 = vpop.f32.mrf.mxu0
    %v1353 = vadd.f32 %v1236, %v1352
    %v1354 = vpop.f32.mrf.mxu0
    %v1355 = vadd.f32 %v1236, %v1354
    %1356 = vdwg.mxu0
    %v1357 = vmul.f32 %v1329, %v1329
    %v1358 = vmul.f32 %v1348, %v1348
    %v1359 = vmul.f32 %v1331, %v1331
    %v1360 = vmul.f32 %v1350, %v1350
    %v1361 = vmul.f32 %v1334, %v1334
    %v1362 = vmul.f32 %v1353, %v1353
    %v1363 = vmul.f32 %v1336, %v1336
    %v1364 = vmul.f32 %v1355, %v1355
    %v1365 = vmul.f32 %v1329, %v1357
    %v1366 = vmul.f32 %v1348, %v1358
    %v1367 = vmul.f32 %v1331, %v1359
    %v1368 = vmul.f32 %v1350, %v1360
    %v1369 = vmul.f32 %v1334, %v1361
    %v1370 = vmul.f32 %v1353, %v1362
    %v1371 = vmul.f32 %v1336, %v1363
    %v1372 = vmul.f32 %v1355, %v1364
    %v1373 = vmul.f32 %v1365, 0.044715
    %v1374 = vmul.f32 %v1366, 0.044715
    %v1375 = vmul.f32 %v1367, 0.044715
    %v1376 = vmul.f32 %v1368, 0.044715
    %v1377 = vmul.f32 %v1369, 0.044715
    %v1378 = vmul.f32 %v1370, 0.044715
    %v1379 = vmul.f32 %v1371, 0.044715
    %v1380 = vmul.f32 %v1372, 0.044715
    %v1381 = vadd.f32 %v1329, %v1373
    %v1382 = vadd.f32 %v1348, %v1374
    %v1383 = vadd.f32 %v1331, %v1375
    %v1384 = vadd.f32 %v1350, %v1376
    %v1385 = vadd.f32 %v1334, %v1377
    %v1386 = vadd.f32 %v1353, %v1378
    %v1387 = vadd.f32 %v1336, %v1379
    %v1388 = vadd.f32 %v1355, %v1380
    %v1389 = vmul.f32 %v1381, 0.7978846
    %v1390 = vmul.f32 %v1382, 0.7978846
    %v1391 = vmul.f32 %v1383, 0.7978846
    %v1392 = vmul.f32 %v1384, 0.7978846
    %v1393 = vmul.f32 %v1385, 0.7978846
    %v1394 = vmul.f32 %v1386, 0.7978846
    %v1395 = vmul.f32 %v1387, 0.7978846
    %v1396 = vmul.f32 %v1388, 0.7978846
    %v1397 = vtanh.pop %v1389
    %v1398 = vtanh.pop %v1390
    %v1399 = vtanh.pop %v1391
    %v1400 = vtanh.pop %v1392
    %v1401 = vtanh.pop %v1393
    %v1402 = vtanh.pop %v1394
    %v1403 = vtanh.pop %v1395
    %v1404 = vtanh.pop %v1396
    %v1405 = vadd.f32 %v1397, 1.0
    %v1406 = vadd.f32 %v1398, 1.0
    %v1407 = vadd.f32 %v1399, 1.0
    %v1408 = vadd.f32 %v1400, 1.0
    %v1409 = vadd.f32 %v1401, 1.0
    %v1410 = vadd.f32 %v1402, 1.0
    %v1411 = vadd.f32 %v1403, 1.0
    %v1412 = vadd.f32 %v1404, 1.0
    %v1413 = vmul.f32 %v1405, 0.5
    %v1414 = vmul.f32 %v1406, 0.5
    %v1415 = vmul.f32 %v1407, 0.5
    %v1416 = vmul.f32 %v1408, 0.5
    %v1417 = vmul.f32 %v1409, 0.5
    %v1418 = vmul.f32 %v1410, 0.5
    %v1419 = vmul.f32 %v1411, 0.5
    %v1420 = vmul.f32 %v1412, 0.5
    %v1421 = vmul.f32 %v1329, %v1413
    %v1422 = vmul.f32 %v1348, %v1414
    %v1423 = vmul.f32 %v1331, %v1415
    %v1424 = vmul.f32 %v1350, %v1416
    %v1425 = vmul.f32 %v1334, %v1417
    %v1426 = vmul.f32 %v1353, %v1418
    %v1427 = vmul.f32 %v1336, %v1419
    %v1428 = vmul.f32 %v1355, %v1420
    %v1429 = vpack.c.bf16 %v1423, %v1421
    %v1430 = vpack.c.bf16 %v1424, %v1422
    %v1431 = vpack.c.bf16 %v1427, %v1425
    %v1432 = vpack.c.bf16 %v1428, %v1426
    %v1433 = vld [vmem:[#allocation17] sm:$0xf]
    %v1434 = vld [vmem:[#allocation17 + $0x4] sm:$0xf]
    %v1435 = vld [vmem:[#allocation17 + $0x8] sm:$0xf]
    %v1436 = vld [vmem:[#allocation17 + $0xc] sm:$0xf]
    %v1437 = vld [vmem:[#allocation17 + $0x10] sm:$0xf]
    %v1438 = vld [vmem:[#allocation17 + $0x14] sm:$0xf]
    %v1439 = vld [vmem:[#allocation17 + $0x18] sm:$0xf]
    %v1440 = vld [vmem:[#allocation17 + $0x1c] sm:$0xf]
    %v1441 = vld [vmem:[#allocation17 + $0x20] sm:$0xf]
    %v1442 = vld [vmem:[#allocation17 + $0x24] sm:$0xf]
    %v1443 = vld [vmem:[#allocation17 + $0x28] sm:$0xf]
    %v1444 = vld [vmem:[#allocation17 + $0x2c] sm:$0xf]
    %v1445 = vld [vmem:[#allocation17 + $0x30] sm:$0xf]
    %v1446 = vld [vmem:[#allocation17 + $0x34] sm:$0xf]
    %v1447 = vld [vmem:[#allocation17 + $0x38] sm:$0xf]
    %v1448 = vld [vmem:[#allocation17 + $0x3c] sm:$0xf]
    %v1449 = vld [vmem:[#allocation17 + $0x40] sm:$0xf]
    %v1450 = vld [vmem:[#allocation17 + $0x44] sm:$0xf]
    %v1451 = vld [vmem:[#allocation17 + $0x48] sm:$0xf]
    %v1452 = vld [vmem:[#allocation17 + $0x4c] sm:$0xf]
    %v1453 = vld [vmem:[#allocation17 + $0x50] sm:$0xf]
    %v1454 = vld [vmem:[#allocation17 + $0x54] sm:$0xf]
    %v1455 = vld [vmem:[#allocation17 + $0x58] sm:$0xf]
    %v1456 = vld [vmem:[#allocation17 + $0x5c] sm:$0xf]
    %v1457 = vld [vmem:[#allocation17 + $0x60] sm:$0xf]
    %v1458 = vld [vmem:[#allocation17 + $0x64] sm:$0xf]
    %v1459 = vld [vmem:[#allocation17 + $0x68] sm:$0xf]
    %v1460 = vld [vmem:[#allocation17 + $0x6c] sm:$0xf]
    %v1461 = vld [vmem:[#allocation17 + $0x70] sm:$0xf]
    %v1462 = vld [vmem:[#allocation17 + $0x74] sm:$0xf]
    %v1463 = vld [vmem:[#allocation17 + $0x78] sm:$0xf]
    %v1464 = vld [vmem:[#allocation17 + $0x7c] sm:$0xf]
    %v1465 = vld [vmem:[#allocation19] sm:$0x1]
    %v1467 = vperm.slane %v1465, 0
    %v1501 = vunpack.c.l.b16 %v1433
    %v1502 = vunpack.c.l.b16 %v1434
    %v1503 = vunpack.c.l.b16 %v1435
    %v1504 = vunpack.c.l.b16 %v1436
    %v1505 = vunpack.c.l.b16 %v1437
    %v1506 = vunpack.c.l.b16 %v1438
    %v1507 = vunpack.c.l.b16 %v1439
    %v1508 = vunpack.c.l.b16 %v1440
    %v1509 = vunpack.c.l.b16 %v1441
    %v1510 = vunpack.c.l.b16 %v1442
    %v1511 = vunpack.c.l.b16 %v1443
    %v1512 = vunpack.c.l.b16 %v1444
    %v1513 = vunpack.c.l.b16 %v1445
    %v1514 = vunpack.c.l.b16 %v1446
    %v1515 = vunpack.c.l.b16 %v1447
    %v1516 = vunpack.c.l.b16 %v1448
    %v1517 = vunpack.c.l.b16 %v1449
    %v1518 = vunpack.c.l.b16 %v1450
    %v1519 = vunpack.c.l.b16 %v1451
    %v1520 = vunpack.c.l.b16 %v1452
    %v1521 = vunpack.c.l.b16 %v1453
    %v1522 = vunpack.c.l.b16 %v1454
    %v1523 = vunpack.c.l.b16 %v1455
    %v1524 = vunpack.c.l.b16 %v1456
    %v1525 = vunpack.c.l.b16 %v1457
    %v1526 = vunpack.c.l.b16 %v1458
    %v1527 = vunpack.c.l.b16 %v1459
    %v1528 = vunpack.c.l.b16 %v1460
    %v1529 = vunpack.c.l.b16 %v1461
    %v1530 = vunpack.c.l.b16 %v1462
    %v1531 = vunpack.c.l.b16 %v1463
    %v1532 = vunpack.c.l.b16 %v1464
    %v1533 = vpack.c.b16 %v1502, %v1501
    %v1534 = vpack.c.b16 %v1504, %v1503
    %v1535 = vpack.c.b16 %v1506, %v1505
    %v1536 = vpack.c.b16 %v1508, %v1507
    %v1537 = vpack.c.b16 %v1510, %v1509
    %v1538 = vpack.c.b16 %v1512, %v1511
    %v1539 = vpack.c.b16 %v1514, %v1513
    %v1540 = vpack.c.b16 %v1516, %v1515
    %v1541 = vpack.c.b16 %v1518, %v1517
    %v1542 = vpack.c.b16 %v1520, %v1519
    %v1543 = vpack.c.b16 %v1522, %v1521
    %v1544 = vpack.c.b16 %v1524, %v1523
    %v1545 = vpack.c.b16 %v1526, %v1525
    %v1546 = vpack.c.b16 %v1528, %v1527
    %v1547 = vpack.c.b16 %v1530, %v1529
    %v1548 = vpack.c.b16 %v1532, %v1531
    %1565 = vmatpush.bf16.msra.mxu0 %v1540
    %1566 = vmatpush.bf16.msra.mxu0 %v1539
    %1567 = vmatpush.bf16.msra.mxu0 %v1538
    %1568 = vmatpush.bf16.msra.mxu0 %v1537
    %1569 = vmatpush.bf16.msra.mxu0 %v1536
    %1570 = vmatpush.bf16.msra.mxu0 %v1535
    %1571 = vmatpush.bf16.msra.mxu0 %v1534
    %1572 = vmatpush.bf16.msra.mxu0 %v1533
    %1573 = vmatmul.bf16.gmra.mxu0 %v1429
    %v1574 = vpop.f32.mrf.mxu0
    %v1575 = vadd.f32 %v1467, %v1574
    %v1576 = vpop.f32.mrf.mxu0
    %v1577 = vadd.f32 %v1467, %v1576
    %1578 = vmatmul.bf16.gmra.mxu0 %v1431
    %v1579 = vpop.f32.mrf.mxu0
    %v1580 = vadd.f32 %v1467, %v1579
    %v1581 = vpop.f32.mrf.mxu0
    %v1582 = vadd.f32 %v1467, %v1581
    %1583 = vdwg.mxu0
    %1584 = vmatpush.bf16.msra.mxu0 %v1548
    %1585 = vmatpush.bf16.msra.mxu0 %v1547
    %1586 = vmatpush.bf16.msra.mxu0 %v1546
    %1587 = vmatpush.bf16.msra.mxu0 %v1545
    %1588 = vmatpush.bf16.msra.mxu0 %v1544
    %1589 = vmatpush.bf16.msra.mxu0 %v1543
    %1590 = vmatpush.bf16.msra.mxu0 %v1542
    %1591 = vmatpush.bf16.msra.mxu0 %v1541
    %1592 = vmatmul.bf16.gmra.mxu0 %v1430
    %v1593 = vpop.f32.mrf.mxu0
    %v1594 = vadd.f32 %v1575, %v1593
    %v1595 = vpop.f32.mrf.mxu0
    %v1596 = vadd.f32 %v1577, %v1595
    %1597 = vmatmul.bf16.gmra.mxu0 %v1432
    %v1598 = vpop.f32.mrf.mxu0
    %v1599 = vadd.f32 %v1580, %v1598
    %v1600 = vpop.f32.mrf.mxu0
    %v1601 = vadd.f32 %v1582, %v1600
    %1602 = vdwg.mxu0
    %v1603 = vadd.f32 %v1211, %v1594
    %v1604 = vadd.f32 %v1212, %v1596
    %v1605 = vadd.f32 %v1213, %v1599
    %v1606 = vadd.f32 %v1214, %v1601
    %v1607 = vld [vmem:[%s16] sm:$0x1]
    %v1608 = vld [vmem:[#allocation20] sm:$0x1]
    %1609 = vadd.xlane.f32.xlu0 %v1603
    %v1610 = vpop.xlane.xlu0 %1609
    %1611 = vadd.xlane.f32.xlu0 %v1604
    %v1612 = vpop.xlane.xlu0 %1611
    %1613 = vadd.xlane.f32.xlu0 %v1605
    %v1614 = vpop.xlane.xlu0 %1613
    %1615 = vadd.xlane.f32.xlu0 %v1606
    %v1616 = vpop.xlane.xlu0 %1615
    %v1617 = vmul.f32 %v1610, %v379
    %v1618 = vmul.f32 %v1612, %v379
    %v1619 = vmul.f32 %v1614, %v379
    %v1620 = vmul.f32 %v1616, %v379
    %v1621 = vsub.f32 %v1603, %v1617
    %v1622 = vsub.f32 %v1604, %v1618
    %v1623 = vsub.f32 %v1605, %v1619
    %v1624 = vsub.f32 %v1606, %v1620
    %v1625 = vmul.f32 %v1621, %v1621
    %v1626 = vmul.f32 %v1622, %v1622
    %v1627 = vmul.f32 %v1623, %v1623
    %v1628 = vmul.f32 %v1624, %v1624
    %1629 = vadd.xlane.f32.xlu0 %v1625
    %v1630 = vpop.xlane.xlu0 %1629
    %1631 = vadd.xlane.f32.xlu0 %v1626
    %v1632 = vpop.xlane.xlu0 %1631
    %1633 = vadd.xlane.f32.xlu0 %v1627
    %v1634 = vpop.xlane.xlu0 %1633
    %1635 = vadd.xlane.f32.xlu0 %v1628
    %v1636 = vpop.xlane.xlu0 %1635
    %v1637 = vmul.f32 %v1630, %v379
    %v1638 = vmul.f32 %v1632, %v379
    %v1639 = vmul.f32 %v1634, %v379
    %v1640 = vmul.f32 %v1636, %v379
    %v1641 = vadd.f32 %v1637, 1e-12
    %v1642 = vadd.f32 %v1638, 1e-12
    %v1643 = vadd.f32 %v1639, 1e-12
    %v1644 = vadd.f32 %v1640, 1e-12
    %v1645 = vrsqrt.pop %v1641
    %v1646 = vmul.f32 %v1645, %v1641
    %v1647 = vmul.f32 %v1646, %v1645
    %v1648 = vmul.f32 0.5, %v1647
    %v1649 = vsub.f32 1.5, %v1648
    %v1650 = vmul.f32 %v1645, %v1649
    %vm1651 = vweird.f32 %v1641
    %vm1652 = vweird.f32 %v1645
    %vm1653 = vmor %vm1651, %vm1652
    %v1654 = vsel %vm1653, %v1645, %v1650
    %v1655 = vrsqrt.pop %v1642
    %v1656 = vmul.f32 %v1655, %v1642
    %v1657 = vmul.f32 %v1656, %v1655
    %v1658 = vmul.f32 0.5, %v1657
    %v1659 = vsub.f32 1.5, %v1658
    %v1660 = vmul.f32 %v1655, %v1659
    %vm1661 = vweird.f32 %v1642
    %vm1662 = vweird.f32 %v1655
    %vm1663 = vmor %vm1661, %vm1662
    %v1664 = vsel %vm1663, %v1655, %v1660
    %v1665 = vrsqrt.pop %v1643
    %v1666 = vmul.f32 %v1665, %v1643
    %v1667 = vmul.f32 %v1666, %v1665
    %v1668 = vmul.f32 0.5, %v1667
    %v1669 = vsub.f32 1.5, %v1668
    %v1670 = vmul.f32 %v1665, %v1669
    %vm1671 = vweird.f32 %v1643
    %vm1672 = vweird.f32 %v1665
    %vm1673 = vmor %vm1671, %vm1672
    %v1674 = vsel %vm1673, %v1665, %v1670
    %v1675 = vrsqrt.pop %v1644
    %v1676 = vmul.f32 %v1675, %v1644
    %v1677 = vmul.f32 %v1676, %v1675
    %v1678 = vmul.f32 0.5, %v1677
    %v1679 = vsub.f32 1.5, %v1678
    %v1680 = vmul.f32 %v1675, %v1679
    %vm1681 = vweird.f32 %v1644
    %vm1682 = vweird.f32 %v1675
    %vm1683 = vmor %vm1681, %vm1682
    %v1684 = vsel %vm1683, %v1675, %v1680
    %v1685 = vmul.f32 %v1621, %v1654
    %v1686 = vmul.f32 %v1622, %v1664
    %v1687 = vmul.f32 %v1623, %v1674
    %v1688 = vmul.f32 %v1624, %v1684
    %v1690 = vperm.slane %v1607, 0
    %v1692 = vmul.f32 %v1685, %v1690
    %v1693 = vmul.f32 %v1686, %v1690
    %v1694 = vmul.f32 %v1687, %v1690
    %v1695 = vmul.f32 %v1688, %v1690
    %v1697 = vperm.slane %v1608, 0
    %v1699 = vadd.f32 %v1692, %v1697
    %v1700 = vadd.f32 %v1693, %v1697
    %v1701 = vadd.f32 %v1694, %v1697
    %v1702 = vadd.f32 %v1695, %v1697
    %v1703 = vpack.c.bf16 %v1700, %v1699
    %v1704 = vpack.c.bf16 %v1702, %v1701
    %s1705 = scalar_lea.vmem [#allocation8], 192
    %v1706 = vld [vmem:[%s1705] sm:$0xff]
    %v1707 = vld [vmem:[%s1705 + $0x8] sm:$0xf]
    %v1708 = vld [vmem:[%s1705 + $0xc] sm:$0xff]
    %v1709 = vld [vmem:[%s1705 + $0x14] sm:$0xf]
    %v1710 = vld [vmem:[%s1705 + $0x18] sm:$0xff]
    %v1711 = vld [vmem:[%s1705 + $0x20] sm:$0xf]
    %v1712 = vld [vmem:[%s1705 + $0x24] sm:$0xff]
    %v1713 = vld [vmem:[%s1705 + $0x2c] sm:$0xf]
    %v1714 = vld [vmem:[%s1705 + $0x30] sm:$0xff]
    %v1715 = vld [vmem:[%s1705 + $0x38] sm:$0xf]
    %v1716 = vld [vmem:[%s1705 + $0x3c] sm:$0xff]
    %v1717 = vld [vmem:[%s1705 + $0x44] sm:$0xf]
    %v1718 = vld [vmem:[%s1705 + $0x48] sm:$0xff]
    %v1719 = vld [vmem:[%s1705 + $0x50] sm:$0xf]
    %v1720 = vld [vmem:[%s1705 + $0x54] sm:$0xff]
    %v1721 = vld [vmem:[%s1705 + $0x5c] sm:$0xf]
    %v1722 = vld [vmem:[%s1705 + $0x60] sm:$0xff]
    %v1723 = vld [vmem:[%s1705 + $0x68] sm:$0xf]
    %v1724 = vld [vmem:[%s1705 + $0x6c] sm:$0xff]
    %v1725 = vld [vmem:[%s1705 + $0x74] sm:$0xf]
    %v1726 = vld [vmem:[%s1705 + $0x78] sm:$0xff]
    %v1727 = vld [vmem:[%s1705 + $0x80] sm:$0xf]
    %v1728 = vld [vmem:[%s1705 + $0x84] sm:$0xff]
    %v1729 = vld [vmem:[%s1705 + $0x8c] sm:$0xf]
    %v1730 = vld [vmem:[%s1705 + $0x90] sm:$0xff]
    %v1731 = vld [vmem:[%s1705 + $0x98] sm:$0xf]
    %v1732 = vld [vmem:[%s1705 + $0x9c] sm:$0xff]
    %v1733 = vld [vmem:[%s1705 + $0xa4] sm:$0xf]
    %v1734 = vld [vmem:[%s1705 + $0xa8] sm:$0xff]
    %v1735 = vld [vmem:[%s1705 + $0xb0] sm:$0xf]
    %v1736 = vld [vmem:[%s1705 + $0xb4] sm:$0xff]
    %v1737 = vld [vmem:[%s1705 + $0xbc] sm:$0xf]
    %s1738 = scalar_lea.vmem [#allocation10], 3
    %v1739 = vld [vmem:[%s1738] sm:$0x7]
    %v1741 = vperm.slane %v1739, 0
    %v1742 = vperm.slane %v1739, 1
    %v1743 = vperm.slane %v1739, 2
    %v1779 = vunpack.c.l.b16 %v1706
    %v1780 = vunpack.c.h.b16 %v1706
    %v1781 = vunpack.c.l.b16 %v1707
    %v1782 = vunpack.c.l.b16 %v1708
    %v1783 = vunpack.c.h.b16 %v1708
    %v1784 = vunpack.c.l.b16 %v1709
    %v1785 = vunpack.c.l.b16 %v1710
    %v1786 = vunpack.c.h.b16 %v1710
    %v1787 = vunpack.c.l.b16 %v1711
    %v1788 = vunpack.c.l.b16 %v1712
    %v1789 = vunpack.c.h.b16 %v1712
    %v1790 = vunpack.c.l.b16 %v1713
    %v1791 = vunpack.c.l.b16 %v1714
    %v1792 = vunpack.c.h.b16 %v1714
    %v1793 = vunpack.c.l.b16 %v1715
    %v1794 = vunpack.c.l.b16 %v1716
    %v1795 = vunpack.c.h.b16 %v1716
    %v1796 = vunpack.c.l.b16 %v1717
    %v1797 = vunpack.c.l.b16 %v1718
    %v1798 = vunpack.c.h.b16 %v1718
    %v1799 = vunpack.c.l.b16 %v1719
    %v1800 = vunpack.c.l.b16 %v1720
    %v1801 = vunpack.c.h.b16 %v1720
    %v1802 = vunpack.c.l.b16 %v1721
    %v1803 = vunpack.c.l.b16 %v1722
    %v1804 = vunpack.c.h.b16 %v1722
    %v1805 = vunpack.c.l.b16 %v1723
    %v1806 = vunpack.c.l.b16 %v1724
    %v1807 = vunpack.c.h.b16 %v1724
    %v1808 = vunpack.c.l.b16 %v1725
    %v1809 = vunpack.c.l.b16 %v1726
    %v1810 = vunpack.c.h.b16 %v1726
    %v1811 = vunpack.c.l.b16 %v1727
    %v1812 = vunpack.c.l.b16 %v1728
    %v1813 = vunpack.c.h.b16 %v1728
    %v1814 = vunpack.c.l.b16 %v1729
    %v1815 = vunpack.c.l.b16 %v1730
    %v1816 = vunpack.c.h.b16 %v1730
    %v1817 = vunpack.c.l.b16 %v1731
    %v1818 = vunpack.c.l.b16 %v1732
    %v1819 = vunpack.c.h.b16 %v1732
    %v1820 = vunpack.c.l.b16 %v1733
    %v1821 = vunpack.c.l.b16 %v1734
    %v1822 = vunpack.c.h.b16 %v1734
    %v1823 = vunpack.c.l.b16 %v1735
    %v1824 = vunpack.c.l.b16 %v1736
    %v1825 = vunpack.c.h.b16 %v1736
    %v1826 = vunpack.c.l.b16 %v1737
    %v1827 = vpack.c.b16 %v1782, %v1779
    %v1828 = vpack.c.b16 %v1783, %v1780
    %v1829 = vpack.c.b16 %v1784, %v1781
    %v1830 = vpack.c.b16 %v1788, %v1785
    %v1831 = vpack.c.b16 %v1789, %v1786
    %v1832 = vpack.c.b16 %v1790, %v1787
    %v1833 = vpack.c.b16 %v1794, %v1791
    %v1834 = vpack.c.b16 %v1795, %v1792
    %v1835 = vpack.c.b16 %v1796, %v1793
    %v1836 = vpack.c.b16 %v1800, %v1797
    %v1837 = vpack.c.b16 %v1801, %v1798
    %v1838 = vpack.c.b16 %v1802, %v1799
    %v1839 = vpack.c.b16 %v1806, %v1803
    %v1840 = vpack.c.b16 %v1807, %v1804
    %v1841 = vpack.c.b16 %v1808, %v1805
    %v1842 = vpack.c.b16 %v1812, %v1809
    %v1843 = vpack.c.b16 %v1813, %v1810
    %v1844 = vpack.c.b16 %v1814, %v1811
    %v1845 = vpack.c.b16 %v1818, %v1815
    %v1846 = vpack.c.b16 %v1819, %v1816
    %v1847 = vpack.c.b16 %v1820, %v1817
    %v1848 = vpack.c.b16 %v1824, %v1821
    %v1849 = vpack.c.b16 %v1825, %v1822
    %v1850 = vpack.c.b16 %v1826, %v1823
    %1875 = vmatpush.bf16.msra.mxu0 %v1848
    %1876 = vmatpush.bf16.msra.mxu0 %v1845
    %1877 = vmatpush.bf16.msra.mxu0 %v1842
    %1878 = vmatpush.bf16.msra.mxu0 %v1839
    %1879 = vmatpush.bf16.msra.mxu0 %v1836
    %1880 = vmatpush.bf16.msra.mxu0 %v1833
    %1881 = vmatpush.bf16.msra.mxu0 %v1830
    %1882 = vmatpush.bf16.msra.mxu0 %v1827
    %1883 = vmatmul.bf16.gmra.mxu0 %v1703
    %v1884 = vpop.f32.mrf.mxu0
    %v1885 = vadd.f32 %v1741, %v1884
    %v1886 = vpop.f32.mrf.mxu0
    %v1887 = vadd.f32 %v1741, %v1886
    %1888 = vmatmul.bf16.gmra.mxu0 %v1704
    %v1889 = vpop.f32.mrf.mxu0
    %v1890 = vadd.f32 %v1741, %v1889
    %v1891 = vpop.f32.mrf.mxu0
    %v1892 = vadd.f32 %v1741, %v1891
    %1893 = vdwg.mxu0
    %1894 = vmatpush.bf16.msra.mxu0 %v1849
    %1895 = vmatpush.bf16.msra.mxu0 %v1846
    %1896 = vmatpush.bf16.msra.mxu0 %v1843
    %1897 = vmatpush.bf16.msra.mxu0 %v1840
    %1898 = vmatpush.bf16.msra.mxu0 %v1837
    %1899 = vmatpush.bf16.msra.mxu0 %v1834
    %1900 = vmatpush.bf16.msra.mxu0 %v1831
    %1901 = vmatpush.bf16.msra.mxu0 %v1828
    %1902 = vmatmul.bf16.gmra.mxu0 %v1703
    %v1903 = vpop.f32.mrf.mxu0
    %v1904 = vadd.f32 %v1742, %v1903
    %v1905 = vpop.f32.mrf.mxu0
    %v1906 = vadd.f32 %v1742, %v1905
    %1907 = vmatmul.bf16.gmra.mxu0 %v1704
    %v1908 = vpop.f32.mrf.mxu0
    %v1909 = vadd.f32 %v1742, %v1908
    %v1910 = vpop.f32.mrf.mxu0
    %v1911 = vadd.f32 %v1742, %v1910
    %1912 = vdwg.mxu0
    %1913 = vmatpush.bf16.msra.mxu0 %v1850
    %1914 = vmatpush.bf16.msra.mxu0 %v1847
    %1915 = vmatpush.bf16.msra.mxu0 %v1844
    %1916 = vmatpush.bf16.msra.mxu0 %v1841
    %1917 = vmatpush.bf16.msra.mxu0 %v1838
    %1918 = vmatpush.bf16.msra.mxu0 %v1835
    %1919 = vmatpush.bf16.msra.mxu0 %v1832
    %1920 = vmatpush.bf16.msra.mxu0 %v1829
    %1921 = vmatmul.bf16.gmra.mxu0 %v1703
    %v1922 = vpop.f32.mrf.mxu0
    %v1923 = vadd.f32 %v1743, %v1922
    %v1924 = vpop.f32.mrf.mxu0
    %v1925 = vadd.f32 %v1743, %v1924
    %1926 = vmatmul.bf16.gmra.mxu0 %v1704
    %v1927 = vpop.f32.mrf.mxu0
    %v1928 = vadd.f32 %v1743, %v1927
    %v1929 = vpop.f32.mrf.mxu0
    %v1930 = vadd.f32 %v1743, %v1929
    %1931 = vdwg.mxu0
    %v1932 = vpack.c.bf16 %v1904, %v1885
    %v1933 = vpack.c.bf16 %v1923, %v1923
    %v1934 = vpack.c.bf16 %v1906, %v1887
    %v1935 = vpack.c.bf16 %v1925, %v1925
    %v1936 = vpack.c.bf16 %v1909, %v1890
    %v1937 = vpack.c.bf16 %v1928, %v1928
    %v1938 = vpack.c.bf16 %v1911, %v1892
    %v1939 = vpack.c.bf16 %v1930, %v1930
    %v1942 = vunpack.c.l.b16 %v1932
    %v1943 = vunpack.c.l.b16 %v1934
    %v1944 = vpack.c.b16 %v1943, %v1942
    %v1945 = vunpack.c.h.b16 %v1932
    %v1946 = vunpack.c.h.b16 %v1934
    %v1947 = vpack.c.b16 %v1946, %v1945
    %v1949 = vsel %vm714, %v1944, 0
    %v1952 = vsel %vm714, %v1947, 0
    %1954 = vmatpush.bf16.xpose.msra.mxu0 0
    %1955 = vmatpush.bf16.xpose.msra.mxu0 0
    %1956 = vmatpush.bf16.xpose.msra.mxu0 0
    %1957 = vmatpush.bf16.xpose.msra.mxu0 0
    %1958 = vmatpush.bf16.xpose.msra.mxu0 0
    %1959 = vmatpush.bf16.xpose.msra.mxu0 0
    %1960 = vmatpush.bf16.xpose.msra.mxu0 0
    %1961 = vmatpush.bf16.xpose.msra.mxu0 %v1952
    %1962 = vmatmul.bf16.gmra.mxu0 %v1949
    %v1963 = vpop.f32.mrf.mxu0
    %v1964 = vadd.f32 0.0, %v1963
    %v1965 = vpop.f32.mrf.mxu0
    %v1966 = vadd.f32 0.0, %v1965
    %1967 = vdwg.mxu0
    %v1968 = vmul.f32 %v1964, 0.125
    %v1969 = vmul.f32 %v1966, 0.125
    %v1970 = vadd.f32 %v1968, %v469
    %v1971 = vadd.f32 %v1969, %v469
    %v1972 = vsel %vm739, %v1970, -inf
    %1973 = vmax.xlane.f32.xlu0 %v1972
    %v1974 = vpop.xlane.xlu0 %1973
    %v1975 = vsel %vm739, %v1971, -inf
    %1976 = vmax.xlane.f32.xlu0 %v1975
    %v1977 = vpop.xlane.xlu0 %1976
    %v1978 = vsub.f32 %v1970, %v1974
    %v1979 = vsub.f32 %v1971, %v1977
    %v1980 = vmul.f32 %v1978, 1.442695
    %v1981 = vpow.pop %v1980
    %v1982 = vmul.f32 %v1979, 1.442695
    %v1983 = vpow.pop %v1982
    %v1984 = vsel %vm739, %v1981, 0.0
    %1985 = vadd.xlane.f32.xlu0 %v1984
    %v1986 = vpop.xlane.xlu0 %1985
    %v1987 = vsel %vm739, %v1983, 0.0
    %1988 = vadd.xlane.f32.xlu0 %v1987
    %v1989 = vpop.xlane.xlu0 %1988
    %v1990 = vrcp.pop %v1986
    %v1991 = vrcp.pop %v1989
    %v1992 = vmul.f32 %v1981, %v1990
    %v1993 = vmul.f32 %v1983, %v1991
    %v1994 = vpack.c.bf16 %v1993, %v1992
    %v1997 = vunpack.c.l.b16 %v1933
    %v1998 = vunpack.c.l.b16 %v1935
    %v1999 = vpack.c.b16 %v1998, %v1997
    %v2002 = vsel %vm739, %v1994, 0
    %2004 = vmatpush.bf16.msra.mxu0 0
    %2005 = vmatpush.bf16.msra.mxu0 0
    %2006 = vmatpush.bf16.msra.mxu0 0
    %2007 = vmatpush.bf16.msra.mxu0 0
    %2008 = vmatpush.bf16.msra.mxu0 0
    %2009 = vmatpush.bf16.msra.mxu0 0
    %2010 = vmatpush.bf16.msra.mxu0 0
    %2011 = vmatpush.bf16.msra.mxu0 %v1999
    %2012 = vmatmul.bf16.gmra.mxu0 %v2002
    %v2013 = vpop.f32.mrf.mxu0
    %v2014 = vadd.f32 0.0, %v2013
    %v2015 = vpop.f32.mrf.mxu0
    %v2016 = vadd.f32 0.0, %v2015
    %2017 = vdwg.mxu0
    %2018 = vrot.lane.b32.xlu0 %v1944, 64
    %v2019 = vpop.permute.xlu0 %2018
    %2020 = vrot.lane.b32.xlu0 %v1947, 64
    %v2021 = vpop.permute.xlu0 %2020
    %v2023 = vsel %vm714, %v2019, 0
    %v2026 = vsel %vm714, %v2021, 0
    %2028 = vmatpush.bf16.xpose.msra.mxu0 0
    %2029 = vmatpush.bf16.xpose.msra.mxu0 0
    %2030 = vmatpush.bf16.xpose.msra.mxu0 0
    %2031 = vmatpush.bf16.xpose.msra.mxu0 0
    %2032 = vmatpush.bf16.xpose.msra.mxu0 0
    %2033 = vmatpush.bf16.xpose.msra.mxu0 0
    %2034 = vmatpush.bf16.xpose.msra.mxu0 0
    %2035 = vmatpush.bf16.xpose.msra.mxu0 %v2026
    %2036 = vmatmul.bf16.gmra.mxu0 %v2023
    %v2037 = vpop.f32.mrf.mxu0
    %v2038 = vadd.f32 0.0, %v2037
    %v2039 = vpop.f32.mrf.mxu0
    %v2040 = vadd.f32 0.0, %v2039
    %2041 = vdwg.mxu0
    %v2042 = vmul.f32 %v2038, 0.125
    %v2043 = vmul.f32 %v2040, 0.125
    %v2044 = vadd.f32 %v2042, %v469
    %v2045 = vadd.f32 %v2043, %v469
    %v2046 = vsel %vm739, %v2044, -inf
    %2047 = vmax.xlane.f32.xlu0 %v2046
    %v2048 = vpop.xlane.xlu0 %2047
    %v2049 = vsel %vm739, %v2045, -inf
    %2050 = vmax.xlane.f32.xlu0 %v2049
    %v2051 = vpop.xlane.xlu0 %2050
    %v2052 = vsub.f32 %v2044, %v2048
    %v2053 = vsub.f32 %v2045, %v2051
    %v2054 = vmul.f32 %v2052, 1.442695
    %v2055 = vpow.pop %v2054
    %v2056 = vmul.f32 %v2053, 1.442695
    %v2057 = vpow.pop %v2056
    %v2058 = vsel %vm739, %v2055, 0.0
    %2059 = vadd.xlane.f32.xlu0 %v2058
    %v2060 = vpop.xlane.xlu0 %2059
    %v2061 = vsel %vm739, %v2057, 0.0
    %2062 = vadd.xlane.f32.xlu0 %v2061
    %v2063 = vpop.xlane.xlu0 %2062
    %v2064 = vrcp.pop %v2060
    %v2065 = vrcp.pop %v2063
    %v2066 = vmul.f32 %v2055, %v2064
    %v2067 = vmul.f32 %v2057, %v2065
    %v2068 = vpack.c.bf16 %v2067, %v2066
    %2069 = vrot.lane.b32.xlu0 %v1999, 64
    %v2070 = vpop.permute.xlu0 %2069
    %v2073 = vsel %vm739, %v2068, 0
    %2075 = vmatpush.bf16.msra.mxu0 0
    %2076 = vmatpush.bf16.msra.mxu0 0
    %2077 = vmatpush.bf16.msra.mxu0 0
    %2078 = vmatpush.bf16.msra.mxu0 0
    %2079 = vmatpush.bf16.msra.mxu0 0
    %2080 = vmatpush.bf16.msra.mxu0 0
    %2081 = vmatpush.bf16.msra.mxu0 0
    %2082 = vmatpush.bf16.msra.mxu0 %v2070
    %2083 = vmatmul.bf16.gmra.mxu0 %v2073
    %v2084 = vpop.f32.mrf.mxu0
    %v2085 = vadd.f32 0.0, %v2084
    %v2086 = vpop.f32.mrf.mxu0
    %v2087 = vadd.f32 0.0, %v2086
    %2088 = vdwg.mxu0
    %2091 = vrot.lane.b32.xlu0 %v2085, 64
    %v2092 = vpop.permute.xlu0 %2091
    %2093 = vrot.lane.b32.xlu0 %v2087, 64
    %v2094 = vpop.permute.xlu0 %2093
    %v2097 = vsel %vm714, %v2014, %v2092
    %v2098 = vsel %vm714, %v2016, %v2094
    %v2101 = vunpack.c.l.b16 %v1936
    %v2102 = vunpack.c.l.b16 %v1938
    %v2103 = vpack.c.b16 %v2102, %v2101
    %v2104 = vunpack.c.h.b16 %v1936
    %v2105 = vunpack.c.h.b16 %v1938
    %v2106 = vpack.c.b16 %v2105, %v2104
    %v2108 = vsel %vm714, %v2103, 0
    %v2111 = vsel %vm714, %v2106, 0
    %2113 = vmatpush.bf16.xpose.msra.mxu0 0
    %2114 = vmatpush.bf16.xpose.msra.mxu0 0
    %2115 = vmatpush.bf16.xpose.msra.mxu0 0
    %2116 = vmatpush.bf16.xpose.msra.mxu0 0
    %2117 = vmatpush.bf16.xpose.msra.mxu0 0
    %2118 = vmatpush.bf16.xpose.msra.mxu0 0
    %2119 = vmatpush.bf16.xpose.msra.mxu0 0
    %2120 = vmatpush.bf16.xpose.msra.mxu0 %v2111
    %2121 = vmatmul.bf16.gmra.mxu0 %v2108
    %v2122 = vpop.f32.mrf.mxu0
    %v2123 = vadd.f32 0.0, %v2122
    %v2124 = vpop.f32.mrf.mxu0
    %v2125 = vadd.f32 0.0, %v2124
    %2126 = vdwg.mxu0
    %v2127 = vmul.f32 %v2123, 0.125
    %v2128 = vmul.f32 %v2125, 0.125
    %v2129 = vadd.f32 %v2127, %v470
    %v2130 = vadd.f32 %v2128, %v470
    %v2131 = vsel %vm739, %v2129, -inf
    %2132 = vmax.xlane.f32.xlu0 %v2131
    %v2133 = vpop.xlane.xlu0 %2132
    %v2134 = vsel %vm739, %v2130, -inf
    %2135 = vmax.xlane.f32.xlu0 %v2134
    %v2136 = vpop.xlane.xlu0 %2135
    %v2137 = vsub.f32 %v2129, %v2133
    %v2138 = vsub.f32 %v2130, %v2136
    %v2139 = vmul.f32 %v2137, 1.442695
    %v2140 = vpow.pop %v2139
    %v2141 = vmul.f32 %v2138, 1.442695
    %v2142 = vpow.pop %v2141
    %v2143 = vsel %vm739, %v2140, 0.0
    %2144 = vadd.xlane.f32.xlu0 %v2143
    %v2145 = vpop.xlane.xlu0 %2144
    %v2146 = vsel %vm739, %v2142, 0.0
    %2147 = vadd.xlane.f32.xlu0 %v2146
    %v2148 = vpop.xlane.xlu0 %2147
    %v2149 = vrcp.pop %v2145
    %v2150 = vrcp.pop %v2148
    %v2151 = vmul.f32 %v2140, %v2149
    %v2152 = vmul.f32 %v2142, %v2150
    %v2153 = vpack.c.bf16 %v2152, %v2151
    %v2156 = vunpack.c.l.b16 %v1937
    %v2157 = vunpack.c.l.b16 %v1939
    %v2158 = vpack.c.b16 %v2157, %v2156
    %v2161 = vsel %vm739, %v2153, 0
    %2163 = vmatpush.bf16.msra.mxu0 0
    %2164 = vmatpush.bf16.msra.mxu0 0
    %2165 = vmatpush.bf16.msra.mxu0 0
    %2166 = vmatpush.bf16.msra.mxu0 0
    %2167 = vmatpush.bf16.msra.mxu0 0
    %2168 = vmatpush.bf16.msra.mxu0 0
    %2169 = vmatpush.bf16.msra.mxu0 0
    %2170 = vmatpush.bf16.msra.mxu0 %v2158
    %2171 = vmatmul.bf16.gmra.mxu0 %v2161
    %v2172 = vpop.f32.mrf.mxu0
    %v2173 = vadd.f32 0.0, %v2172
    %v2174 = vpop.f32.mrf.mxu0
    %v2175 = vadd.f32 0.0, %v2174
    %2176 = vdwg.mxu0
    %2177 = vrot.lane.b32.xlu0 %v2103, 64
    %v2178 = vpop.permute.xlu0 %2177
    %2179 = vrot.lane.b32.xlu0 %v2106, 64
    %v2180 = vpop.permute.xlu0 %2179
    %v2182 = vsel %vm714, %v2178, 0
    %v2185 = vsel %vm714, %v2180, 0
    %2187 = vmatpush.bf16.xpose.msra.mxu0 0
    %2188 = vmatpush.bf16.xpose.msra.mxu0 0
    %2189 = vmatpush.bf16.xpose.msra.mxu0 0
    %2190 = vmatpush.bf16.xpose.msra.mxu0 0
    %2191 = vmatpush.bf16.xpose.msra.mxu0 0
    %2192 = vmatpush.bf16.xpose.msra.mxu0 0
    %2193 = vmatpush.bf16.xpose.msra.mxu0 0
    %2194 = vmatpush.bf16.xpose.msra.mxu0 %v2185
    %2195 = vmatmul.bf16.gmra.mxu0 %v2182
    %v2196 = vpop.f32.mrf.mxu0
    %v2197 = vadd.f32 0.0, %v2196
    %v2198 = vpop.f32.mrf.mxu0
    %v2199 = vadd.f32 0.0, %v2198
    %2200 = vdwg.mxu0
    %v2201 = vmul.f32 %v2197, 0.125
    %v2202 = vmul.f32 %v2199, 0.125
    %v2203 = vadd.f32 %v2201, %v470
    %v2204 = vadd.f32 %v2202, %v470
    %v2205 = vsel %vm739, %v2203, -inf
    %2206 = vmax.xlane.f32.xlu0 %v2205
    %v2207 = vpop.xlane.xlu0 %2206
    %v2208 = vsel %vm739, %v2204, -inf
    %2209 = vmax.xlane.f32.xlu0 %v2208
    %v2210 = vpop.xlane.xlu0 %2209
    %v2211 = vsub.f32 %v2203, %v2207
    %v2212 = vsub.f32 %v2204, %v2210
    %v2213 = vmul.f32 %v2211, 1.442695
    %v2214 = vpow.pop %v2213
    %v2215 = vmul.f32 %v2212, 1.442695
    %v2216 = vpow.pop %v2215
    %v2217 = vsel %vm739, %v2214, 0.0
    %2218 = vadd.xlane.f32.xlu0 %v2217
    %v2219 = vpop.xlane.xlu0 %2218
    %v2220 = vsel %vm739, %v2216, 0.0
    %2221 = vadd.xlane.f32.xlu0 %v2220
    %v2222 = vpop.xlane.xlu0 %2221
    %v2223 = vrcp.pop %v2219
    %v2224 = vrcp.pop %v2222
    %v2225 = vmul.f32 %v2214, %v2223
    %v2226 = vmul.f32 %v2216, %v2224
    %v2227 = vpack.c.bf16 %v2226, %v2225
    %2228 = vrot.lane.b32.xlu0 %v2158, 64
    %v2229 = vpop.permute.xlu0 %2228
    %v2232 = vsel %vm739, %v2227, 0
    %2234 = vmatpush.bf16.msra.mxu0 0
    %2235 = vmatpush.bf16.msra.mxu0 0
    %2236 = vmatpush.bf16.msra.mxu0 0
    %2237 = vmatpush.bf16.msra.mxu0 0
    %2238 = vmatpush.bf16.msra.mxu0 0
    %2239 = vmatpush.bf16.msra.mxu0 0
    %2240 = vmatpush.bf16.msra.mxu0 0
    %2241 = vmatpush.bf16.msra.mxu0 %v2229
    %2242 = vmatmul.bf16.gmra.mxu0 %v2232
    %v2243 = vpop.f32.mrf.mxu0
    %v2244 = vadd.f32 0.0, %v2243
    %v2245 = vpop.f32.mrf.mxu0
    %v2246 = vadd.f32 0.0, %v2245
    %2247 = vdwg.mxu0
    %2250 = vrot.lane.b32.xlu0 %v2244, 64
    %v2251 = vpop.permute.xlu0 %2250
    %2252 = vrot.lane.b32.xlu0 %v2246, 64
    %v2253 = vpop.permute.xlu0 %2252
    %v2256 = vsel %vm714, %v2173, %v2251
    %v2257 = vsel %vm714, %v2175, %v2253
    %v2258 = vpack.c.bf16 %v2098, %v2097
    %v2259 = vpack.c.bf16 %v2257, %v2256
    %s2260 = scalar_lea.vmem [#allocation11], 64
    %v2261 = vld [vmem:[%s2260] sm:$0xf]
    %v2262 = vld [vmem:[%s2260 + $0x4] sm:$0xf]
    %v2263 = vld [vmem:[%s2260 + $0x8] sm:$0xf]
    %v2264 = vld [vmem:[%s2260 + $0xc] sm:$0xf]
    %v2265 = vld [vmem:[%s2260 + $0x10] sm:$0xf]
    %v2266 = vld [vmem:[%s2260 + $0x14] sm:$0xf]
    %v2267 = vld [vmem:[%s2260 + $0x18] sm:$0xf]
    %v2268 = vld [vmem:[%s2260 + $0x1c] sm:$0xf]
    %v2269 = vld [vmem:[%s2260 + $0x20] sm:$0xf]
    %v2270 = vld [vmem:[%s2260 + $0x24] sm:$0xf]
    %v2271 = vld [vmem:[%s2260 + $0x28] sm:$0xf]
    %v2272 = vld [vmem:[%s2260 + $0x2c] sm:$0xf]
    %v2273 = vld [vmem:[%s2260 + $0x30] sm:$0xf]
    %v2274 = vld [vmem:[%s2260 + $0x34] sm:$0xf]
    %v2275 = vld [vmem:[%s2260 + $0x38] sm:$0xf]
    %v2276 = vld [vmem:[%s2260 + $0x3c] sm:$0xf]
    %s2277 = scalar_lea.vmem [#allocation13], 1
    %v2278 = vld [vmem:[%s2277] sm:$0x1]
    %v2280 = vperm.slane %v2278, 0
    %v2298 = vunpack.c.l.b16 %v2261
    %v2299 = vunpack.c.l.b16 %v2262
    %v2300 = vunpack.c.l.b16 %v2263
    %v2301 = vunpack.c.l.b16 %v2264
    %v2302 = vunpack.c.l.b16 %v2265
    %v2303 = vunpack.c.l.b16 %v2266
    %v2304 = vunpack.c.l.b16 %v2267
    %v2305 = vunpack.c.l.b16 %v2268
    %v2306 = vunpack.c.l.b16 %v2269
    %v2307 = vunpack.c.l.b16 %v2270
    %v2308 = vunpack.c.l.b16 %v2271
    %v2309 = vunpack.c.l.b16 %v2272
    %v2310 = vunpack.c.l.b16 %v2273
    %v2311 = vunpack.c.l.b16 %v2274
    %v2312 = vunpack.c.l.b16 %v2275
    %v2313 = vunpack.c.l.b16 %v2276
    %v2314 = vpack.c.b16 %v2299, %v2298
    %v2315 = vpack.c.b16 %v2301, %v2300
    %v2316 = vpack.c.b16 %v2303, %v2302
    %v2317 = vpack.c.b16 %v2305, %v2304
    %v2318 = vpack.c.b16 %v2307, %v2306
    %v2319 = vpack.c.b16 %v2309, %v2308
    %v2320 = vpack.c.b16 %v2311, %v2310
    %v2321 = vpack.c.b16 %v2313, %v2312
    %2330 = vmatpush.bf16.msra.mxu0 %v2321
    %2331 = vmatpush.bf16.msra.mxu0 %v2320
    %2332 = vmatpush.bf16.msra.mxu0 %v2319
    %2333 = vmatpush.bf16.msra.mxu0 %v2318
    %2334 = vmatpush.bf16.msra.mxu0 %v2317
    %2335 = vmatpush.bf16.msra.mxu0 %v2316
    %2336 = vmatpush.bf16.msra.mxu0 %v2315
    %2337 = vmatpush.bf16.msra.mxu0 %v2314
    %2338 = vmatmul.bf16.gmra.mxu0 %v2258
    %v2339 = vpop.f32.mrf.mxu0
    %v2340 = vadd.f32 %v2280, %v2339
    %v2341 = vpop.f32.mrf.mxu0
    %v2342 = vadd.f32 %v2280, %v2341
    %2343 = vmatmul.bf16.gmra.mxu0 %v2259
    %v2344 = vpop.f32.mrf.mxu0
    %v2345 = vadd.f32 %v2280, %v2344
    %v2346 = vpop.f32.mrf.mxu0
    %v2347 = vadd.f32 %v2280, %v2346
    %2348 = vdwg.mxu0
    %v2349 = vadd.f32 %v1699, %v2340
    %v2350 = vadd.f32 %v1700, %v2342
    %v2351 = vadd.f32 %v1701, %v2345
    %v2352 = vadd.f32 %v1702, %v2347
    %s2353 = scalar_lea.vmem %s10, 1
    %v2354 = vld [vmem:[%s2353] sm:$0x1]
    %s2355 = scalar_lea.vmem [#allocation14], 1
    %v2356 = vld [vmem:[%s2355] sm:$0x1]
    %2357 = vadd.xlane.f32.xlu0 %v2349
    %v2358 = vpop.xlane.xlu0 %2357
    %2359 = vadd.xlane.f32.xlu0 %v2350
    %v2360 = vpop.xlane.xlu0 %2359
    %2361 = vadd.xlane.f32.xlu0 %v2351
    %v2362 = vpop.xlane.xlu0 %2361
    %2363 = vadd.xlane.f32.xlu0 %v2352
    %v2364 = vpop.xlane.xlu0 %2363
    %v2365 = vmul.f32 %v2358, %v379
    %v2366 = vmul.f32 %v2360, %v379
    %v2367 = vmul.f32 %v2362, %v379
    %v2368 = vmul.f32 %v2364, %v379
    %v2369 = vsub.f32 %v2349, %v2365
    %v2370 = vsub.f32 %v2350, %v2366
    %v2371 = vsub.f32 %v2351, %v2367
    %v2372 = vsub.f32 %v2352, %v2368
    %v2373 = vmul.f32 %v2369, %v2369
    %v2374 = vmul.f32 %v2370, %v2370
    %v2375 = vmul.f32 %v2371, %v2371
    %v2376 = vmul.f32 %v2372, %v2372
    %2377 = vadd.xlane.f32.xlu0 %v2373
    %v2378 = vpop.xlane.xlu0 %2377
    %2379 = vadd.xlane.f32.xlu0 %v2374
    %v2380 = vpop.xlane.xlu0 %2379
    %2381 = vadd.xlane.f32.xlu0 %v2375
    %v2382 = vpop.xlane.xlu0 %2381
    %2383 = vadd.xlane.f32.xlu0 %v2376
    %v2384 = vpop.xlane.xlu0 %2383
    %v2385 = vmul.f32 %v2378, %v379
    %v2386 = vmul.f32 %v2380, %v379
    %v2387 = vmul.f32 %v2382, %v379
    %v2388 = vmul.f32 %v2384, %v379
    %v2389 = vadd.f32 %v2385, 1e-12
    %v2390 = vadd.f32 %v2386, 1e-12
    %v2391 = vadd.f32 %v2387, 1e-12
    %v2392 = vadd.f32 %v2388, 1e-12
    %v2393 = vrsqrt.pop %v2389
    %v2394 = vmul.f32 %v2393, %v2389
    %v2395 = vmul.f32 %v2394, %v2393
    %v2396 = vmul.f32 0.5, %v2395
    %v2397 = vsub.f32 1.5, %v2396
    %v2398 = vmul.f32 %v2393, %v2397
    %vm2399 = vweird.f32 %v2389
    %vm2400 = vweird.f32 %v2393
    %vm2401 = vmor %vm2399, %vm2400
    %v2402 = vsel %vm2401, %v2393, %v2398
    %v2403 = vrsqrt.pop %v2390
    %v2404 = vmul.f32 %v2403, %v2390
    %v2405 = vmul.f32 %v2404, %v2403
    %v2406 = vmul.f32 0.5, %v2405
    %v2407 = vsub.f32 1.5, %v2406
    %v2408 = vmul.f32 %v2403, %v2407
    %vm2409 = vweird.f32 %v2390
    %vm2410 = vweird.f32 %v2403
    %vm2411 = vmor %vm2409, %vm2410
    %v2412 = vsel %vm2411, %v2403, %v2408
    %v2413 = vrsqrt.pop %v2391
    %v2414 = vmul.f32 %v2413, %v2391
    %v2415 = vmul.f32 %v2414, %v2413
    %v2416 = vmul.f32 0.5, %v2415
    %v2417 = vsub.f32 1.5, %v2416
    %v2418 = vmul.f32 %v2413, %v2417
    %vm2419 = vweird.f32 %v2391
    %vm2420 = vweird.f32 %v2413
    %vm2421 = vmor %vm2419, %vm2420
    %v2422 = vsel %vm2421, %v2413, %v2418
    %v2423 = vrsqrt.pop %v2392
    %v2424 = vmul.f32 %v2423, %v2392
    %v2425 = vmul.f32 %v2424, %v2423
    %v2426 = vmul.f32 0.5, %v2425
    %v2427 = vsub.f32 1.5, %v2426
    %v2428 = vmul.f32 %v2423, %v2427
    %vm2429 = vweird.f32 %v2392
    %vm2430 = vweird.f32 %v2423
    %vm2431 = vmor %vm2429, %vm2430
    %v2432 = vsel %vm2431, %v2423, %v2428
    %v2433 = vmul.f32 %v2369, %v2402
    %v2434 = vmul.f32 %v2370, %v2412
    %v2435 = vmul.f32 %v2371, %v2422
    %v2436 = vmul.f32 %v2372, %v2432
    %v2438 = vperm.slane %v2354, 0
    %v2440 = vmul.f32 %v2433, %v2438
    %v2441 = vmul.f32 %v2434, %v2438
    %v2442 = vmul.f32 %v2435, %v2438
    %v2443 = vmul.f32 %v2436, %v2438
    %v2445 = vperm.slane %v2356, 0
    %v2447 = vadd.f32 %v2440, %v2445
    %v2448 = vadd.f32 %v2441, %v2445
    %v2449 = vadd.f32 %v2442, %v2445
    %v2450 = vadd.f32 %v2443, %v2445
    %v2451 = vpack.c.bf16 %v2448, %v2447
    %v2452 = vpack.c.bf16 %v2450, %v2449
    %s2453 = scalar_lea.vmem [#allocation16], 128
    %v2454 = vld [vmem:[%s2453] sm:$0xff]
    %v2455 = vld [vmem:[%s2453 + $0x8] sm:$0xff]
    %v2456 = vld [vmem:[%s2453 + $0x10] sm:$0xff]
    %v2457 = vld [vmem:[%s2453 + $0x18] sm:$0xff]
    %v2458 = vld [vmem:[%s2453 + $0x20] sm:$0xff]
    %v2459 = vld [vmem:[%s2453 + $0x28] sm:$0xff]
    %v2460 = vld [vmem:[%s2453 + $0x30] sm:$0xff]
    %v2461 = vld [vmem:[%s2453 + $0x38] sm:$0xff]
    %v2462 = vld [vmem:[%s2453 + $0x40] sm:$0xff]
    %v2463 = vld [vmem:[%s2453 + $0x48] sm:$0xff]
    %v2464 = vld [vmem:[%s2453 + $0x50] sm:$0xff]
    %v2465 = vld [vmem:[%s2453 + $0x58] sm:$0xff]
    %v2466 = vld [vmem:[%s2453 + $0x60] sm:$0xff]
    %v2467 = vld [vmem:[%s2453 + $0x68] sm:$0xff]
    %v2468 = vld [vmem:[%s2453 + $0x70] sm:$0xff]
    %v2469 = vld [vmem:[%s2453 + $0x78] sm:$0xff]
    %s2470 = scalar_lea.vmem %s13, 2
    %v2471 = vld [vmem:[%s2470] sm:$0x3]
    %v2473 = vperm.slane %v2471, 0
    %v2474 = vperm.slane %v2471, 1
    %v2493 = vunpack.c.l.b16 %v2454
    %v2494 = vunpack.c.h.b16 %v2454
    %v2495 = vunpack.c.l.b16 %v2455
    %v2496 = vunpack.c.h.b16 %v2455
    %v2497 = vunpack.c.l.b16 %v2456
    %v2498 = vunpack.c.h.b16 %v2456
    %v2499 = vunpack.c.l.b16 %v2457
    %v2500 = vunpack.c.h.b16 %v2457
    %v2501 = vunpack.c.l.b16 %v2458
    %v2502 = vunpack.c.h.b16 %v2458
    %v2503 = vunpack.c.l.b16 %v2459
    %v2504 = vunpack.c.h.b16 %v2459
    %v2505 = vunpack.c.l.b16 %v2460
    %v2506 = vunpack.c.h.b16 %v2460
    %v2507 = vunpack.c.l.b16 %v2461
    %v2508 = vunpack.c.h.b16 %v2461
    %v2509 = vunpack.c.l.b16 %v2462
    %v2510 = vunpack.c.h.b16 %v2462
    %v2511 = vunpack.c.l.b16 %v2463
    %v2512 = vunpack.c.h.b16 %v2463
    %v2513 = vunpack.c.l.b16 %v2464
    %v2514 = vunpack.c.h.b16 %v2464
    %v2515 = vunpack.c.l.b16 %v2465
    %v2516 = vunpack.c.h.b16 %v2465
    %v2517 = vunpack.c.l.b16 %v2466
    %v2518 = vunpack.c.h.b16 %v2466
    %v2519 = vunpack.c.l.b16 %v2467
    %v2520 = vunpack.c.h.b16 %v2467
    %v2521 = vunpack.c.l.b16 %v2468
    %v2522 = vunpack.c.h.b16 %v2468
    %v2523 = vunpack.c.l.b16 %v2469
    %v2524 = vunpack.c.h.b16 %v2469
    %v2525 = vpack.c.b16 %v2495, %v2493
    %v2526 = vpack.c.b16 %v2496, %v2494
    %v2527 = vpack.c.b16 %v2499, %v2497
    %v2528 = vpack.c.b16 %v2500, %v2498
    %v2529 = vpack.c.b16 %v2503, %v2501
    %v2530 = vpack.c.b16 %v2504, %v2502
    %v2531 = vpack.c.b16 %v2507, %v2505
    %v2532 = vpack.c.b16 %v2508, %v2506
    %v2533 = vpack.c.b16 %v2511, %v2509
    %v2534 = vpack.c.b16 %v2512, %v2510
    %v2535 = vpack.c.b16 %v2515, %v2513
    %v2536 = vpack.c.b16 %v2516, %v2514
    %v2537 = vpack.c.b16 %v2519, %v2517
    %v2538 = vpack.c.b16 %v2520, %v2518
    %v2539 = vpack.c.b16 %v2523, %v2521
    %v2540 = vpack.c.b16 %v2524, %v2522
    %2557 = vmatpush.bf16.msra.mxu0 %v2539
    %2558 = vmatpush.bf16.msra.mxu0 %v2537
    %2559 = vmatpush.bf16.msra.mxu0 %v2535
    %2560 = vmatpush.bf16.msra.mxu0 %v2533
    %2561 = vmatpush.bf16.msra.mxu0 %v2531
    %2562 = vmatpush.bf16.msra.mxu0 %v2529
    %2563 = vmatpush.bf16.msra.mxu0 %v2527
    %2564 = vmatpush.bf16.msra.mxu0 %v2525
    %2565 = vmatmul.bf16.gmra.mxu0 %v2451
    %v2566 = vpop.f32.mrf.mxu0
    %v2567 = vadd.f32 %v2473, %v2566
    %v2568 = vpop.f32.mrf.mxu0
    %v2569 = vadd.f32 %v2473, %v2568
    %2570 = vmatmul.bf16.gmra.mxu0 %v2452
    %v2571 = vpop.f32.mrf.mxu0
    %v2572 = vadd.f32 %v2473, %v2571
    %v2573 = vpop.f32.mrf.mxu0
    %v2574 = vadd.f32 %v2473, %v2573
    %2575 = vdwg.mxu0
    %2576 = vmatpush.bf16.msra.mxu0 %v2540
    %2577 = vmatpush.bf16.msra.mxu0 %v2538
    %2578 = vmatpush.bf16.msra.mxu0 %v2536
    %2579 = vmatpush.bf16.msra.mxu0 %v2534
    %2580 = vmatpush.bf16.msra.mxu0 %v2532
    %2581 = vmatpush.bf16.msra.mxu0 %v2530
    %2582 = vmatpush.bf16.msra.mxu0 %v2528
    %2583 = vmatpush.bf16.msra.mxu0 %v2526
    %2584 = vmatmul.bf16.gmra.mxu0 %v2451
    %v2585 = vpop.f32.mrf.mxu0
    %v2586 = vadd.f32 %v2474, %v2585
    %v2587 = vpop.f32.mrf.mxu0
    %v2588 = vadd.f32 %v2474, %v2587
    %2589 = vmatmul.bf16.gmra.mxu0 %v2452
    %v2590 = vpop.f32.mrf.mxu0
    %v2591 = vadd.f32 %v2474, %v2590
    %v2592 = vpop.f32.mrf.mxu0
    %v2593 = vadd.f32 %v2474, %v2592
    %2594 = vdwg.mxu0
    %v2595 = vmul.f32 %v2567, %v2567
    %v2596 = vmul.f32 %v2586, %v2586
    %v2597 = vmul.f32 %v2569, %v2569
    %v2598 = vmul.f32 %v2588, %v2588
    %v2599 = vmul.f32 %v2572, %v2572
    %v2600 = vmul.f32 %v2591, %v2591
    %v2601 = vmul.f32 %v2574, %v2574
    %v2602 = vmul.f32 %v2593, %v2593
    %v2603 = vmul.f32 %v2567, %v2595
    %v2604 = vmul.f32 %v2586, %v2596
    %v2605 = vmul.f32 %v2569, %v2597
    %v2606 = vmul.f32 %v2588, %v2598
    %v2607 = vmul.f32 %v2572, %v2599
    %v2608 = vmul.f32 %v2591, %v2600
    %v2609 = vmul.f32 %v2574, %v2601
    %v2610 = vmul.f32 %v2593, %v2602
    %v2611 = vmul.f32 %v2603, 0.044715
    %v2612 = vmul.f32 %v2604, 0.044715
    %v2613 = vmul.f32 %v2605, 0.044715
    %v2614 = vmul.f32 %v2606, 0.044715
    %v2615 = vmul.f32 %v2607, 0.044715
    %v2616 = vmul.f32 %v2608, 0.044715
    %v2617 = vmul.f32 %v2609, 0.044715
    %v2618 = vmul.f32 %v2610, 0.044715
    %v2619 = vadd.f32 %v2567, %v2611
    %v2620 = vadd.f32 %v2586, %v2612
    %v2621 = vadd.f32 %v2569, %v2613
    %v2622 = vadd.f32 %v2588, %v2614
    %v2623 = vadd.f32 %v2572, %v2615
    %v2624 = vadd.f32 %v2591, %v2616
    %v2625 = vadd.f32 %v2574, %v2617
    %v2626 = vadd.f32 %v2593, %v2618
    %v2627 = vmul.f32 %v2619, 0.7978846
    %v2628 = vmul.f32 %v2620, 0.7978846
    %v2629 = vmul.f32 %v2621, 0.7978846
    %v2630 = vmul.f32 %v2622, 0.7978846
    %v2631 = vmul.f32 %v2623, 0.7978846
    %v2632 = vmul.f32 %v2624, 0.7978846
    %v2633 = vmul.f32 %v2625, 0.7978846
    %v2634 = vmul.f32 %v2626, 0.7978846
    %v2635 = vtanh.pop %v2627
    %v2636 = vtanh.pop %v2628
    %v2637 = vtanh.pop %v2629
    %v2638 = vtanh.pop %v2630
    %v2639 = vtanh.pop %v2631
    %v2640 = vtanh.pop %v2632
    %v2641 = vtanh.pop %v2633
    %v2642 = vtanh.pop %v2634
    %v2643 = vadd.f32 %v2635, 1.0
    %v2644 = vadd.f32 %v2636, 1.0
    %v2645 = vadd.f32 %v2637, 1.0
    %v2646 = vadd.f32 %v2638, 1.0
    %v2647 = vadd.f32 %v2639, 1.0
    %v2648 = vadd.f32 %v2640, 1.0
    %v2649 = vadd.f32 %v2641, 1.0
    %v2650 = vadd.f32 %v2642, 1.0
    %v2651 = vmul.f32 %v2643, 0.5
    %v2652 = vmul.f32 %v2644, 0.5
    %v2653 = vmul.f32 %v2645, 0.5
    %v2654 = vmul.f32 %v2646, 0.5
    %v2655 = vmul.f32 %v2647, 0.5
    %v2656 = vmul.f32 %v2648, 0.5
    %v2657 = vmul.f32 %v2649, 0.5
    %v2658 = vmul.f32 %v2650, 0.5
    %v2659 = vmul.f32 %v2567, %v2651
    %v2660 = vmul.f32 %v2586, %v2652
    %v2661 = vmul.f32 %v2569, %v2653
    %v2662 = vmul.f32 %v2588, %v2654
    %v2663 = vmul.f32 %v2572, %v2655
    %v2664 = vmul.f32 %v2591, %v2656
    %v2665 = vmul.f32 %v2574, %v2657
    %v2666 = vmul.f32 %v2593, %v2658
    %v2667 = vpack.c.bf16 %v2661, %v2659
    %v2668 = vpack.c.bf16 %v2662, %v2660
    %v2669 = vpack.c.bf16 %v2665, %v2663
    %v2670 = vpack.c.bf16 %v2666, %v2664
    %s2671 = scalar_lea.vmem [#allocation17], 128
    %v2672 = vld [vmem:[%s2671] sm:$0xf]
    %v2673 = vld [vmem:[%s2671 + $0x4] sm:$0xf]
    %v2674 = vld [vmem:[%s2671 + $0x8] sm:$0xf]
    %v2675 = vld [vmem:[%s2671 + $0xc] sm:$0xf]
    %v2676 = vld [vmem:[%s2671 + $0x10] sm:$0xf]
    %v2677 = vld [vmem:[%s2671 + $0x14] sm:$0xf]
    %v2678 = vld [vmem:[%s2671 + $0x18] sm:$0xf]
    %v2679 = vld [vmem:[%s2671 + $0x1c] sm:$0xf]
    %v2680 = vld [vmem:[%s2671 + $0x20] sm:$0xf]
    %v2681 = vld [vmem:[%s2671 + $0x24] sm:$0xf]
    %v2682 = vld [vmem:[%s2671 + $0x28] sm:$0xf]
    %v2683 = vld [vmem:[%s2671 + $0x2c] sm:$0xf]
    %v2684 = vld [vmem:[%s2671 + $0x30] sm:$0xf]
    %v2685 = vld [vmem:[%s2671 + $0x34] sm:$0xf]
    %v2686 = vld [vmem:[%s2671 + $0x38] sm:$0xf]
    %v2687 = vld [vmem:[%s2671 + $0x3c] sm:$0xf]
    %v2688 = vld [vmem:[%s2671 + $0x40] sm:$0xf]
    %v2689 = vld [vmem:[%s2671 + $0x44] sm:$0xf]
    %v2690 = vld [vmem:[%s2671 + $0x48] sm:$0xf]
    %v2691 = vld [vmem:[%s2671 + $0x4c] sm:$0xf]
    %v2692 = vld [vmem:[%s2671 + $0x50] sm:$0xf]
    %v2693 = vld [vmem:[%s2671 + $0x54] sm:$0xf]
    %v2694 = vld [vmem:[%s2671 + $0x58] sm:$0xf]
    %v2695 = vld [vmem:[%s2671 + $0x5c] sm:$0xf]
    %v2696 = vld [vmem:[%s2671 + $0x60] sm:$0xf]
    %v2697 = vld [vmem:[%s2671 + $0x64] sm:$0xf]
    %v2698 = vld [vmem:[%s2671 + $0x68] sm:$0xf]
    %v2699 = vld [vmem:[%s2671 + $0x6c] sm:$0xf]
    %v2700 = vld [vmem:[%s2671 + $0x70] sm:$0xf]
    %v2701 = vld [vmem:[%s2671 + $0x74] sm:$0xf]
    %v2702 = vld [vmem:[%s2671 + $0x78] sm:$0xf]
    %v2703 = vld [vmem:[%s2671 + $0x7c] sm:$0xf]
    %s2704 = scalar_lea.vmem [#allocation19], 1
    %v2705 = vld [vmem:[%s2704] sm:$0x1]
    %v2707 = vperm.slane %v2705, 0
    %v2741 = vunpack.c.l.b16 %v2672
    %v2742 = vunpack.c.l.b16 %v2673
    %v2743 = vunpack.c.l.b16 %v2674
    %v2744 = vunpack.c.l.b16 %v2675
    %v2745 = vunpack.c.l.b16 %v2676
    %v2746 = vunpack.c.l.b16 %v2677
    %v2747 = vunpack.c.l.b16 %v2678
    %v2748 = vunpack.c.l.b16 %v2679
    %v2749 = vunpack.c.l.b16 %v2680
    %v2750 = vunpack.c.l.b16 %v2681
    %v2751 = vunpack.c.l.b16 %v2682
    %v2752 = vunpack.c.l.b16 %v2683
    %v2753 = vunpack.c.l.b16 %v2684
    %v2754 = vunpack.c.l.b16 %v2685
    %v2755 = vunpack.c.l.b16 %v2686
    %v2756 = vunpack.c.l.b16 %v2687
    %v2757 = vunpack.c.l.b16 %v2688
    %v2758 = vunpack.c.l.b16 %v2689
    %v2759 = vunpack.c.l.b16 %v2690
    %v2760 = vunpack.c.l.b16 %v2691
    %v2761 = vunpack.c.l.b16 %v2692
    %v2762 = vunpack.c.l.b16 %v2693
    %v2763 = vunpack.c.l.b16 %v2694
    %v2764 = vunpack.c.l.b16 %v2695
    %v2765 = vunpack.c.l.b16 %v2696
    %v2766 = vunpack.c.l.b16 %v2697
    %v2767 = vunpack.c.l.b16 %v2698
    %v2768 = vunpack.c.l.b16 %v2699
    %v2769 = vunpack.c.l.b16 %v2700
    %v2770 = vunpack.c.l.b16 %v2701
    %v2771 = vunpack.c.l.b16 %v2702
    %v2772 = vunpack.c.l.b16 %v2703
    %v2773 = vpack.c.b16 %v2742, %v2741
    %v2774 = vpack.c.b16 %v2744, %v2743
    %v2775 = vpack.c.b16 %v2746, %v2745
    %v2776 = vpack.c.b16 %v2748, %v2747
    %v2777 = vpack.c.b16 %v2750, %v2749
    %v2778 = vpack.c.b16 %v2752, %v2751
    %v2779 = vpack.c.b16 %v2754, %v2753
    %v2780 = vpack.c.b16 %v2756, %v2755
    %v2781 = vpack.c.b16 %v2758, %v2757
    %v2782 = vpack.c.b16 %v2760, %v2759
    %v2783 = vpack.c.b16 %v2762, %v2761
    %v2784 = vpack.c.b16 %v2764, %v2763
    %v2785 = vpack.c.b16 %v2766, %v2765
    %v2786 = vpack.c.b16 %v2768, %v2767
    %v2787 = vpack.c.b16 %v2770, %v2769
    %v2788 = vpack.c.b16 %v2772, %v2771
    %2805 = vmatpush.bf16.msra.mxu0 %v2780
    %2806 = vmatpush.bf16.msra.mxu0 %v2779
    %2807 = vmatpush.bf16.msra.mxu0 %v2778
    %2808 = vmatpush.bf16.msra.mxu0 %v2777
    %2809 = vmatpush.bf16.msra.mxu0 %v2776
    %2810 = vmatpush.bf16.msra.mxu0 %v2775
    %2811 = vmatpush.bf16.msra.mxu0 %v2774
    %2812 = vmatpush.bf16.msra.mxu0 %v2773
    %2813 = vmatmul.bf16.gmra.mxu0 %v2667
    %v2814 = vpop.f32.mrf.mxu0
    %v2815 = vadd.f32 %v2707, %v2814
    %v2816 = vpop.f32.mrf.mxu0
    %2817 = vmatmul.bf16.gmra.mxu0 %v2669
    %v2818 = vpop.f32.mrf.mxu0
    %v2819 = vadd.f32 %v2707, %v2818
    %v2820 = vpop.f32.mrf.mxu0
    %2821 = vdwg.mxu0
    %2822 = vmatpush.bf16.msra.mxu0 %v2788
    %2823 = vmatpush.bf16.msra.mxu0 %v2787
    %2824 = vmatpush.bf16.msra.mxu0 %v2786
    %2825 = vmatpush.bf16.msra.mxu0 %v2785
    %2826 = vmatpush.bf16.msra.mxu0 %v2784
    %2827 = vmatpush.bf16.msra.mxu0 %v2783
    %2828 = vmatpush.bf16.msra.mxu0 %v2782
    %2829 = vmatpush.bf16.msra.mxu0 %v2781
    %2830 = vmatmul.bf16.gmra.mxu0 %v2668
    %v2831 = vpop.f32.mrf.mxu0
    %v2832 = vadd.f32 %v2815, %v2831
    %v2833 = vpop.f32.mrf.mxu0
    %2834 = vmatmul.bf16.gmra.mxu0 %v2670
    %v2835 = vpop.f32.mrf.mxu0
    %v2836 = vadd.f32 %v2819, %v2835
    %v2837 = vpop.f32.mrf.mxu0
    %2838 = vdwg.mxu0
    %v2839 = vadd.f32 %v2447, %v2832
    %v2840 = vadd.f32 %v2449, %v2836
    %s2841 = scalar_lea.vmem %s16, 1
    %v2842 = vld [vmem:[%s2841] sm:$0x1]
    %s2843 = scalar_lea.vmem [#allocation20], 1
    %v2844 = vld [vmem:[%s2843] sm:$0x1]
    %2845 = vadd.xlane.f32.xlu0 %v2839
    %v2846 = vpop.xlane.xlu0 %2845
    %2847 = vadd.xlane.f32.xlu0 %v2840
    %v2848 = vpop.xlane.xlu0 %2847
    %v2849 = vmul.f32 %v2846, %v379
    %v2850 = vmul.f32 %v2848, %v379
    %v2851 = vsub.f32 %v2839, %v2849
    %v2852 = vsub.f32 %v2840, %v2850
    %v2853 = vmul.f32 %v2851, %v2851
    %v2854 = vmul.f32 %v2852, %v2852
    %2855 = vadd.xlane.f32.xlu0 %v2853
    %v2856 = vpop.xlane.xlu0 %2855
    %2857 = vadd.xlane.f32.xlu0 %v2854
    %v2858 = vpop.xlane.xlu0 %2857
    %v2859 = vmul.f32 %v2856, %v379
    %v2860 = vmul.f32 %v2858, %v379
    %v2861 = vadd.f32 %v2859, 1e-12
    %v2862 = vadd.f32 %v2860, 1e-12
    %v2863 = vrsqrt.pop %v2861
    %v2864 = vmul.f32 %v2863, %v2861
    %v2865 = vmul.f32 %v2864, %v2863
    %v2866 = vmul.f32 0.5, %v2865
    %v2867 = vsub.f32 1.5, %v2866
    %v2868 = vmul.f32 %v2863, %v2867
    %vm2869 = vweird.f32 %v2861
    %vm2870 = vweird.f32 %v2863
    %vm2871 = vmor %vm2869, %vm2870
    %v2872 = vsel %vm2871, %v2863, %v2868
    %v2873 = vrsqrt.pop %v2862
    %v2874 = vmul.f32 %v2873, %v2862
    %v2875 = vmul.f32 %v2874, %v2873
    %v2876 = vmul.f32 0.5, %v2875
    %v2877 = vsub.f32 1.5, %v2876
    %v2878 = vmul.f32 %v2873, %v2877
    %vm2879 = vweird.f32 %v2862
    %vm2880 = vweird.f32 %v2873
    %vm2881 = vmor %vm2879, %vm2880
    %v2882 = vsel %vm2881, %v2873, %v2878
    %v2883 = vmul.f32 %v2851, %v2872
    %v2884 = vmul.f32 %v2852, %v2882
    %v2886 = vperm.slane %v2842, 0
    %v2888 = vmul.f32 %v2883, %v2886
    %v2889 = vmul.f32 %v2884, %v2886
    %v2891 = vperm.slane %v2844, 0
    %v2893 = vadd.f32 %v2888, %v2891
    %v2894 = vadd.f32 %v2889, %v2891
    %v2896 = vrot.slane %v2894, 7
    %vm2898 = vcmask 1040384
    %v2899 = vsel %vm2898, %v2893, %v2896
    %2900 = vst [vmem:[#allocation22] sm:$0x3] %v2899
    // Predicated region
    $region122: #{question_encoder_forward.1} parent=1 // pred_check
      _
    $region123: #{question_encoder_forward.1} parent=1 // pred_check_branch
      %2902 = sbr.rel (0) target = $region125
    $region124: #{question_encoder_forward.1} parent=1 // pred_region
      %2904 = vsyncadd [#allocation4], 0
      %s2906 = sshll.u32 [#allocation22], 4
      %s2907 = int_to_ptr.vmem [resolvable:$true] %s2906
      %s2908 = sshll.u32 %s18, 4
      %s2909 = int_to_ptr.hbm [resolvable:$true] %s2908
      %2911 = dma.vmem_to_hbm [thread:$0]  %s2907, 32, %s2909, [#allocation4]
    $region125: #{question_encoder_forward.1} parent=1 // pred_fallthru
      _
    // Predicated region
    $region126: #{question_encoder_forward.1} parent=1 // pred_check
      _
    $region127: #{question_encoder_forward.1} parent=1 // pred_check_branch
      %2913 = sbr.rel (0) target = $region129
    $region128: #{question_encoder_forward.1} parent=1 // pred_region
      %2915 = dma.done [#allocation4], 32
    $region129: #{question_encoder_forward.1} parent=1 // pred_fallthru
      _
    %2916 = vsyncpa [#allocation3], 1
    %2917 = vsyncpa [#allocation6], 1
    %2918 = vsyncpa [#allocation9], 1
    %2919 = vsyncpa [#allocation12], 1
    %2920 = vsyncpa [#allocation15], 1
    %2921 = vsyncpa [#allocation18], 1
    %2922 = vsyncpa [#allocation21], 1
    %2923 = vsyncpa [#allocation4], 1

</llo_original>
